<compile_context>
chip_gen: v5e
topology: v5e:2x2
jax: 0.10.0
libtpu: 0.0.40
codegen_flags: <defaults>
</compile_context>

<pallas_src>
import functools

import jax
import jax.numpy as jnp
from jax.experimental import pallas as pl
from jax.experimental.pallas import tpu as pltpu

TM = 512                      # max row tile (rows = N*H*W)
ACT_DTYPE = jnp.bfloat16      # activation storage dtype between layers


def _round_up(x, m):
    return (x + m - 1) // m * m


def _row_tile(m):
    # Guarantee >=2 grid steps whenever possible so both v7x TensorCores get work.
    half = _round_up((m + 1) // 2, 8)
    return max(8, min(TM, half))


@functools.lru_cache(maxsize=None)
def _vmem_limit_bytes():
    # Generation-aware: half of physical VMEM, never above 64 MiB
    # (v5e/v6e: 128 MiB -> 64 MiB cap; v7x: 64 MiB per TC -> 32 MiB).
    cap = 128 * 1024 * 1024
    try:
        cap = int(pltpu.get_tpu_info().vmem_capacity_bytes)
    except Exception:
        pass
    return min(64 * 1024 * 1024, cap // 2)


def _cparams():
    return pltpu.CompilerParams(
        dimension_semantics=("parallel",),
        vmem_limit_bytes=_vmem_limit_bytes(),
    )


# ---------------------------------------------------------------------------
# Fused matmul kernels (BN scale folded into weights at init -> add + relu only)
# ---------------------------------------------------------------------------
def _mm_pre_kernel(a_ref, b_ref, tp_ref, o_ref):
    # relu(a + t_pre) @ W            (transition: norm -> relu -> 1x1 conv)
    a = jnp.maximum(a_ref[...] + tp_ref[...], 0)          # bf16 VALU on v6e/v7x
    o_ref[...] = jnp.dot(a, b_ref[...],
                         preferred_element_type=jnp.float32).astype(o_ref.dtype)


def _mm_pre_post_kernel(a_ref, b_ref, tp_ref, tq_ref, o_ref):
    # relu(relu(a + t1) @ W1 + t2)   (norm1->relu1->conv1 with norm2->relu2 epilogue)
    a = jnp.maximum(a_ref[...] + tp_ref[...], 0)
    acc = jnp.dot(a, b_ref[...], preferred_element_type=jnp.float32)
    o_ref[...] = jnp.maximum(acc + tq_ref[...], 0.0).astype(o_ref.dtype)


def _mm_post_kernel(a_ref, b_ref, tq_ref, o_ref):
    # relu(a @ W + t0)               (conv0 -> norm0 -> relu0)
    acc = jnp.dot(a_ref[...], b_ref[...], preferred_element_type=jnp.float32)
    o_ref[...] = jnp.maximum(acc + tq_ref[...], 0.0).astype(o_ref.dtype)


def fused_matmul(a, b, *, pre_shift=None, post_shift=None, out_dtype=ACT_DTYPE):
    """a: (M, K) bf16, b: (K, N) bf16 (BN scale already folded into b).

    If M % tm != 0 Pallas pads the last row tile; the prologue then computes
    relu on padded garbage rows, which is harmless (stores are masked).
    """
    M, K = a.shape
    Kb, N = b.shape
    assert K == Kb
    tm = _row_tile(M)
    ins = [a, b]
    in_specs = [
        pl.BlockSpec((tm, K), lambda i: (i, 0)),
        pl.BlockSpec((K, N), lambda i: (0, 0)),           # grid-invariant weight
    ]
    if pre_shift is not None:
        ins.append(pre_shift.reshape(1, K).astype(a.dtype))
        in_specs.append(pl.BlockSpec((1, K), lambda i: (0, 0)))
    if post_shift is not None:
        ins.append(post_shift.reshape(1, N).astype(jnp.float32))
        in_specs.append(pl.BlockSpec((1, N), lambda i: (0, 0)))
    if pre_shift is not None and post_shift is not None:
        kernel = _mm_pre_post_kernel
    elif pre_shift is not None:
        kernel = _mm_pre_kernel
    else:
        kernel = _mm_post_kernel
    return pl.pallas_call(
        kernel,
        out_shape=jax.ShapeDtypeStruct((M, N), out_dtype),
        grid=(pl.cdiv(M, tm),),
        in_specs=in_specs,
        out_specs=pl.BlockSpec((tm, N), lambda i: (i, 0)),
        compiler_params=_cparams(),
    )(*ins)


# ---------------------------------------------------------------------------
# Direct 3x3 conv (tap-stacked single matmul), input already activated
# ---------------------------------------------------------------------------
def _make_conv3x3_kernel(H, W, Cout):
    """3x3 / stride-1 / pad-1 conv.

    Input per image: spatially zero-padded, width-flattened (Hp*Wp, Cin) bf16
    that has ALREADY been through norm2->relu2 (fused into the preceding 1x1
    matmul epilogue), so the zero halo is exactly the conv's zero padding.
    The 9 taps are stacked into one (Cin, 9*Cout) weight: a single lane-dense
    MXU matmul, then 9 row-shifted (rows, Cout) column groups are accumulated.
    """
    Wp = W + 2
    Lout = (H - 1) * Wp + W                  # covers every valid output row
    offs = [i * Wp + j for i in range(3) for j in range(3)]

    def kernel(x_ref, w_ref, o_ref):
        x = x_ref[0]                                               # (Hp*Wp, Cin) bf16
        y = jnp.dot(x, w_ref[...], preferred_element_type=jnp.float32)  # (Hp*Wp, 9*Cout)
        acc = jnp.zeros((Lout, Cout), jnp.float32)
        for k, off in enumerate(offs):                             # 9 shifted adds (VPU)
            acc = acc + y[off:off + Lout, k * Cout:(k + 1) * Cout]
        for h in range(H):                                         # direct store, no pad/slice
            o_ref[0, h] = acc[h * Wp:h * Wp + W, :].astype(o_ref.dtype)

    return kernel


def conv3x3(x_nhwc, w_taps, out_dtype=ACT_DTYPE):
    """conv2 over already-activated x.  w_taps: (Cin, 9*Cout), tap k = 3*i + j."""
    N, H, W, Cin = x_nhwc.shape
    Cout = w_taps.shape[1] // 9
    Hp, Wp = H + 2, W + 2
    # Zero spatial pad + flatten to per-image padded rows (cheap bf16 layout pass).
    xflat = jnp.pad(x_nhwc, ((0, 0), (1, 1), (1, 1), (0, 0))).reshape(N, Hp * Wp, Cin)
    # TODO(synk): tile H (with halo) inside the kernel for large feature maps.
    return pl.pallas_call(
        _make_conv3x3_kernel(H, W, Cout),
        out_shape=jax.ShapeDtypeStruct((N, H, W, Cout), out_dtype),
        grid=(N,),
        in_specs=[
            pl.BlockSpec((1, Hp * Wp, Cin), lambda n: (n, 0, 0)),
            pl.BlockSpec((Cin, 9 * Cout), lambda n: (0, 0)),       # grid-invariant weight
        ],
        out_specs=pl.BlockSpec((1, H, W, Cout), lambda n: (n, 0, 0, 0)),
        compiler_params=_cparams(),
    )(xflat, w_taps)


# ---------------------------------------------------------------------------
# Fused norm5 -> relu -> global average pool (scale folded into classifier)
# ---------------------------------------------------------------------------
def _gap_kernel(x_ref, t_ref, o_ref):
    x = x_ref[0].astype(jnp.float32)                 # (HW, C)
    y = jnp.maximum(x + t_ref[...], 0.0)
    o_ref[0] = jnp.mean(y, axis=0, keepdims=True)    # (1, C)


def gap_bn_relu(x, shift):
    """x: (N, HW, C) bf16 -> (N, C) f32 means of relu(x + shift)."""
    N, HW, C = x.shape
    t = shift.reshape(1, C).astype(jnp.float32)
    # TODO(synk): for large HW, tile rows and accumulate sums in VMEM scratch.
    out = pl.pallas_call(
        _gap_kernel,
        out_shape=jax.ShapeDtypeStruct((N, 1, C), jnp.float32),
        grid=(N,),
        in_specs=[
            pl.BlockSpec((1, HW, C), lambda n: (n, 0, 0)),
            pl.BlockSpec((1, C), lambda n: (0, 0)),
        ],
        out_specs=pl.BlockSpec((1, 1, C), lambda n: (n, 0, 0)),
        compiler_params=_cparams(),
    )(x, t)
    return out.reshape(N, C)


# ---------------------------------------------------------------------------
# Stem conv / pooling
# ---------------------------------------------------------------------------
def conv0_bn_relu(x_nhwc, w_mat, post_shift, *, kh=7, kw=7, stride=2, padding=3):
    """relu(norm0(conv0(x))) via the matmul epilogue (norm0 scale folded into w)."""
    # TODO(synk): replace the one-time im2col with a strided direct-conv kernel
    # for large (e.g. 224^2) inputs.
    N, H, W, C = x_nhwc.shape
    xp = jnp.pad(x_nhwc, ((0, 0), (padding, padding), (padding, padding), (0, 0)))
    Ho = (H + 2 * padding - kh) // stride + 1
    Wo = (W + 2 * padding - kw) // stride + 1
    cols = [xp[:, i:i + stride * Ho:stride, j:j + stride * Wo:stride, :]
            for i in range(kh) for j in range(kw)]
    patches = jnp.concatenate(cols, axis=-1).astype(jnp.bfloat16)   # (N,Ho,Wo,kh*kw*C)
    a = patches.reshape(N * Ho * Wo, kh * kw * C)
    out = fused_matmul(a, w_mat, post_shift=post_shift)
    return out.reshape(N, Ho, Wo, -1)


def max_pool_3x3s2(x):
    # Small one-time op after the stem; plain XLA reduce_window (bf16).
    return jax.lax.reduce_window(
        x, jnp.asarray(-jnp.inf, dtype=x.dtype), jax.lax.max,
        window_dimensions=(1, 3, 3, 1), window_strides=(1, 2, 2, 1),
        padding=((0, 0), (1, 1), (1, 1), (0, 0)))


def avg_pool_2x2(x):
    # TODO(synk): fuse the 2x2 average pool into the transition matmul epilogue.
    N, H, W, C = x.shape
    x = x[:, :H // 2 * 2, :W // 2 * 2, :]            # PyTorch floor behaviour
    y = x.reshape(N, H // 2, 2, W // 2, 2, C).astype(jnp.float32).mean(axis=(2, 4))
    return y.astype(x.dtype)                          # bf16 storage


# ---------------------------------------------------------------------------
# Parameters (BN folded into conv weights, matmul-layout bf16, zero-padded K)
# ---------------------------------------------------------------------------
def _kaiming_conv(key, cout, cin, kh, kw):
    fan_in = cin * kh * kw
    std = (2.0 / fan_in) ** 0.5
    return jax.random.normal(key, (cout, cin, kh, kw), jnp.float32) * std


def _fold_bn(c, eps=1e-5):
    # gamma=1, beta=0, running_mean=0, running_var=1 (module init, inference mode)
    gamma = jnp.ones((c,), jnp.float32)
    beta = jnp.zeros((c,), jnp.float32)
    mean = jnp.zeros((c,), jnp.float32)
    var = jnp.ones((c,), jnp.float32)
    scale = gamma * jax.lax.rsqrt(var + eps)
    shift = beta - mean * scale
    # Folding the scale into the neighbouring conv weight requires scale > 0
    # (relu(x*s+t) == s*relu(x + t/s) only for s > 0). True for gamma=1 init.
    assert float(jnp.min(scale)) > 0.0, "BN scale must be strictly positive to fold"
    return scale, shift


def init_densenet_params(key, growth_rate, block_config, num_init_features,
                         bn_size, num_classes):
    n_keys = 2 + 2 * sum(block_config) + max(0, len(block_config) - 1)
    keys = iter(jax.random.split(key, n_keys))
    params = {}

    # conv0 -> norm0: fold norm0 scale into conv0 output columns.
    w0 = _kaiming_conv(next(keys), num_init_features, 3, 7, 7)
    s0, t0 = _fold_bn(num_init_features)
    w0m = jnp.transpose(w0, (2, 3, 1, 0)).reshape(7 * 7 * 3, num_init_features)
    params["conv0_w"] = (w0m * s0[None, :]).astype(jnp.bfloat16)
    params["conv0_shift"] = t0.astype(jnp.float32)

    num_features = num_init_features
    cmid = bn_size * growth_rate
    blocks = []
    for bi, num_layers in enumerate(block_config):
        c_end = num_features + num_layers * growth_rate
        layers = []
        for li in range(num_layers):
            nin = num_features + li * growth_rate
            # norm1 (scale folded into conv1 rows, weight zero-padded to c_end rows
            # so every layer in the block can read the full channel slab).
            s1, t1 = _fold_bn(nin)
            w1 = _kaiming_conv(next(keys), cmid, nin, 1, 1)[:, :, 0, 0].T     # (nin, cmid)
            w1 = jnp.pad(w1 * s1[:, None], ((0, c_end - nin), (0, 0)))
            t1p = jnp.pad(t1 / s1, (0, c_end - nin))
            # norm2 (scale folded into conv2 tap rows, shift applied as conv1 epilogue).
            s2, t2 = _fold_bn(cmid)
            w2 = _kaiming_conv(next(keys), growth_rate, cmid, 3, 3)
            w2 = (jnp.transpose(w2, (1, 2, 3, 0)) * s2[:, None, None, None]
                  ).reshape(cmid, 9 * growth_rate)                           # (Cin, 9*Cout)
            layers.append({
                "w1": w1.astype(jnp.bfloat16),
                "t1": t1p.astype(jnp.bfloat16),
                "t2": (t2 / s2).astype(jnp.float32),
                "w2": w2.astype(jnp.bfloat16),
            })
        num_features = c_end
        block = {"layers": layers}
        if bi != len(block_config) - 1:
            st, tt = _fold_bn(num_features)
            wt = _kaiming_conv(next(keys), num_features // 2,
                               num_features, 1, 1)[:, :, 0, 0].T             # (C, C/2)
            block["transition"] = {
                "w": (wt * st[:, None]).astype(jnp.bfloat16),
                "pre_shift": (tt / st).astype(jnp.bfloat16),
            }
            num_features //= 2
        blocks.append(block)
    params["blocks"] = blocks

    # norm5: shift handled in the fused GAP kernel, scale folded into classifier rows.
    s5, t5 = _fold_bn(num_features)
    params["gap_shift"] = (t5 / s5).astype(jnp.float32)
    # NOTE: classifier weight init differs from nn.Linear's default uniform init
    # (benchmarking with random weights only); bias=0 matches the module init.
    wc = (jax.random.normal(next(keys), (num_features, num_classes), jnp.float32)
          * (1.0 / num_features ** 0.5))
    params["classifier_wt"] = wc * s5[:, None]
    params["classifier_b"] = jnp.zeros((num_classes,), jnp.float32)
    return params


# ---------------------------------------------------------------------------
# Forward pass (DenseNet.forward, n_dimensions == 2)
# ---------------------------------------------------------------------------
def _dense_block_forward(x, layers):
    """One _DenseBlock: channel slab instead of per-layer concatenation."""
    N, H, W, C0 = x.shape
    C_end = layers[0]["w1"].shape[0]           # all w1 are zero-padded to C_end rows
    M = N * H * W
    # Zero-filled channel slab; unwritten channels hit zero weight rows -> exact.
    slab = jnp.pad(x, ((0, 0), (0, 0), (0, 0), (0, C_end - C0)))
    c_off = C0
    for layer in layers:
        # norm1 -> relu1 -> conv1(1x1) -> norm2 -> relu2, one fused MXU pass.
        b = fused_matmul(slab.reshape(M, C_end), layer["w1"],
                         pre_shift=layer["t1"], post_shift=layer["t2"])
        b = b.reshape(N, H, W, -1)
        # conv2 (3x3) on the already-activated bottleneck; exact zero halo.
        h_new = conv3x3(b, layer["w2"])                     # (N, H, W, growth)
        # In-place channel-slice update (drop_rate == 0 -> dropout is identity).
        slab = jax.lax.dynamic_update_slice(slab, h_new, (0, 0, 0, c_off))
        c_off += h_new.shape[-1]
    return slab                                             # == torch.cat(features, 1)


def densenet_forward(params, x_nchw):
    x = jnp.transpose(x_nchw, (0, 2, 3, 1)).astype(jnp.float32)   # NCHW -> NHWC

    # conv0 -> norm0 -> relu0 (fused epilogue) -> pool0
    x = conv0_bn_relu(x, params["conv0_w"], params["conv0_shift"])
    x = max_pool_3x3s2(x)

    for block in params["blocks"]:
        x = _dense_block_forward(x, block["layers"])
        if "transition" in block:
            N, H, W, C = x.shape
            t = block["transition"]
            x = fused_matmul(x.reshape(N * H * W, C), t["w"],
                             pre_shift=t["pre_shift"]).reshape(N, H, W, -1)
            x = avg_pool_2x2(x)

    # norm5 -> F.relu -> adaptive_avg_pool2d((1,1)), one fused kernel.
    N, H, W, C = x.shape
    pooled = gap_bn_relu(x.reshape(N, H * W, C), params["gap_shift"])   # (N, C) f32
    # Tiny (N x C) GEMM: plain jnp.dot beats a padded Pallas call at this size.
    logits = jnp.dot(pooled, params["classifier_wt"],
                     preferred_element_type=jnp.float32) + params["classifier_b"][None, :]
    return logits


if __name__ == "__main__":
    # Small but channel-realistic config (bottleneck width = bn_size*growth = 128
    # keeps the dominant matmul operands lane-dense).
    growth_rate = 32
    block_config = (2, 2)
    num_init_features = 64
    bn_size = 4
    num_classes = 10

    key = jax.random.PRNGKey(0)
    pkey, xkey = jax.random.split(key)
    params = init_densenet_params(pkey, growth_rate, block_config,
                                  num_init_features, bn_size, num_classes)
    x = jax.random.normal(xkey, (2, 3, 32, 32), jnp.float32)      # NCHW like PyTorch

    fwd = jax.jit(densenet_forward)
    out = jax.block_until_ready(fwd(params, x))
    assert out.shape == (2, num_classes), out.shape
    assert bool(jnp.all(jnp.isfinite(out)))
    print("KERNEL_OK")
</pallas_src>

<mosaic_0001>
module attributes {stable_mosaic.version = 11 : i64} {
  func.func @_mm_post_kernel(%arg0: i32, %arg1: memref<256x147xbf16, #tpu.memory_space<vmem>>, %arg2: memref<147x64xbf16, #tpu.memory_space<vmem>>, %arg3: memref<1x64xf32, #tpu.memory_space<vmem>>, %arg4: memref<256x64xbf16, #tpu.memory_space<vmem>>) attributes {dimension_semantics = [#tpu.dimension_semantics<parallel>], iteration_bounds = array<i64: 2>, scalar_prefetch = 0 : i64, scratch_operands = 0 : i64, tpu.core_type = #tpu.core_type<tc>, window_params = [{transform_indices = @transform_0, window_bounds = array<i64: 256, 147>}, {pipeline_mode = #tpu.pipeline_mode<synchronous>, transform_indices = @transform_1, window_bounds = array<i64: 147, 64>}, {pipeline_mode = #tpu.pipeline_mode<synchronous>, transform_indices = @transform_2, window_bounds = array<i64: 1, 64>}, {transform_indices = @transform_3, window_bounds = array<i64: 256, 64>}]} {
    %c0 = arith.constant 0 : index
    %c0_0 = arith.constant 0 : index
    %0 = vector.load %arg1[%c0, %c0_0] : memref<256x147xbf16, #tpu.memory_space<vmem>>, vector<256x147xbf16>
    %c0_1 = arith.constant 0 : index
    %c0_2 = arith.constant 0 : index
    %1 = vector.load %arg2[%c0_1, %c0_2] : memref<147x64xbf16, #tpu.memory_space<vmem>>, vector<147x64xbf16>
    %cst = arith.constant dense<0.000000e+00> : vector<256x64xf32>
    %2 = tpu.matmul %0, %1, %cst {dimension_numbers = #tpu.dot_dimension_numbers<[1], [0], [0], [1], [0, 0, 1, 1], [], []>} : vector<256x147xbf16>, vector<147x64xbf16>, vector<256x64xf32> -> vector<256x64xf32>
    %c0_3 = arith.constant 0 : index
    %c0_4 = arith.constant 0 : index
    %3 = vector.load %arg3[%c0_3, %c0_4] : memref<1x64xf32, #tpu.memory_space<vmem>>, vector<1x64xf32>
    %4 = vector.broadcast %3 : vector<1x64xf32> to vector<256x64xf32>
    %5 = arith.addf %2, %4 : vector<256x64xf32>
    %cst_5 = arith.constant 0.000000e+00 : f32
    %6 = vector.broadcast %cst_5 : f32 to vector<256x64xf32>
    %7 = arith.maximumf %5, %6 : vector<256x64xf32>
    %8 = arith.truncf %7 : vector<256x64xf32> to vector<256x64xbf16>
    %c0_6 = arith.constant 0 : index
    %c0_7 = arith.constant 0 : index
    %9 = vector.load %arg4[%c0_6, %c0_7] : memref<256x64xbf16, #tpu.memory_space<vmem>>, vector<256x64xbf16>
    tpu.vector_store %arg4[%c0_6, %c0_7], %8 {strides = array<i32>} : memref<256x64xbf16, #tpu.memory_space<vmem>>, vector<256x64xbf16>,
    return
  }
  func.func @transform_0(%arg0: i32) -> (i32, i32) {
    %c0_i32 = arith.constant 0 : i32
    %c0_i32_0 = arith.constant 0 : i32
    return %arg0, %c0_i32 : i32, i32
  }
  func.func @transform_1(%arg0: i32) -> (i32, i32) {
    %c0_i32 = arith.constant 0 : i32
    %c0_i32_0 = arith.constant 0 : i32
    %c0_i32_1 = arith.constant 0 : i32
    return %c0_i32, %c0_i32_0 : i32, i32
  }
  func.func @transform_2(%arg0: i32) -> (i32, i32) {
    %c0_i32 = arith.constant 0 : i32
    %c0_i32_0 = arith.constant 0 : i32
    %c0_i32_1 = arith.constant 0 : i32
    return %c0_i32, %c0_i32_0 : i32, i32
  }
  func.func @transform_3(%arg0: i32) -> (i32, i32) {
    %c0_i32 = arith.constant 0 : i32
    %c0_i32_0 = arith.constant 0 : i32
    return %arg0, %c0_i32 : i32, i32
  }
}

module attributes {stable_mosaic.version = 11 : i64} {
  func.func @_mm_pre_post_kernel(%arg0: i32, %arg1: memref<64x128xbf16, #tpu.memory_space<vmem>>, %arg2: memref<128x128xbf16, #tpu.memory_space<vmem>>, %arg3: memref<1x128xbf16, #tpu.memory_space<vmem>>, %arg4: memref<1x128xf32, #tpu.memory_space<vmem>>, %arg5: memref<64x128xbf16, #tpu.memory_space<vmem>>) attributes {dimension_semantics = [#tpu.dimension_semantics<parallel>], iteration_bounds = array<i64: 2>, scalar_prefetch = 0 : i64, scratch_operands = 0 : i64, tpu.core_type = #tpu.core_type<tc>, window_params = [{transform_indices = @transform_0, window_bounds = array<i64: 64, 128>}, {pipeline_mode = #tpu.pipeline_mode<synchronous>, transform_indices = @transform_1, window_bounds = array<i64: 128, 128>}, {pipeline_mode = #tpu.pipeline_mode<synchronous>, transform_indices = @transform_2, window_bounds = array<i64: 1, 128>}, {pipeline_mode = #tpu.pipeline_mode<synchronous>, transform_indices = @transform_3, window_bounds = array<i64: 1, 128>}, {transform_indices = @transform_4, window_bounds = array<i64: 64, 128>}]} {
    %c0 = arith.constant 0 : index
    %c0_0 = arith.constant 0 : index
    %0 = vector.load %arg1[%c0, %c0_0] : memref<64x128xbf16, #tpu.memory_space<vmem>>, vector<64x128xbf16>
    %c0_1 = arith.constant 0 : index
    %c0_2 = arith.constant 0 : index
    %1 = vector.load %arg3[%c0_1, %c0_2] : memref<1x128xbf16, #tpu.memory_space<vmem>>, vector<1x128xbf16>
    %2 = vector.broadcast %1 : vector<1x128xbf16> to vector<64x128xbf16>
    %3 = arith.addf %0, %2 : vector<64x128xbf16>
    %cst = arith.constant 0.000000e+00 : bf16
    %4 = vector.broadcast %cst : bf16 to vector<64x128xbf16>
    %5 = arith.maximumf %3, %4 : vector<64x128xbf16>
    %c0_3 = arith.constant 0 : index
    %c0_4 = arith.constant 0 : index
    %6 = vector.load %arg2[%c0_3, %c0_4] : memref<128x128xbf16, #tpu.memory_space<vmem>>, vector<128x128xbf16>
    %cst_5 = arith.constant dense<0.000000e+00> : vector<64x128xf32>
    %7 = tpu.matmul %5, %6, %cst_5 {dimension_numbers = #tpu.dot_dimension_numbers<[1], [0], [0], [1], [0, 0, 1, 1], [], []>} : vector<64x128xbf16>, vector<128x128xbf16>, vector<64x128xf32> -> vector<64x128xf32>
    %c0_6 = arith.constant 0 : index
    %c0_7 = arith.constant 0 : index
    %8 = vector.load %arg4[%c0_6, %c0_7] : memref<1x128xf32, #tpu.memory_space<vmem>>, vector<1x128xf32>
    %9 = vector.broadcast %8 : vector<1x128xf32> to vector<64x128xf32>
    %10 = arith.addf %7, %9 : vector<64x128xf32>
    %cst_8 = arith.constant 0.000000e+00 : f32
    %11 = vector.broadcast %cst_8 : f32 to vector<64x128xf32>
    %12 = arith.maximumf %10, %11 : vector<64x128xf32>
    %13 = arith.truncf %12 : vector<64x128xf32> to vector<64x128xbf16>
    %c0_9 = arith.constant 0 : index
    %c0_10 = arith.constant 0 : index
    %14 = vector.load %arg5[%c0_9, %c0_10] : memref<64x128xbf16, #tpu.memory_space<vmem>>, vector<64x128xbf16>
    tpu.vector_store %arg5[%c0_9, %c0_10], %13 {strides = array<i32>} : memref<64x128xbf16, #tpu.memory_space<vmem>>, vector<64x128xbf16>,
    return
  }
  func.func @transform_0(%arg0: i32) -> (i32, i32) {
    %c0_i32 = arith.constant 0 : i32
    %c0_i32_0 = arith.constant 0 : i32
    return %arg0, %c0_i32 : i32, i32
  }
  func.func @transform_1(%arg0: i32) -> (i32, i32) {
    %c0_i32 = arith.constant 0 : i32
    %c0_i32_0 = arith.constant 0 : i32
    %c0_i32_1 = arith.constant 0 : i32
    return %c0_i32, %c0_i32_0 : i32, i32
  }
  func.func @transform_2(%arg0: i32) -> (i32, i32) {
    %c0_i32 = arith.constant 0 : i32
    %c0_i32_0 = arith.constant 0 : i32
    %c0_i32_1 = arith.constant 0 : i32
    return %c0_i32, %c0_i32_0 : i32, i32
  }
  func.func @transform_3(%arg0: i32) -> (i32, i32) {
    %c0_i32 = arith.constant 0 : i32
    %c0_i32_0 = arith.constant 0 : i32
    %c0_i32_1 = arith.constant 0 : i32
    return %c0_i32, %c0_i32_0 : i32, i32
  }
  func.func @transform_4(%arg0: i32) -> (i32, i32) {
    %c0_i32 = arith.constant 0 : i32
    %c0_i32_0 = arith.constant 0 : i32
    return %arg0, %c0_i32 : i32, i32
  }
}

module attributes {stable_mosaic.version = 11 : i64} {
  func.func @kernel(%arg0: i32, %arg1: memref<1x100x128xbf16, #tpu.memory_space<vmem>>, %arg2: memref<128x288xbf16, #tpu.memory_space<vmem>>, %arg3: memref<1x8x8x32xbf16, #tpu.memory_space<vmem>>) attributes {dimension_semantics = [#tpu.dimension_semantics<parallel>], iteration_bounds = array<i64: 2>, scalar_prefetch = 0 : i64, scratch_operands = 0 : i64, tpu.core_type = #tpu.core_type<tc>, window_params = [{transform_indices = @transform_0, window_bounds = array<i64: 1, 100, 128>}, {pipeline_mode = #tpu.pipeline_mode<synchronous>, transform_indices = @transform_1, window_bounds = array<i64: 128, 288>}, {transform_indices = @transform_2, window_bounds = array<i64: 1, 8, 8, 32>}]} {
    %c0 = arith.constant 0 : index
    %c0_0 = arith.constant 0 : index
    %c0_1 = arith.constant 0 : index
    %0 = vector.load %arg1[%c0, %c0_0, %c0_1] : memref<1x100x128xbf16, #tpu.memory_space<vmem>>, vector<1x100x128xbf16>
    %1 = vector.shape_cast %0 : vector<1x100x128xbf16> to vector<100x128xbf16>
    %c0_2 = arith.constant 0 : index
    %c0_3 = arith.constant 0 : index
    %2 = vector.load %arg2[%c0_2, %c0_3] : memref<128x288xbf16, #tpu.memory_space<vmem>>, vector<128x288xbf16>
    %cst = arith.constant dense<0.000000e+00> : vector<100x288xf32>
    %3 = tpu.matmul %1, %2, %cst {dimension_numbers = #tpu.dot_dimension_numbers<[1], [0], [0], [1], [0, 0, 1, 1], [], []>} : vector<100x128xbf16>, vector<128x288xbf16>, vector<100x288xf32> -> vector<100x288xf32>
    %cst_4 = arith.constant 0.000000e+00 : f32
    %4 = vector.broadcast %cst_4 : f32 to vector<78x32xf32>
    %5 = vector.extract_strided_slice %3 {offsets = [0, 0], sizes = [78, 32], strides = [1, 1]} : vector<100x288xf32> to vector<78x32xf32>
    %6 = arith.addf %4, %5 : vector<78x32xf32>
    %7 = vector.extract_strided_slice %3 {offsets = [1, 32], sizes = [78, 32], strides = [1, 1]} : vector<100x288xf32> to vector<78x32xf32>
    %8 = arith.addf %6, %7 : vector<78x32xf32>
    %9 = vector.extract_strided_slice %3 {offsets = [2, 64], sizes = [78, 32], strides = [1, 1]} : vector<100x288xf32> to vector<78x32xf32>
    %10 = arith.addf %8, %9 : vector<78x32xf32>
    %11 = vector.extract_strided_slice %3 {offsets = [10, 96], sizes = [78, 32], strides = [1, 1]} : vector<100x288xf32> to vector<78x32xf32>
    %12 = arith.addf %10, %11 : vector<78x32xf32>
    %13 = vector.extract_strided_slice %3 {offsets = [11, 128], sizes = [78, 32], strides = [1, 1]} : vector<100x288xf32> to vector<78x32xf32>
    %14 = arith.addf %12, %13 : vector<78x32xf32>
    %15 = vector.extract_strided_slice %3 {offsets = [12, 160], sizes = [78, 32], strides = [1, 1]} : vector<100x288xf32> to vector<78x32xf32>
    %16 = arith.addf %14, %15 : vector<78x32xf32>
    %17 = vector.extract_strided_slice %3 {offsets = [20, 192], sizes = [78, 32], strides = [1, 1]} : vector<100x288xf32> to vector<78x32xf32>
    %18 = arith.addf %16, %17 : vector<78x32xf32>
    %19 = vector.extract_strided_slice %3 {offsets = [21, 224], sizes = [78, 32], strides = [1, 1]} : vector<100x288xf32> to vector<78x32xf32>
    %20 = arith.addf %18, %19 : vector<78x32xf32>
    %21 = vector.extract_strided_slice %3 {offsets = [22, 256], sizes = [78, 32], strides = [1, 1]} : vector<100x288xf32> to vector<78x32xf32>
    %22 = arith.addf %20, %21 : vector<78x32xf32>
    %23 = vector.extract_strided_slice %22 {offsets = [0, 0], sizes = [8, 32], strides = [1, 1]} : vector<78x32xf32> to vector<8x32xf32>
    %24 = arith.truncf %23 : vector<8x32xf32> to vector<8x32xbf16>
    %c0_5 = arith.constant 0 : index
    %c0_6 = arith.constant 0 : index
    %c0_7 = arith.constant 0 : index
    %c0_8 = arith.constant 0 : index
    %25 = vector.load %arg3[%c0_5, %c0_6, %c0_7, %c0_8] : memref<1x8x8x32xbf16, #tpu.memory_space<vmem>>, vector<1x1x8x32xbf16>
    %26 = vector.shape_cast %25 : vector<1x1x8x32xbf16> to vector<8x32xbf16>
    %27 = vector.shape_cast %24 : vector<8x32xbf16> to vector<1x1x8x32xbf16>
    tpu.vector_store %arg3[%c0_5, %c0_6, %c0_7, %c0_8], %27 {strides = array<i32>} : memref<1x8x8x32xbf16, #tpu.memory_space<vmem>>, vector<1x1x8x32xbf16>,
    %28 = vector.extract_strided_slice %22 {offsets = [10, 0], sizes = [8, 32], strides = [1, 1]} : vector<78x32xf32> to vector<8x32xf32>
    %29 = arith.truncf %28 : vector<8x32xf32> to vector<8x32xbf16>
    %c0_9 = arith.constant 0 : index
    %c1 = arith.constant 1 : index
    %c0_10 = arith.constant 0 : index
    %c0_11 = arith.constant 0 : index
    %30 = vector.load %arg3[%c0_9, %c1, %c0_10, %c0_11] : memref<1x8x8x32xbf16, #tpu.memory_space<vmem>>, vector<1x1x8x32xbf16>
    %31 = vector.shape_cast %30 : vector<1x1x8x32xbf16> to vector<8x32xbf16>
    %32 = vector.shape_cast %29 : vector<8x32xbf16> to vector<1x1x8x32xbf16>
    tpu.vector_store %arg3[%c0_9, %c1, %c0_10, %c0_11], %32 {strides = array<i32>} : memref<1x8x8x32xbf16, #tpu.memory_space<vmem>>, vector<1x1x8x32xbf16>,
    %33 = vector.extract_strided_slice %22 {offsets = [20, 0], sizes = [8, 32], strides = [1, 1]} : vector<78x32xf32> to vector<8x32xf32>
    %34 = arith.truncf %33 : vector<8x32xf32> to vector<8x32xbf16>
    %c0_12 = arith.constant 0 : index
    %c2 = arith.constant 2 : index
    %c0_13 = arith.constant 0 : index
    %c0_14 = arith.constant 0 : index
    %35 = vector.load %arg3[%c0_12, %c2, %c0_13, %c0_14] : memref<1x8x8x32xbf16, #tpu.memory_space<vmem>>, vector<1x1x8x32xbf16>
    %36 = vector.shape_cast %35 : vector<1x1x8x32xbf16> to vector<8x32xbf16>
    %37 = vector.shape_cast %34 : vector<8x32xbf16> to vector<1x1x8x32xbf16>
    tpu.vector_store %arg3[%c0_12, %c2, %c0_13, %c0_14], %37 {strides = array<i32>} : memref<1x8x8x32xbf16, #tpu.memory_space<vmem>>, vector<1x1x8x32xbf16>,
    %38 = vector.extract_strided_slice %22 {offsets = [30, 0], sizes = [8, 32], strides = [1, 1]} : vector<78x32xf32> to vector<8x32xf32>
    %39 = arith.truncf %38 : vector<8x32xf32> to vector<8x32xbf16>
    %c0_15 = arith.constant 0 : index
    %c3 = arith.constant 3 : index
    %c0_16 = arith.constant 0 : index
    %c0_17 = arith.constant 0 : index
    %40 = vector.load %arg3[%c0_15, %c3, %c0_16, %c0_17] : memref<1x8x8x32xbf16, #tpu.memory_space<vmem>>, vector<1x1x8x32xbf16>
    %41 = vector.shape_cast %40 : vector<1x1x8x32xbf16> to vector<8x32xbf16>
    %42 = vector.shape_cast %39 : vector<8x32xbf16> to vector<1x1x8x32xbf16>
    tpu.vector_store %arg3[%c0_15, %c3, %c0_16, %c0_17], %42 {strides = array<i32>} : memref<1x8x8x32xbf16, #tpu.memory_space<vmem>>, vector<1x1x8x32xbf16>,
    %43 = vector.extract_strided_slice %22 {offsets = [40, 0], sizes = [8, 32], strides = [1, 1]} : vector<78x32xf32> to vector<8x32xf32>
    %44 = arith.truncf %43 : vector<8x32xf32> to vector<8x32xbf16>
    %c0_18 = arith.constant 0 : index
    %c4 = arith.constant 4 : index
    %c0_19 = arith.constant 0 : index
    %c0_20 = arith.constant 0 : index
    %45 = vector.load %arg3[%c0_18, %c4, %c0_19, %c0_20] : memref<1x8x8x32xbf16, #tpu.memory_space<vmem>>, vector<1x1x8x32xbf16>
    %46 = vector.shape_cast %45 : vector<1x1x8x32xbf16> to vector<8x32xbf16>
    %47 = vector.shape_cast %44 : vector<8x32xbf16> to vector<1x1x8x32xbf16>
    tpu.vector_store %arg3[%c0_18, %c4, %c0_19, %c0_20], %47 {strides = array<i32>} : memref<1x8x8x32xbf16, #tpu.memory_space<vmem>>, vector<1x1x8x32xbf16>,
    %48 = vector.extract_strided_slice %22 {offsets = [50, 0], sizes = [8, 32], strides = [1, 1]} : vector<78x32xf32> to vector<8x32xf32>
    %49 = arith.truncf %48 : vector<8x32xf32> to vector<8x32xbf16>
    %c0_21 = arith.constant 0 : index
    %c5 = arith.constant 5 : index
    %c0_22 = arith.constant 0 : index
    %c0_23 = arith.constant 0 : index
    %50 = vector.load %arg3[%c0_21, %c5, %c0_22, %c0_23] : memref<1x8x8x32xbf16, #tpu.memory_space<vmem>>, vector<1x1x8x32xbf16>
    %51 = vector.shape_cast %50 : vector<1x1x8x32xbf16> to vector<8x32xbf16>
    %52 = vector.shape_cast %49 : vector<8x32xbf16> to vector<1x1x8x32xbf16>
    tpu.vector_store %arg3[%c0_21, %c5, %c0_22, %c0_23], %52 {strides = array<i32>} : memref<1x8x8x32xbf16, #tpu.memory_space<vmem>>, vector<1x1x8x32xbf16>,
    %53 = vector.extract_strided_slice %22 {offsets = [60, 0], sizes = [8, 32], strides = [1, 1]} : vector<78x32xf32> to vector<8x32xf32>
    %54 = arith.truncf %53 : vector<8x32xf32> to vector<8x32xbf16>
    %c0_24 = arith.constant 0 : index
    %c6 = arith.constant 6 : index
    %c0_25 = arith.constant 0 : index
    %c0_26 = arith.constant 0 : index
    %55 = vector.load %arg3[%c0_24, %c6, %c0_25, %c0_26] : memref<1x8x8x32xbf16, #tpu.memory_space<vmem>>, vector<1x1x8x32xbf16>
    %56 = vector.shape_cast %55 : vector<1x1x8x32xbf16> to vector<8x32xbf16>
    %57 = vector.shape_cast %54 : vector<8x32xbf16> to vector<1x1x8x32xbf16>
    tpu.vector_store %arg3[%c0_24, %c6, %c0_25, %c0_26], %57 {strides = array<i32>} : memref<1x8x8x32xbf16, #tpu.memory_space<vmem>>, vector<1x1x8x32xbf16>,
    %58 = vector.extract_strided_slice %22 {offsets = [70, 0], sizes = [8, 32], strides = [1, 1]} : vector<78x32xf32> to vector<8x32xf32>
    %59 = arith.truncf %58 : vector<8x32xf32> to vector<8x32xbf16>
    %c0_27 = arith.constant 0 : index
    %c7 = arith.constant 7 : index
    %c0_28 = arith.constant 0 : index
    %c0_29 = arith.constant 0 : index
    %60 = vector.load %arg3[%c0_27, %c7, %c0_28, %c0_29] : memref<1x8x8x32xbf16, #tpu.memory_space<vmem>>, vector<1x1x8x32xbf16>
    %61 = vector.shape_cast %60 : vector<1x1x8x32xbf16> to vector<8x32xbf16>
    %62 = vector.shape_cast %59 : vector<8x32xbf16> to vector<1x1x8x32xbf16>
    tpu.vector_store %arg3[%c0_27, %c7, %c0_28, %c0_29], %62 {strides = array<i32>} : memref<1x8x8x32xbf16, #tpu.memory_space<vmem>>, vector<1x1x8x32xbf16>,
    return
  }
  func.func @transform_0(%arg0: i32) -> (i32, i32, i32) {
    %c0_i32 = arith.constant 0 : i32
    %c0_i32_0 = arith.constant 0 : i32
    %c0_i32_1 = arith.constant 0 : i32
    return %arg0, %c0_i32, %c0_i32_0 : i32, i32, i32
  }
  func.func @transform_1(%arg0: i32) -> (i32, i32) {
    %c0_i32 = arith.constant 0 : i32
    %c0_i32_0 = arith.constant 0 : i32
    %c0_i32_1 = arith.constant 0 : i32
    return %c0_i32, %c0_i32_0 : i32, i32
  }
  func.func @transform_2(%arg0: i32) -> (i32, i32, i32, i32) {
    %c0_i32 = arith.constant 0 : i32
    %c0_i32_0 = arith.constant 0 : i32
    %c0_i32_1 = arith.constant 0 : i32
    %c0_i32_2 = arith.constant 0 : i32
    return %arg0, %c0_i32, %c0_i32_0, %c0_i32_1 : i32, i32, i32, i32
  }
}

module attributes {stable_mosaic.version = 11 : i64} {
  func.func @_mm_pre_kernel(%arg0: i32, %arg1: memref<64x128xbf16, #tpu.memory_space<vmem>>, %arg2: memref<128x64xbf16, #tpu.memory_space<vmem>>, %arg3: memref<1x128xbf16, #tpu.memory_space<vmem>>, %arg4: memref<64x64xbf16, #tpu.memory_space<vmem>>) attributes {dimension_semantics = [#tpu.dimension_semantics<parallel>], iteration_bounds = array<i64: 2>, scalar_prefetch = 0 : i64, scratch_operands = 0 : i64, tpu.core_type = #tpu.core_type<tc>, window_params = [{transform_indices = @transform_0, window_bounds = array<i64: 64, 128>}, {pipeline_mode = #tpu.pipeline_mode<synchronous>, transform_indices = @transform_1, window_bounds = array<i64: 128, 64>}, {pipeline_mode = #tpu.pipeline_mode<synchronous>, transform_indices = @transform_2, window_bounds = array<i64: 1, 128>}, {transform_indices = @transform_3, window_bounds = array<i64: 64, 64>}]} {
    %c0 = arith.constant 0 : index
    %c0_0 = arith.constant 0 : index
    %0 = vector.load %arg1[%c0, %c0_0] : memref<64x128xbf16, #tpu.memory_space<vmem>>, vector<64x128xbf16>
    %c0_1 = arith.constant 0 : index
    %c0_2 = arith.constant 0 : index
    %1 = vector.load %arg3[%c0_1, %c0_2] : memref<1x128xbf16, #tpu.memory_space<vmem>>, vector<1x128xbf16>
    %2 = vector.broadcast %1 : vector<1x128xbf16> to vector<64x128xbf16>
    %3 = arith.addf %0, %2 : vector<64x128xbf16>
    %cst = arith.constant 0.000000e+00 : bf16
    %4 = vector.broadcast %cst : bf16 to vector<64x128xbf16>
    %5 = arith.maximumf %3, %4 : vector<64x128xbf16>
    %c0_3 = arith.constant 0 : index
    %c0_4 = arith.constant 0 : index
    %6 = vector.load %arg2[%c0_3, %c0_4] : memref<128x64xbf16, #tpu.memory_space<vmem>>, vector<128x64xbf16>
    %cst_5 = arith.constant dense<0.000000e+00> : vector<64x64xf32>
    %7 = tpu.matmul %5, %6, %cst_5 {dimension_numbers = #tpu.dot_dimension_numbers<[1], [0], [0], [1], [0, 0, 1, 1], [], []>} : vector<64x128xbf16>, vector<128x64xbf16>, vector<64x64xf32> -> vector<64x64xf32>
    %8 = arith.truncf %7 : vector<64x64xf32> to vector<64x64xbf16>
    %c0_6 = arith.constant 0 : index
    %c0_7 = arith.constant 0 : index
    %9 = vector.load %arg4[%c0_6, %c0_7] : memref<64x64xbf16, #tpu.memory_space<vmem>>, vector<64x64xbf16>
    tpu.vector_store %arg4[%c0_6, %c0_7], %8 {strides = array<i32>} : memref<64x64xbf16, #tpu.memory_space<vmem>>, vector<64x64xbf16>,
    return
  }
  func.func @transform_0(%arg0: i32) -> (i32, i32) {
    %c0_i32 = arith.constant 0 : i32
    %c0_i32_0 = arith.constant 0 : i32
    return %arg0, %c0_i32 : i32, i32
  }
  func.func @transform_1(%arg0: i32) -> (i32, i32) {
    %c0_i32 = arith.constant 0 : i32
    %c0_i32_0 = arith.constant 0 : i32
    %c0_i32_1 = arith.constant 0 : i32
    return %c0_i32, %c0_i32_0 : i32, i32
  }
  func.func @transform_2(%arg0: i32) -> (i32, i32) {
    %c0_i32 = arith.constant 0 : i32
    %c0_i32_0 = arith.constant 0 : i32
    %c0_i32_1 = arith.constant 0 : i32
    return %c0_i32, %c0_i32_0 : i32, i32
  }
  func.func @transform_3(%arg0: i32) -> (i32, i32) {
    %c0_i32 = arith.constant 0 : i32
    %c0_i32_0 = arith.constant 0 : i32
    return %arg0, %c0_i32 : i32, i32
  }
}

module attributes {stable_mosaic.version = 11 : i64} {
  func.func @_mm_pre_post_kernel(%arg0: i32, %arg1: memref<16x128xbf16, #tpu.memory_space<vmem>>, %arg2: memref<128x128xbf16, #tpu.memory_space<vmem>>, %arg3: memref<1x128xbf16, #tpu.memory_space<vmem>>, %arg4: memref<1x128xf32, #tpu.memory_space<vmem>>, %arg5: memref<16x128xbf16, #tpu.memory_space<vmem>>) attributes {dimension_semantics = [#tpu.dimension_semantics<parallel>], iteration_bounds = array<i64: 2>, scalar_prefetch = 0 : i64, scratch_operands = 0 : i64, tpu.core_type = #tpu.core_type<tc>, window_params = [{transform_indices = @transform_0, window_bounds = array<i64: 16, 128>}, {pipeline_mode = #tpu.pipeline_mode<synchronous>, transform_indices = @transform_1, window_bounds = array<i64: 128, 128>}, {pipeline_mode = #tpu.pipeline_mode<synchronous>, transform_indices = @transform_2, window_bounds = array<i64: 1, 128>}, {pipeline_mode = #tpu.pipeline_mode<synchronous>, transform_indices = @transform_3, window_bounds = array<i64: 1, 128>}, {transform_indices = @transform_4, window_bounds = array<i64: 16, 128>}]} {
    %c0 = arith.constant 0 : index
    %c0_0 = arith.constant 0 : index
    %0 = vector.load %arg1[%c0, %c0_0] : memref<16x128xbf16, #tpu.memory_space<vmem>>, vector<16x128xbf16>
    %c0_1 = arith.constant 0 : index
    %c0_2 = arith.constant 0 : index
    %1 = vector.load %arg3[%c0_1, %c0_2] : memref<1x128xbf16, #tpu.memory_space<vmem>>, vector<1x128xbf16>
    %2 = vector.broadcast %1 : vector<1x128xbf16> to vector<16x128xbf16>
    %3 = arith.addf %0, %2 : vector<16x128xbf16>
    %cst = arith.constant 0.000000e+00 : bf16
    %4 = vector.broadcast %cst : bf16 to vector<16x128xbf16>
    %5 = arith.maximumf %3, %4 : vector<16x128xbf16>
    %c0_3 = arith.constant 0 : index
    %c0_4 = arith.constant 0 : index
    %6 = vector.load %arg2[%c0_3, %c0_4] : memref<128x128xbf16, #tpu.memory_space<vmem>>, vector<128x128xbf16>
    %cst_5 = arith.constant dense<0.000000e+00> : vector<16x128xf32>
    %7 = tpu.matmul %5, %6, %cst_5 {dimension_numbers = #tpu.dot_dimension_numbers<[1], [0], [0], [1], [0, 0, 1, 1], [], []>} : vector<16x128xbf16>, vector<128x128xbf16>, vector<16x128xf32> -> vector<16x128xf32>
    %c0_6 = arith.constant 0 : index
    %c0_7 = arith.constant 0 : index
    %8 = vector.load %arg4[%c0_6, %c0_7] : memref<1x128xf32, #tpu.memory_space<vmem>>, vector<1x128xf32>
    %9 = vector.broadcast %8 : vector<1x128xf32> to vector<16x128xf32>
    %10 = arith.addf %7, %9 : vector<16x128xf32>
    %cst_8 = arith.constant 0.000000e+00 : f32
    %11 = vector.broadcast %cst_8 : f32 to vector<16x128xf32>
    %12 = arith.maximumf %10, %11 : vector<16x128xf32>
    %13 = arith.truncf %12 : vector<16x128xf32> to vector<16x128xbf16>
    %c0_9 = arith.constant 0 : index
    %c0_10 = arith.constant 0 : index
    %14 = vector.load %arg5[%c0_9, %c0_10] : memref<16x128xbf16, #tpu.memory_space<vmem>>, vector<16x128xbf16>
    tpu.vector_store %arg5[%c0_9, %c0_10], %13 {strides = array<i32>} : memref<16x128xbf16, #tpu.memory_space<vmem>>, vector<16x128xbf16>,
    return
  }
  func.func @transform_0(%arg0: i32) -> (i32, i32) {
    %c0_i32 = arith.constant 0 : i32
    %c0_i32_0 = arith.constant 0 : i32
    return %arg0, %c0_i32 : i32, i32
  }
  func.func @transform_1(%arg0: i32) -> (i32, i32) {
    %c0_i32 = arith.constant 0 : i32
    %c0_i32_0 = arith.constant 0 : i32
    %c0_i32_1 = arith.constant 0 : i32
    return %c0_i32, %c0_i32_0 : i32, i32
  }
  func.func @transform_2(%arg0: i32) -> (i32, i32) {
    %c0_i32 = arith.constant 0 : i32
    %c0_i32_0 = arith.constant 0 : i32
    %c0_i32_1 = arith.constant 0 : i32
    return %c0_i32, %c0_i32_0 : i32, i32
  }
  func.func @transform_3(%arg0: i32) -> (i32, i32) {
    %c0_i32 = arith.constant 0 : i32
    %c0_i32_0 = arith.constant 0 : i32
    %c0_i32_1 = arith.constant 0 : i32
    return %c0_i32, %c0_i32_0 : i32, i32
  }
  func.func @transform_4(%arg0: i32) -> (i32, i32) {
    %c0_i32 = arith.constant 0 : i32
    %c0_i32_0 = arith.constant 0 : i32
    return %arg0, %c0_i32 : i32, i32
  }
}

module attributes {stable_mosaic.version = 11 : i64} {
  func.func @kernel(%arg0: i32, %arg1: memref<1x36x128xbf16, #tpu.memory_space<vmem>>, %arg2: memref<128x288xbf16, #tpu.memory_space<vmem>>, %arg3: memref<1x4x4x32xbf16, #tpu.memory_space<vmem>>) attributes {dimension_semantics = [#tpu.dimension_semantics<parallel>], iteration_bounds = array<i64: 2>, scalar_prefetch = 0 : i64, scratch_operands = 0 : i64, tpu.core_type = #tpu.core_type<tc>, window_params = [{transform_indices = @transform_0, window_bounds = array<i64: 1, 36, 128>}, {pipeline_mode = #tpu.pipeline_mode<synchronous>, transform_indices = @transform_1, window_bounds = array<i64: 128, 288>}, {transform_indices = @transform_2, window_bounds = array<i64: 1, 4, 4, 32>}]} {
    %c0 = arith.constant 0 : index
    %c0_0 = arith.constant 0 : index
    %c0_1 = arith.constant 0 : index
    %0 = vector.load %arg1[%c0, %c0_0, %c0_1] : memref<1x36x128xbf16, #tpu.memory_space<vmem>>, vector<1x36x128xbf16>
    %1 = vector.shape_cast %0 : vector<1x36x128xbf16> to vector<36x128xbf16>
    %c0_2 = arith.constant 0 : index
    %c0_3 = arith.constant 0 : index
    %2 = vector.load %arg2[%c0_2, %c0_3] : memref<128x288xbf16, #tpu.memory_space<vmem>>, vector<128x288xbf16>
    %cst = arith.constant dense<0.000000e+00> : vector<36x288xf32>
    %3 = tpu.matmul %1, %2, %cst {dimension_numbers = #tpu.dot_dimension_numbers<[1], [0], [0], [1], [0, 0, 1, 1], [], []>} : vector<36x128xbf16>, vector<128x288xbf16>, vector<36x288xf32> -> vector<36x288xf32>
    %cst_4 = arith.constant 0.000000e+00 : f32
    %4 = vector.broadcast %cst_4 : f32 to vector<22x32xf32>
    %5 = vector.extract_strided_slice %3 {offsets = [0, 0], sizes = [22, 32], strides = [1, 1]} : vector<36x288xf32> to vector<22x32xf32>
    %6 = arith.addf %4, %5 : vector<22x32xf32>
    %7 = vector.extract_strided_slice %3 {offsets = [1, 32], sizes = [22, 32], strides = [1, 1]} : vector<36x288xf32> to vector<22x32xf32>
    %8 = arith.addf %6, %7 : vector<22x32xf32>
    %9 = vector.extract_strided_slice %3 {offsets = [2, 64], sizes = [22, 32], strides = [1, 1]} : vector<36x288xf32> to vector<22x32xf32>
    %10 = arith.addf %8, %9 : vector<22x32xf32>
    %11 = vector.extract_strided_slice %3 {offsets = [6, 96], sizes = [22, 32], strides = [1, 1]} : vector<36x288xf32> to vector<22x32xf32>
    %12 = arith.addf %10, %11 : vector<22x32xf32>
    %13 = vector.extract_strided_slice %3 {offsets = [7, 128], sizes = [22, 32], strides = [1, 1]} : vector<36x288xf32> to vector<22x32xf32>
    %14 = arith.addf %12, %13 : vector<22x32xf32>
    %15 = vector.extract_strided_slice %3 {offsets = [8, 160], sizes = [22, 32], strides = [1, 1]} : vector<36x288xf32> to vector<22x32xf32>
    %16 = arith.addf %14, %15 : vector<22x32xf32>
    %17 = vector.extract_strided_slice %3 {offsets = [12, 192], sizes = [22, 32], strides = [1, 1]} : vector<36x288xf32> to vector<22x32xf32>
    %18 = arith.addf %16, %17 : vector<22x32xf32>
    %19 = vector.extract_strided_slice %3 {offsets = [13, 224], sizes = [22, 32], strides = [1, 1]} : vector<36x288xf32> to vector<22x32xf32>
    %20 = arith.addf %18, %19 : vector<22x32xf32>
    %21 = vector.extract_strided_slice %3 {offsets = [14, 256], sizes = [22, 32], strides = [1, 1]} : vector<36x288xf32> to vector<22x32xf32>
    %22 = arith.addf %20, %21 : vector<22x32xf32>
    %23 = vector.extract_strided_slice %22 {offsets = [0, 0], sizes = [4, 32], strides = [1, 1]} : vector<22x32xf32> to vector<4x32xf32>
    %24 = arith.truncf %23 : vector<4x32xf32> to vector<4x32xbf16>
    %c0_5 = arith.constant 0 : index
    %c0_6 = arith.constant 0 : index
    %c0_7 = arith.constant 0 : index
    %c0_8 = arith.constant 0 : index
    %25 = vector.load %arg3[%c0_5, %c0_6, %c0_7, %c0_8] : memref<1x4x4x32xbf16, #tpu.memory_space<vmem>>, vector<1x1x4x32xbf16>
    %26 = vector.shape_cast %25 : vector<1x1x4x32xbf16> to vector<4x32xbf16>
    %27 = vector.shape_cast %24 : vector<4x32xbf16> to vector<1x1x4x32xbf16>
    tpu.vector_store %arg3[%c0_5, %c0_6, %c0_7, %c0_8], %27 {strides = array<i32>} : memref<1x4x4x32xbf16, #tpu.memory_space<vmem>>, vector<1x1x4x32xbf16>,
    %28 = vector.extract_strided_slice %22 {offsets = [6, 0], sizes = [4, 32], strides = [1, 1]} : vector<22x32xf32> to vector<4x32xf32>
    %29 = arith.truncf %28 : vector<4x32xf32> to vector<4x32xbf16>
    %c0_9 = arith.constant 0 : index
    %c1 = arith.constant 1 : index
    %c0_10 = arith.constant 0 : index
    %c0_11 = arith.constant 0 : index
    %30 = vector.load %arg3[%c0_9, %c1, %c0_10, %c0_11] : memref<1x4x4x32xbf16, #tpu.memory_space<vmem>>, vector<1x1x4x32xbf16>
    %31 = vector.shape_cast %30 : vector<1x1x4x32xbf16> to vector<4x32xbf16>
    %32 = vector.shape_cast %29 : vector<4x32xbf16> to vector<1x1x4x32xbf16>
    tpu.vector_store %arg3[%c0_9, %c1, %c0_10, %c0_11], %32 {strides = array<i32>} : memref<1x4x4x32xbf16, #tpu.memory_space<vmem>>, vector<1x1x4x32xbf16>,
    %33 = vector.extract_strided_slice %22 {offsets = [12, 0], sizes = [4, 32], strides = [1, 1]} : vector<22x32xf32> to vector<4x32xf32>
    %34 = arith.truncf %33 : vector<4x32xf32> to vector<4x32xbf16>
    %c0_12 = arith.constant 0 : index
    %c2 = arith.constant 2 : index
    %c0_13 = arith.constant 0 : index
    %c0_14 = arith.constant 0 : index
    %35 = vector.load %arg3[%c0_12, %c2, %c0_13, %c0_14] : memref<1x4x4x32xbf16, #tpu.memory_space<vmem>>, vector<1x1x4x32xbf16>
    %36 = vector.shape_cast %35 : vector<1x1x4x32xbf16> to vector<4x32xbf16>
    %37 = vector.shape_cast %34 : vector<4x32xbf16> to vector<1x1x4x32xbf16>
    tpu.vector_store %arg3[%c0_12, %c2, %c0_13, %c0_14], %37 {strides = array<i32>} : memref<1x4x4x32xbf16, #tpu.memory_space<vmem>>, vector<1x1x4x32xbf16>,
    %38 = vector.extract_strided_slice %22 {offsets = [18, 0], sizes = [4, 32], strides = [1, 1]} : vector<22x32xf32> to vector<4x32xf32>
    %39 = arith.truncf %38 : vector<4x32xf32> to vector<4x32xbf16>
    %c0_15 = arith.constant 0 : index
    %c3 = arith.constant 3 : index
    %c0_16 = arith.constant 0 : index
    %c0_17 = arith.constant 0 : index
    %40 = vector.load %arg3[%c0_15, %c3, %c0_16, %c0_17] : memref<1x4x4x32xbf16, #tpu.memory_space<vmem>>, vector<1x1x4x32xbf16>
    %41 = vector.shape_cast %40 : vector<1x1x4x32xbf16> to vector<4x32xbf16>
    %42 = vector.shape_cast %39 : vector<4x32xbf16> to vector<1x1x4x32xbf16>
    tpu.vector_store %arg3[%c0_15, %c3, %c0_16, %c0_17], %42 {strides = array<i32>} : memref<1x4x4x32xbf16, #tpu.memory_space<vmem>>, vector<1x1x4x32xbf16>,
    return
  }
  func.func @transform_0(%arg0: i32) -> (i32, i32, i32) {
    %c0_i32 = arith.constant 0 : i32
    %c0_i32_0 = arith.constant 0 : i32
    %c0_i32_1 = arith.constant 0 : i32
    return %arg0, %c0_i32, %c0_i32_0 : i32, i32, i32
  }
  func.func @transform_1(%arg0: i32) -> (i32, i32) {
    %c0_i32 = arith.constant 0 : i32
    %c0_i32_0 = arith.constant 0 : i32
    %c0_i32_1 = arith.constant 0 : i32
    return %c0_i32, %c0_i32_0 : i32, i32
  }
  func.func @transform_2(%arg0: i32) -> (i32, i32, i32, i32) {
    %c0_i32 = arith.constant 0 : i32
    %c0_i32_0 = arith.constant 0 : i32
    %c0_i32_1 = arith.constant 0 : i32
    %c0_i32_2 = arith.constant 0 : i32
    return %arg0, %c0_i32, %c0_i32_0, %c0_i32_1 : i32, i32, i32, i32
  }
}

module attributes {stable_mosaic.version = 11 : i64} {
  func.func @_gap_kernel(%arg0: i32, %arg1: memref<1x16x128xbf16, #tpu.memory_space<vmem>>, %arg2: memref<1x128xf32, #tpu.memory_space<vmem>>, %arg3: memref<1x1x128xf32, #tpu.memory_space<vmem>>) attributes {dimension_semantics = [#tpu.dimension_semantics<parallel>], iteration_bounds = array<i64: 2>, scalar_prefetch = 0 : i64, scratch_operands = 0 : i64, tpu.core_type = #tpu.core_type<tc>, window_params = [{transform_indices = @transform_0, window_bounds = array<i64: 1, 16, 128>}, {pipeline_mode = #tpu.pipeline_mode<synchronous>, transform_indices = @transform_1, window_bounds = array<i64: 1, 128>}, {transform_indices = @transform_2, window_bounds = array<i64: 1, 1, 128>}]} {
    %c0 = arith.constant 0 : index
    %c0_0 = arith.constant 0 : index
    %c0_1 = arith.constant 0 : index
    %0 = vector.load %arg1[%c0, %c0_0, %c0_1] : memref<1x16x128xbf16, #tpu.memory_space<vmem>>, vector<1x16x128xbf16>
    %1 = vector.shape_cast %0 : vector<1x16x128xbf16> to vector<16x128xbf16>
    %2 = arith.extf %1 : vector<16x128xbf16> to vector<16x128xf32>
    %c0_2 = arith.constant 0 : index
    %c0_3 = arith.constant 0 : index
    %3 = vector.load %arg2[%c0_2, %c0_3] : memref<1x128xf32, #tpu.memory_space<vmem>>, vector<1x128xf32>
    %4 = vector.broadcast %3 : vector<1x128xf32> to vector<16x128xf32>
    %5 = arith.addf %2, %4 : vector<16x128xf32>
    %cst = arith.constant 0.000000e+00 : f32
    %6 = vector.broadcast %cst : f32 to vector<16x128xf32>
    %7 = arith.maximumf %5, %6 : vector<16x128xf32>
    %cst_4 = arith.constant dense<0.000000e+00> : vector<128xf32>
    %8 = vector.multi_reduction <add>, %7, %cst_4 [0] : vector<16x128xf32> to vector<128xf32>
    %9 = vector.shape_cast %8 : vector<128xf32> to vector<1x128xf32>
    %cst_5 = arith.constant 1.600000e+01 : f32
    %10 = vector.broadcast %cst_5 : f32 to vector<1x128xf32>
    %11 = arith.divf %9, %10 : vector<1x128xf32>
    %c0_6 = arith.constant 0 : index
    %c0_7 = arith.constant 0 : index
    %c0_8 = arith.constant 0 : index
    %12 = vector.load %arg3[%c0_6, %c0_7, %c0_8] : memref<1x1x128xf32, #tpu.memory_space<vmem>>, vector<1x1x128xf32>
    %13 = vector.shape_cast %12 : vector<1x1x128xf32> to vector<1x128xf32>
    %14 = vector.shape_cast %11 : vector<1x128xf32> to vector<1x1x128xf32>
    tpu.vector_store %arg3[%c0_6, %c0_7, %c0_8], %14 {strides = array<i32>} : memref<1x1x128xf32, #tpu.memory_space<vmem>>, vector<1x1x128xf32>,
    return
  }
  func.func @transform_0(%arg0: i32) -> (i32, i32, i32) {
    %c0_i32 = arith.constant 0 : i32
    %c0_i32_0 = arith.constant 0 : i32
    %c0_i32_1 = arith.constant 0 : i32
    return %arg0, %c0_i32, %c0_i32_0 : i32, i32, i32
  }
  func.func @transform_1(%arg0: i32) -> (i32, i32) {
    %c0_i32 = arith.constant 0 : i32
    %c0_i32_0 = arith.constant 0 : i32
    %c0_i32_1 = arith.constant 0 : i32
    return %c0_i32, %c0_i32_0 : i32, i32
  }
  func.func @transform_2(%arg0: i32) -> (i32, i32, i32) {
    %c0_i32 = arith.constant 0 : i32
    %c0_i32_0 = arith.constant 0 : i32
    %c0_i32_1 = arith.constant 0 : i32
    return %arg0, %c0_i32, %c0_i32_0 : i32, i32, i32
  }
}

</mosaic_0001>

<llo_original>
// kernel: densenet_forward.12
$region0: #{densenet_forward.12}
  #allocation0 [shape = 'u32[]', space=smem, size = 0x4, offset = 0x4, fixed_abs, tag = 'smem constant byte address 0x4 - core index']
  #allocation1 [shape = 'u32[72,128]{1,0:T(1,128)}', space=vmem, size = 0x9000, scoped, tag = 'internal scratch']
  %s0 = inlined_call_operand.vmem [shape: bf16[128,128], index: 0, kind: input, shape index: {}]
  %s1 = inlined_call_operand.vmem [shape: bf16[128,128], index: 1, kind: input, shape index: {}]
  %s2 = inlined_call_operand.vmem [shape: bf16[1,128], index: 2, kind: input, shape index: {}]
  %s3 = inlined_call_operand.vmem [shape: f32[1,128], index: 3, kind: input, shape index: {}]
  %s4 = inlined_call_operand.vmem [shape: bf16[128,128], index: 4, kind: output, shape index: {}]
  %s5 = sld [smem:[#allocation0]]
  $region49: #{densenet_forward.12} parent=0
    _
  %s7 = ssub.s32 1, %s5
  %s8 = scalar_select 0, %s7, %s5
  loop: start=0, step=1, limit=4
  $region2: #{densenet_forward.12} parent=0 // loop_pre_header
    _
  $region3: #{densenet_forward.12} parent=0 // loop_header
    %s10 = sphi 0, %s14
    %p11 = scmp.ge.s32.totalorder %s10, 4
    %s20 = sphi 0, %s22
    %s23 = sphi 0, %s20
    %s24 = sphi 0, %s23
    %s40 = sphi 0, %s24
    %s44 = sphi 0, %s44
    %s46 = sphi 0, %s44
    %s47 = sphi 0, %s46
    %s61 = sphi 0, %s47
    %s65 = sphi 0, %s65
    %s67 = sphi 0, %s65
    %s68 = sphi 0, %s67
    %s82 = sphi 0, %s68
    %s86 = sphi 0, %s86
    %s88 = sphi 0, %s86
    %s89 = sphi 0, %s88
    %s103 = sphi 0, %s89
    %s109 = sphi 0, %s111
    %s112 = sphi 0, %s109
    %s113 = sphi 0, %s112
    %s129 = sphi 0, %s113
  $region4: #{densenet_forward.12} parent=0 // loop_header_branch
    %13 = sbr.rel (%p11) target = $region8
  $region5: #{densenet_forward.12} parent=0 // loop_body
    %s15 = ssub.s32 %s10, 1
    %s16 = ssub.s32 %s10, 2
    %s17 = sadd.s32 %s10, 1
    %s18 = ssub.s32 %s10, %s17
    %p19 = scmp.eq.s32.totalorder %s18, 0
    %s21 = sadd.s32 %s20, 1
    %s22 = scalar_select %p19, %s20, %s21
    %p25 = pneg %p19
    %p26 = scmp.eq.s32.totalorder %s10, 1
    %p27 = por %p25, %p26
    %p28 = scmp.ne.s32.totalorder %s20, %s23
    %p29 = scmp.eq.s32.totalorder %s10, 0
    %p30 = por %p28, %p29
    %p31 = scmp.ne.s32.totalorder %s20, %s23
    %p32 = scmp.eq.s32.totalorder %s15, 1
    %p33 = por %p31, %p32
    %p34 = scmp.ne.s32.totalorder %s23, %s24
    %p35 = scmp.eq.s32.totalorder %s15, 0
    %p36 = por %p34, %p35
    %p37 = scmp.ne.s32.totalorder %s23, %s24
    %p38 = scmp.eq.s32.totalorder %s16, 1
    %p39 = por %p37, %p38
    %p41 = scmp.ne.s32.totalorder %s24, %s40
    %p42 = scmp.eq.s32.totalorder %s16, 0
    %p43 = por %p41, %p42
    %s45 = sadd.s32 %s44, 1
    %p48 = scmp.eq.s32.totalorder %s10, 1
    %p49 = scmp.ne.s32.totalorder %s44, %s46
    %p50 = scmp.eq.s32.totalorder %s10, 0
    %p51 = por %p49, %p50
    %p52 = scmp.ne.s32.totalorder %s44, %s46
    %p53 = scmp.eq.s32.totalorder %s15, 1
    %p54 = por %p52, %p53
    %p55 = scmp.ne.s32.totalorder %s46, %s47
    %p56 = scmp.eq.s32.totalorder %s15, 0
    %p57 = por %p55, %p56
    %p58 = scmp.ne.s32.totalorder %s46, %s47
    %p59 = scmp.eq.s32.totalorder %s16, 1
    %p60 = por %p58, %p59
    %p62 = scmp.ne.s32.totalorder %s47, %s61
    %p63 = scmp.eq.s32.totalorder %s16, 0
    %p64 = por %p62, %p63
    %s66 = sadd.s32 %s65, 1
    %p69 = scmp.eq.s32.totalorder %s10, 1
    %p70 = scmp.ne.s32.totalorder %s65, %s67
    %p71 = scmp.eq.s32.totalorder %s10, 0
    %p72 = por %p70, %p71
    %p73 = scmp.ne.s32.totalorder %s65, %s67
    %p74 = scmp.eq.s32.totalorder %s15, 1
    %p75 = por %p73, %p74
    %p76 = scmp.ne.s32.totalorder %s67, %s68
    %p77 = scmp.eq.s32.totalorder %s15, 0
    %p78 = por %p76, %p77
    %p79 = scmp.ne.s32.totalorder %s67, %s68
    %p80 = scmp.eq.s32.totalorder %s16, 1
    %p81 = por %p79, %p80
    %p83 = scmp.ne.s32.totalorder %s68, %s82
    %p84 = scmp.eq.s32.totalorder %s16, 0
    %p85 = por %p83, %p84
    %s87 = sadd.s32 %s86, 1
    %p90 = scmp.eq.s32.totalorder %s10, 1
    %p91 = scmp.ne.s32.totalorder %s86, %s88
    %p92 = scmp.eq.s32.totalorder %s10, 0
    %p93 = por %p91, %p92
    %p94 = scmp.ne.s32.totalorder %s86, %s88
    %p95 = scmp.eq.s32.totalorder %s15, 1
    %p96 = por %p94, %p95
    %p97 = scmp.ne.s32.totalorder %s88, %s89
    %p98 = scmp.eq.s32.totalorder %s15, 0
    %p99 = por %p97, %p98
    %p100 = scmp.ne.s32.totalorder %s88, %s89
    %p101 = scmp.eq.s32.totalorder %s16, 1
    %p102 = por %p100, %p101
    %p104 = scmp.ne.s32.totalorder %s89, %s103
    %p105 = scmp.eq.s32.totalorder %s16, 0
    %p106 = por %p104, %p105
    %s107 = ssub.s32 %s10, %s17
    %p108 = scmp.eq.s32.totalorder %s107, 0
    %s110 = sadd.s32 %s109, 1
    %s111 = scalar_select %p108, %s109, %s110
    %p114 = pneg %p108
    %p115 = scmp.eq.s32.totalorder %s10, 1
    %p116 = por %p114, %p115
    %p117 = scmp.ne.s32.totalorder %s109, %s112
    %p118 = scmp.eq.s32.totalorder %s10, 0
    %p119 = por %p117, %p118
    %p120 = scmp.ne.s32.totalorder %s109, %s112
    %p121 = scmp.eq.s32.totalorder %s15, 1
    %p122 = por %p120, %p121
    %p123 = scmp.ne.s32.totalorder %s112, %s113
    %p124 = scmp.eq.s32.totalorder %s15, 0
    %p125 = por %p123, %p124
    %p126 = scmp.ne.s32.totalorder %s112, %s113
    %p127 = scmp.eq.s32.totalorder %s16, 1
    %p128 = por %p126, %p127
    %p130 = scmp.ne.s32.totalorder %s113, %s129
    %p131 = scmp.eq.s32.totalorder %s16, 0
    %p132 = por %p130, %p131
    %p133 = scmp.le.s32.totalorder 1, %s10
    %p134 = scmp.lt.s32.totalorder %s10, 3
    %p135 = pnand %p133, %p134
    %p136 = pneg %p135
    // Predicated region
    $region9: #{densenet_forward.12} parent=5 // pred_check
      _
    $region10: #{densenet_forward.12} parent=5 // pred_check_branch
      %138 = sbr.rel (%p135) target = $region12
    $region11: #{densenet_forward.12} parent=5 // pred_region
      %s139 = ssub.s32 %s10, 1
      // Predicated region
      $region13: #{densenet_forward.12} parent=11 // pred_check
        %p140 = pneg %p57
      $region14: #{densenet_forward.12} parent=11 // pred_check_branch
        %142 = sbr.rel (%p140) target = $region16
      $region15: #{densenet_forward.12} parent=11 // pred_region
        _
      $region16: #{densenet_forward.12} parent=11 // pred_fallthru
        _
      // Predicated region
      $region17: #{densenet_forward.12} parent=11 // pred_check
        %p143 = pneg %p78
      $region18: #{densenet_forward.12} parent=11 // pred_check_branch
        %145 = sbr.rel (%p143) target = $region20
      $region19: #{densenet_forward.12} parent=11 // pred_region
        _
      $region20: #{densenet_forward.12} parent=11 // pred_fallthru
        _
      // Predicated region
      $region21: #{densenet_forward.12} parent=11 // pred_check
        %p146 = pneg %p99
      $region22: #{densenet_forward.12} parent=11 // pred_check_branch
        %148 = sbr.rel (%p146) target = $region24
      $region23: #{densenet_forward.12} parent=11 // pred_region
        _
      $region24: #{densenet_forward.12} parent=11 // pred_fallthru
        _
    $region12: #{densenet_forward.12} parent=5 // pred_fallthru
      _
    %p149 = scmp.lt.s32.totalorder %s10, 2
    // Predicated region
    $region25: #{densenet_forward.12} parent=5 // pred_check
      %p150 = pneg %p149
    $region26: #{densenet_forward.12} parent=5 // pred_check_branch
      %152 = sbr.rel (%p150) target = $region28
    $region27: #{densenet_forward.12} parent=5 // pred_region
      // Predicated region
      $region29: #{densenet_forward.12} parent=27 // pred_check
        %p153 = pneg %p30
      $region30: #{densenet_forward.12} parent=27 // pred_check_branch
        %155 = sbr.rel (%p153) target = $region32
      $region31: #{densenet_forward.12} parent=27 // pred_region
        %s156 = smul.u32 8, %s10
        %p157 = scmp.lt.s32.totalorder %s156, 15
        %s158 = scalar_select %p157, %s156, 15
        %s159 = smul.addr %s158, 4
        %s160 = scalar_lea.vmem %s0, %s159
        %s161 = smul.u32 8, %s10
      $region32: #{densenet_forward.12} parent=27 // pred_fallthru
        _
    $region28: #{densenet_forward.12} parent=5 // pred_fallthru
      _
    %p162 = scmp.le.s32.totalorder 1, %s10
    %p163 = scmp.lt.s32.totalorder %s10, 3
    %p164 = pnand %p162, %p163
    %p165 = pneg %p164
    // Predicated region
    $region33: #{densenet_forward.12} parent=5 // pred_check
      _
    $region34: #{densenet_forward.12} parent=5 // pred_check_branch
      %167 = sbr.rel (%p164) target = $region36
    $region35: #{densenet_forward.12} parent=5 // pred_region
      %s168 = ssub.s32 %s10, 1
      %s169 = smul.u32 8, %s15
      %p170 = scmp.lt.s32.totalorder %s169, 15
      %s171 = scalar_select %p170, %s169, 15
      %s172 = smul.addr %s171, 4
      %s173 = scalar_lea.vmem %s0, %s172
      %p174 = pneg %p36
      %p175 = pneg %p33
      %p176 = pneg %p57
      %p177 = pneg %p54
      %p178 = pneg %p78
      %p179 = pneg %p75
      %p180 = pneg %p99
      %p181 = pneg %p96
      %p182 = pneg %p125
      %p183 = pneg %p122
      %s184 = smul.u32 8, %s15
      %p185 = scmp.lt.s32.totalorder %s184, 15
      %s186 = scalar_select %p185, %s184, 15
      %s187 = smul.addr %s186, 4
      %s188 = scalar_lea.vmem %s4, %s187
      %s189 = smul.u32 8, %s15
      %p190 = scmp.lt.s32.totalorder %s189, 15
      %s191 = scalar_select %p190, %s189, 15
      %s192 = smul.addr %s191, 4
      %s193 = scalar_lea.vmem %s0, %s192
      %s194 = smul.u32 8, %s15
      %s195 = smul.u32 8, %s15
      %p196 = scmp.lt.s32.totalorder %s195, 15
      %s197 = scalar_select %p196, %s195, 15
      %s198 = smul.addr %s197, 4
      %s199 = scalar_lea.vmem %s4, %s198
      %s200 = smul.u32 8, %s15
      %v201 = vld [vmem:[%s193] sm:$0xf]
      %v202 = vld [vmem:[%s193 + $0x4] sm:$0xf]
      %v203 = vld [vmem:[%s193 + $0x8] sm:$0xf]
      %v204 = vld [vmem:[%s193 + $0xc] sm:$0xf]
      %v205 = vld [vmem:[%s193 + $0x10] sm:$0xf]
      %v206 = vld [vmem:[%s193 + $0x14] sm:$0xf]
      %v207 = vld [vmem:[%s193 + $0x18] sm:$0xf]
      %v208 = vld [vmem:[%s193 + $0x1c] sm:$0xf]
      %v209 = vld [vmem:[%s2] sm:$0x1]
      %v211 = vpack.i.b16 %v209, %v209
      %v213 = vperm.slane %v211, 0
      %v214 = vunpack.c.l.bf16 %v201
      %v215 = vunpack.c.l.bf16 %v202
      %v216 = vunpack.c.l.bf16 %v203
      %v217 = vunpack.c.l.bf16 %v204
      %v218 = vunpack.c.l.bf16 %v205
      %v219 = vunpack.c.l.bf16 %v206
      %v220 = vunpack.c.l.bf16 %v207
      %v221 = vunpack.c.l.bf16 %v208
      %v222 = vunpack.c.l.bf16 %v213
      %v223 = vadd.f32 %v214, %v222
      %v224 = vadd.f32 %v215, %v222
      %v225 = vadd.f32 %v216, %v222
      %v226 = vadd.f32 %v217, %v222
      %v227 = vadd.f32 %v218, %v222
      %v228 = vadd.f32 %v219, %v222
      %v229 = vadd.f32 %v220, %v222
      %v230 = vadd.f32 %v221, %v222
      %v231 = vpack.c.bf16 %v223, %v223
      %v232 = vpack.c.bf16 %v224, %v224
      %v233 = vpack.c.bf16 %v225, %v225
      %v234 = vpack.c.bf16 %v226, %v226
      %v235 = vpack.c.bf16 %v227, %v227
      %v236 = vpack.c.bf16 %v228, %v228
      %v237 = vpack.c.bf16 %v229, %v229
      %v238 = vpack.c.bf16 %v230, %v230
      %v239 = vunpack.c.l.bf16 %v231
      %v240 = vunpack.c.l.bf16 %v232
      %v241 = vunpack.c.l.bf16 %v233
      %v242 = vunpack.c.l.bf16 %v234
      %v243 = vunpack.c.l.bf16 %v235
      %v244 = vunpack.c.l.bf16 %v236
      %v245 = vunpack.c.l.bf16 %v237
      %v246 = vunpack.c.l.bf16 %v238
      %v247 = vmax.f32 %v239, 0.0
      %v248 = vmax.f32 %v240, 0.0
      %v249 = vmax.f32 %v241, 0.0
      %v250 = vmax.f32 %v242, 0.0
      %v251 = vmax.f32 %v243, 0.0
      %v252 = vmax.f32 %v244, 0.0
      %v253 = vmax.f32 %v245, 0.0
      %v254 = vmax.f32 %v246, 0.0
      %v255 = vpack.c.bf16 %v248, %v247
      %v256 = vpack.c.bf16 %v250, %v249
      %v257 = vpack.c.bf16 %v252, %v251
      %v258 = vpack.c.bf16 %v254, %v253
      %v259 = vld [vmem:[%s1] sm:$0xf]
      %v260 = vld [vmem:[%s1 + $0x4] sm:$0xf]
      %v261 = vld [vmem:[%s1 + $0x8] sm:$0xf]
      %v262 = vld [vmem:[%s1 + $0xc] sm:$0xf]
      %v263 = vld [vmem:[%s1 + $0x10] sm:$0xf]
      %v264 = vld [vmem:[%s1 + $0x14] sm:$0xf]
      %v265 = vld [vmem:[%s1 + $0x18] sm:$0xf]
      %v266 = vld [vmem:[%s1 + $0x1c] sm:$0xf]
      %v267 = vld [vmem:[%s1 + $0x20] sm:$0xf]
      %v268 = vld [vmem:[%s1 + $0x24] sm:$0xf]
      %v269 = vld [vmem:[%s1 + $0x28] sm:$0xf]
      %v270 = vld [vmem:[%s1 + $0x2c] sm:$0xf]
      %v271 = vld [vmem:[%s1 + $0x30] sm:$0xf]
      %v272 = vld [vmem:[%s1 + $0x34] sm:$0xf]
      %v273 = vld [vmem:[%s1 + $0x38] sm:$0xf]
      %v274 = vld [vmem:[%s1 + $0x3c] sm:$0xf]
      %v275 = vld [vmem:[%s3] sm:$0x1]
      %v277 = vperm.slane %v275, 0
      %v295 = vunpack.c.l.b16 %v259
      %v296 = vunpack.c.l.b16 %v260
      %v297 = vunpack.c.l.b16 %v261
      %v298 = vunpack.c.l.b16 %v262
      %v299 = vunpack.c.l.b16 %v263
      %v300 = vunpack.c.l.b16 %v264
      %v301 = vunpack.c.l.b16 %v265
      %v302 = vunpack.c.l.b16 %v266
      %v303 = vunpack.c.l.b16 %v267
      %v304 = vunpack.c.l.b16 %v268
      %v305 = vunpack.c.l.b16 %v269
      %v306 = vunpack.c.l.b16 %v270
      %v307 = vunpack.c.l.b16 %v271
      %v308 = vunpack.c.l.b16 %v272
      %v309 = vunpack.c.l.b16 %v273
      %v310 = vunpack.c.l.b16 %v274
      %v311 = vpack.c.b16 %v296, %v295
      %v312 = vpack.c.b16 %v298, %v297
      %v313 = vpack.c.b16 %v300, %v299
      %v314 = vpack.c.b16 %v302, %v301
      %v315 = vpack.c.b16 %v304, %v303
      %v316 = vpack.c.b16 %v306, %v305
      %v317 = vpack.c.b16 %v308, %v307
      %v318 = vpack.c.b16 %v310, %v309
      %327 = vmatpush.bf16.msra.mxu0 %v318
      %328 = vmatpush.bf16.msra.mxu0 %v317
      %329 = vmatpush.bf16.msra.mxu0 %v316
      %330 = vmatpush.bf16.msra.mxu0 %v315
      %331 = vmatpush.bf16.msra.mxu0 %v314
      %332 = vmatpush.bf16.msra.mxu0 %v313
      %333 = vmatpush.bf16.msra.mxu0 %v312
      %334 = vmatpush.bf16.msra.mxu0 %v311
      %335 = vmatmul.bf16.gmra.mxu0 %v255
      %v336 = vpop.f32.mrf.mxu0
      %v337 = vadd.f32 %v277, %v336
      %v338 = vpop.f32.mrf.mxu0
      %v339 = vadd.f32 %v277, %v338
      %340 = vmatmul.bf16.gmra.mxu0 %v256
      %v341 = vpop.f32.mrf.mxu0
      %v342 = vadd.f32 %v277, %v341
      %v343 = vpop.f32.mrf.mxu0
      %v344 = vadd.f32 %v277, %v343
      %345 = vmatmul.bf16.gmra.mxu0 %v257
      %v346 = vpop.f32.mrf.mxu0
      %v347 = vadd.f32 %v277, %v346
      %v348 = vpop.f32.mrf.mxu0
      %v349 = vadd.f32 %v277, %v348
      %350 = vmatmul.bf16.gmra.mxu0 %v258
      %v351 = vpop.f32.mrf.mxu0
      %v352 = vadd.f32 %v277, %v351
      %v353 = vpop.f32.mrf.mxu0
      %v354 = vadd.f32 %v277, %v353
      %355 = vdwg.mxu0
      %v356 = vmax.f32 %v337, 0.0
      %v357 = vmax.f32 %v339, 0.0
      %v358 = vmax.f32 %v342, 0.0
      %v359 = vmax.f32 %v344, 0.0
      %v360 = vmax.f32 %v347, 0.0
      %v361 = vmax.f32 %v349, 0.0
      %v362 = vmax.f32 %v352, 0.0
      %v363 = vmax.f32 %v354, 0.0
      %v364 = vpack.c.bf16 %v356, %v356
      %v365 = vpack.c.bf16 %v357, %v357
      %v366 = vpack.c.bf16 %v358, %v358
      %v367 = vpack.c.bf16 %v359, %v359
      %v368 = vpack.c.bf16 %v360, %v360
      %v369 = vpack.c.bf16 %v361, %v361
      %v370 = vpack.c.bf16 %v362, %v362
      %v371 = vpack.c.bf16 %v363, %v363
      %372 = vst [vmem:[%s199] sm:$0xf] %v364
      %373 = vst [vmem:[%s199 + $0x4] sm:$0xf] %v365
      %374 = vst [vmem:[%s199 + $0x8] sm:$0xf] %v366
      %375 = vst [vmem:[%s199 + $0xc] sm:$0xf] %v367
      %376 = vst [vmem:[%s199 + $0x10] sm:$0xf] %v368
      %377 = vst [vmem:[%s199 + $0x14] sm:$0xf] %v369
      %378 = vst [vmem:[%s199 + $0x18] sm:$0xf] %v370
      %379 = vst [vmem:[%s199 + $0x1c] sm:$0xf] %v371
      %s380 = smul.u32 8, %s15
      %p381 = scmp.lt.s32.totalorder %s380, 15
      %s382 = scalar_select %p381, %s380, 15
      %s383 = smul.addr %s382, 4
      %s384 = scalar_lea.vmem %s4, %s383
      // Predicated region
      $region37: #{densenet_forward.12} parent=35 // pred_check
        %p385 = pneg %p122
      $region38: #{densenet_forward.12} parent=35 // pred_check_branch
        %387 = sbr.rel (%p385) target = $region40
      $region39: #{densenet_forward.12} parent=35 // pred_region
        %s388 = smul.u32 8, %s15
      $region40: #{densenet_forward.12} parent=35 // pred_fallthru
        _
    $region36: #{densenet_forward.12} parent=5 // pred_fallthru
      _
    %p389 = scmp.le.s32.totalorder 2, %s10
    // Predicated region
    $region41: #{densenet_forward.12} parent=5 // pred_check
      %p390 = pneg %p389
    $region42: #{densenet_forward.12} parent=5 // pred_check_branch
      %392 = sbr.rel (%p390) target = $region44
    $region43: #{densenet_forward.12} parent=5 // pred_region
      %s393 = ssub.s32 %s10, 2
      // Predicated region
      $region45: #{densenet_forward.12} parent=43 // pred_check
        %p394 = pneg %p128
      $region46: #{densenet_forward.12} parent=43 // pred_check_branch
        %396 = sbr.rel (%p394) target = $region48
      $region47: #{densenet_forward.12} parent=43 // pred_region
        %s397 = smul.u32 8, %s16
        %p398 = scmp.lt.s32.totalorder %s397, 15
        %s399 = scalar_select %p398, %s397, 15
        %s400 = smul.addr %s399, 4
        %s401 = scalar_lea.vmem %s4, %s400
      $region48: #{densenet_forward.12} parent=43 // pred_fallthru
        _
    $region44: #{densenet_forward.12} parent=5 // pred_fallthru
      _
  $region6: #{densenet_forward.12} parent=0 // loop_footer
    %s14 = sadd.s32 1, %s10
  $region7: #{densenet_forward.12} parent=0 // loop_footer_branch
    %9 = sbr.rel target = $region3
  $region8: #{densenet_forward.12} parent=0 // loop_exit
    _

// kernel: densenet_forward.11
$region0: #{densenet_forward.11}
  #allocation0 [shape = 'u32[]', space=smem, size = 0x4, offset = 0x4, fixed_abs, tag = 'smem constant byte address 0x4 - core index']
  #allocation1 [shape = 'u32[72,128]{1,0:T(1,128)}', space=vmem, size = 0x9000, scoped, tag = 'internal scratch']
  %s0 = inlined_call_operand.vmem [shape: bf16[512,147], index: 0, kind: input, shape index: {}]
  %s1 = inlined_call_operand.vmem [shape: bf16[147,64], index: 1, kind: input, shape index: {}]
  %s2 = inlined_call_operand.vmem [shape: f32[1,64], index: 2, kind: input, shape index: {}]
  %s3 = inlined_call_operand.vmem [shape: bf16[512,64], index: 3, kind: output, shape index: {}]
  %s4 = sld [smem:[#allocation0]]
  $region45: #{densenet_forward.11} parent=0
    _
  %s6 = ssub.s32 1, %s4
  %s7 = scalar_select 0, %s6, %s4
  loop: start=0, step=1, limit=4
  $region2: #{densenet_forward.11} parent=0 // loop_pre_header
    _
  $region3: #{densenet_forward.11} parent=0 // loop_header
    %s9 = sphi 0, %s13
    %p10 = scmp.ge.s32.totalorder %s9, 4
    %s19 = sphi 0, %s21
    %s22 = sphi 0, %s19
    %s23 = sphi 0, %s22
    %s39 = sphi 0, %s23
    %s43 = sphi 0, %s43
    %s45 = sphi 0, %s43
    %s46 = sphi 0, %s45
    %s60 = sphi 0, %s46
    %s64 = sphi 0, %s64
    %s66 = sphi 0, %s64
    %s67 = sphi 0, %s66
    %s81 = sphi 0, %s67
    %s87 = sphi 0, %s89
    %s90 = sphi 0, %s87
    %s91 = sphi 0, %s90
    %s107 = sphi 0, %s91
  $region4: #{densenet_forward.11} parent=0 // loop_header_branch
    %12 = sbr.rel (%p10) target = $region8
  $region5: #{densenet_forward.11} parent=0 // loop_body
    %s14 = ssub.s32 %s9, 1
    %s15 = ssub.s32 %s9, 2
    %s16 = sadd.s32 %s9, 1
    %s17 = ssub.s32 %s9, %s16
    %p18 = scmp.eq.s32.totalorder %s17, 0
    %s20 = sadd.s32 %s19, 1
    %s21 = scalar_select %p18, %s19, %s20
    %p24 = pneg %p18
    %p25 = scmp.eq.s32.totalorder %s9, 1
    %p26 = por %p24, %p25
    %p27 = scmp.ne.s32.totalorder %s19, %s22
    %p28 = scmp.eq.s32.totalorder %s9, 0
    %p29 = por %p27, %p28
    %p30 = scmp.ne.s32.totalorder %s19, %s22
    %p31 = scmp.eq.s32.totalorder %s14, 1
    %p32 = por %p30, %p31
    %p33 = scmp.ne.s32.totalorder %s22, %s23
    %p34 = scmp.eq.s32.totalorder %s14, 0
    %p35 = por %p33, %p34
    %p36 = scmp.ne.s32.totalorder %s22, %s23
    %p37 = scmp.eq.s32.totalorder %s15, 1
    %p38 = por %p36, %p37
    %p40 = scmp.ne.s32.totalorder %s23, %s39
    %p41 = scmp.eq.s32.totalorder %s15, 0
    %p42 = por %p40, %p41
    %s44 = sadd.s32 %s43, 1
    %p47 = scmp.eq.s32.totalorder %s9, 1
    %p48 = scmp.ne.s32.totalorder %s43, %s45
    %p49 = scmp.eq.s32.totalorder %s9, 0
    %p50 = por %p48, %p49
    %p51 = scmp.ne.s32.totalorder %s43, %s45
    %p52 = scmp.eq.s32.totalorder %s14, 1
    %p53 = por %p51, %p52
    %p54 = scmp.ne.s32.totalorder %s45, %s46
    %p55 = scmp.eq.s32.totalorder %s14, 0
    %p56 = por %p54, %p55
    %p57 = scmp.ne.s32.totalorder %s45, %s46
    %p58 = scmp.eq.s32.totalorder %s15, 1
    %p59 = por %p57, %p58
    %p61 = scmp.ne.s32.totalorder %s46, %s60
    %p62 = scmp.eq.s32.totalorder %s15, 0
    %p63 = por %p61, %p62
    %s65 = sadd.s32 %s64, 1
    %p68 = scmp.eq.s32.totalorder %s9, 1
    %p69 = scmp.ne.s32.totalorder %s64, %s66
    %p70 = scmp.eq.s32.totalorder %s9, 0
    %p71 = por %p69, %p70
    %p72 = scmp.ne.s32.totalorder %s64, %s66
    %p73 = scmp.eq.s32.totalorder %s14, 1
    %p74 = por %p72, %p73
    %p75 = scmp.ne.s32.totalorder %s66, %s67
    %p76 = scmp.eq.s32.totalorder %s14, 0
    %p77 = por %p75, %p76
    %p78 = scmp.ne.s32.totalorder %s66, %s67
    %p79 = scmp.eq.s32.totalorder %s15, 1
    %p80 = por %p78, %p79
    %p82 = scmp.ne.s32.totalorder %s67, %s81
    %p83 = scmp.eq.s32.totalorder %s15, 0
    %p84 = por %p82, %p83
    %s85 = ssub.s32 %s9, %s16
    %p86 = scmp.eq.s32.totalorder %s85, 0
    %s88 = sadd.s32 %s87, 1
    %s89 = scalar_select %p86, %s87, %s88
    %p92 = pneg %p86
    %p93 = scmp.eq.s32.totalorder %s9, 1
    %p94 = por %p92, %p93
    %p95 = scmp.ne.s32.totalorder %s87, %s90
    %p96 = scmp.eq.s32.totalorder %s9, 0
    %p97 = por %p95, %p96
    %p98 = scmp.ne.s32.totalorder %s87, %s90
    %p99 = scmp.eq.s32.totalorder %s14, 1
    %p100 = por %p98, %p99
    %p101 = scmp.ne.s32.totalorder %s90, %s91
    %p102 = scmp.eq.s32.totalorder %s14, 0
    %p103 = por %p101, %p102
    %p104 = scmp.ne.s32.totalorder %s90, %s91
    %p105 = scmp.eq.s32.totalorder %s15, 1
    %p106 = por %p104, %p105
    %p108 = scmp.ne.s32.totalorder %s91, %s107
    %p109 = scmp.eq.s32.totalorder %s15, 0
    %p110 = por %p108, %p109
    %p111 = scmp.le.s32.totalorder 1, %s9
    %p112 = scmp.lt.s32.totalorder %s9, 3
    %p113 = pnand %p111, %p112
    %p114 = pneg %p113
    // Predicated region
    $region9: #{densenet_forward.11} parent=5 // pred_check
      _
    $region10: #{densenet_forward.11} parent=5 // pred_check_branch
      %116 = sbr.rel (%p113) target = $region12
    $region11: #{densenet_forward.11} parent=5 // pred_region
      %s117 = ssub.s32 %s9, 1
      // Predicated region
      $region13: #{densenet_forward.11} parent=11 // pred_check
        %p118 = pneg %p56
      $region14: #{densenet_forward.11} parent=11 // pred_check_branch
        %120 = sbr.rel (%p118) target = $region16
      $region15: #{densenet_forward.11} parent=11 // pred_region
        _
      $region16: #{densenet_forward.11} parent=11 // pred_fallthru
        _
      // Predicated region
      $region17: #{densenet_forward.11} parent=11 // pred_check
        %p121 = pneg %p77
      $region18: #{densenet_forward.11} parent=11 // pred_check_branch
        %123 = sbr.rel (%p121) target = $region20
      $region19: #{densenet_forward.11} parent=11 // pred_region
        _
      $region20: #{densenet_forward.11} parent=11 // pred_fallthru
        _
    $region12: #{densenet_forward.11} parent=5 // pred_fallthru
      _
    %p124 = scmp.lt.s32.totalorder %s9, 2
    // Predicated region
    $region21: #{densenet_forward.11} parent=5 // pred_check
      %p125 = pneg %p124
    $region22: #{densenet_forward.11} parent=5 // pred_check_branch
      %127 = sbr.rel (%p125) target = $region24
    $region23: #{densenet_forward.11} parent=5 // pred_region
      // Predicated region
      $region25: #{densenet_forward.11} parent=23 // pred_check
        %p128 = pneg %p29
      $region26: #{densenet_forward.11} parent=23 // pred_check_branch
        %130 = sbr.rel (%p128) target = $region28
      $region27: #{densenet_forward.11} parent=23 // pred_region
        %s131 = smul.u32 32, %s9
        %p132 = scmp.lt.s32.totalorder %s131, 63
        %s133 = scalar_select %p132, %s131, 63
        %s134 = smul.addr %s133, 2
        %s135 = smul.addr %s134, 4
        %s136 = scalar_lea.vmem %s0, %s135
        %s137 = smul.u32 32, %s9
      $region28: #{densenet_forward.11} parent=23 // pred_fallthru
        _
    $region24: #{densenet_forward.11} parent=5 // pred_fallthru
      _
    %p138 = scmp.le.s32.totalorder 1, %s9
    %p139 = scmp.lt.s32.totalorder %s9, 3
    %p140 = pnand %p138, %p139
    %p141 = pneg %p140
    // Predicated region
    $region29: #{densenet_forward.11} parent=5 // pred_check
      _
    $region30: #{densenet_forward.11} parent=5 // pred_check_branch
      %143 = sbr.rel (%p140) target = $region32
    $region31: #{densenet_forward.11} parent=5 // pred_region
      %s144 = ssub.s32 %s9, 1
      %s145 = smul.u32 32, %s14
      %p146 = scmp.lt.s32.totalorder %s145, 63
      %s147 = scalar_select %p146, %s145, 63
      %s148 = smul.addr %s147, 2
      %s149 = smul.addr %s148, 4
      %s150 = scalar_lea.vmem %s0, %s149
      %p151 = pneg %p35
      %p152 = pneg %p32
      %p153 = pneg %p56
      %p154 = pneg %p53
      %p155 = pneg %p77
      %p156 = pneg %p74
      %p157 = pneg %p103
      %p158 = pneg %p100
      %s159 = smul.u32 32, %s14
      %p160 = scmp.lt.s32.totalorder %s159, 63
      %s161 = scalar_select %p160, %s159, 63
      %s162 = smul.addr %s161, 4
      %s163 = scalar_lea.vmem %s3, %s162
      %s164 = smul.u32 32, %s14
      %p165 = scmp.lt.s32.totalorder %s164, 63
      %s166 = scalar_select %p165, %s164, 63
      %s167 = smul.addr %s166, 2
      %s168 = smul.addr %s167, 4
      %s169 = scalar_lea.vmem %s0, %s168
      %s170 = smul.u32 32, %s14
      %s171 = smul.u32 32, %s14
      %p172 = scmp.lt.s32.totalorder %s171, 63
      %s173 = scalar_select %p172, %s171, 63
      %s174 = smul.addr %s173, 4
      %s175 = scalar_lea.vmem %s3, %s174
      %s176 = smul.u32 32, %s14
      %v178 = vld [vmem:[%s169] sm:$0xff]
      %v179 = vld [vmem:[%s169 + $0x8] sm:$0xff]
      %v180 = vld [vmem:[%s169 + $0x10] sm:$0xff]
      %v181 = vld [vmem:[%s169 + $0x18] sm:$0xff]
      %v182 = vld [vmem:[%s169 + $0x20] sm:$0xff]
      %v183 = vld [vmem:[%s169 + $0x28] sm:$0xff]
      %v184 = vld [vmem:[%s169 + $0x30] sm:$0xff]
      %v185 = vld [vmem:[%s169 + $0x38] sm:$0xff]
      %v186 = vld [vmem:[%s169 + $0x40] sm:$0xff]
      %v187 = vld [vmem:[%s169 + $0x48] sm:$0xff]
      %v188 = vld [vmem:[%s169 + $0x50] sm:$0xff]
      %v189 = vld [vmem:[%s169 + $0x58] sm:$0xff]
      %v190 = vld [vmem:[%s169 + $0x60] sm:$0xff]
      %v191 = vld [vmem:[%s169 + $0x68] sm:$0xff]
      %v192 = vld [vmem:[%s169 + $0x70] sm:$0xff]
      %v193 = vld [vmem:[%s169 + $0x78] sm:$0xff]
      %v194 = vld [vmem:[%s169 + $0x80] sm:$0xff]
      %v195 = vld [vmem:[%s169 + $0x88] sm:$0xff]
      %v196 = vld [vmem:[%s169 + $0x90] sm:$0xff]
      %v197 = vld [vmem:[%s169 + $0x98] sm:$0xff]
      %v198 = vld [vmem:[%s169 + $0xa0] sm:$0xff]
      %v199 = vld [vmem:[%s169 + $0xa8] sm:$0xff]
      %v200 = vld [vmem:[%s169 + $0xb0] sm:$0xff]
      %v201 = vld [vmem:[%s169 + $0xb8] sm:$0xff]
      %v202 = vld [vmem:[%s169 + $0xc0] sm:$0xff]
      %v203 = vld [vmem:[%s169 + $0xc8] sm:$0xff]
      %v204 = vld [vmem:[%s169 + $0xd0] sm:$0xff]
      %v205 = vld [vmem:[%s169 + $0xd8] sm:$0xff]
      %v206 = vld [vmem:[%s169 + $0xe0] sm:$0xff]
      %v207 = vld [vmem:[%s169 + $0xe8] sm:$0xff]
      %v208 = vld [vmem:[%s169 + $0xf0] sm:$0xff]
      %v209 = vld [vmem:[%s169 + $0xf8] sm:$0xff]
      %v210 = vld [vmem:[%s1] sm:$0xf]
      %v211 = vld [vmem:[%s1 + $0x4] sm:$0xf]
      %v212 = vld [vmem:[%s1 + $0x8] sm:$0xf]
      %v213 = vld [vmem:[%s1 + $0xc] sm:$0xf]
      %v214 = vld [vmem:[%s1 + $0x10] sm:$0xf]
      %v215 = vld [vmem:[%s1 + $0x14] sm:$0xf]
      %v216 = vld [vmem:[%s1 + $0x18] sm:$0xf]
      %v217 = vld [vmem:[%s1 + $0x1c] sm:$0xf]
      %v218 = vld [vmem:[%s1 + $0x20] sm:$0xf]
      %v219 = vld [vmem:[%s1 + $0x24] sm:$0xf]
      %v220 = vld [vmem:[%s1 + $0x28] sm:$0xf]
      %v221 = vld [vmem:[%s1 + $0x2c] sm:$0xf]
      %v222 = vld [vmem:[%s1 + $0x30] sm:$0xf]
      %v223 = vld [vmem:[%s1 + $0x34] sm:$0xf]
      %v224 = vld [vmem:[%s1 + $0x38] sm:$0xf]
      %v225 = vld [vmem:[%s1 + $0x3c] sm:$0xf]
      %v226 = vld [vmem:[%s1 + $0x40] sm:$0xf]
      %v227 = vld [vmem:[%s1 + $0x44] sm:$0xf]
      %v228 = vld [vmem:[%s1 + $0x48] sm:$0x3]
      %v229 = vld [vmem:[%s2] sm:$0x1]
      %v231 = vperm.slane %v229, 0
      %v265 = vunpack.c.l.b16 %v178
      %v266 = vunpack.c.h.b16 %v178
      %v267 = vunpack.c.l.b16 %v179
      %v268 = vunpack.c.h.b16 %v179
      %v269 = vunpack.c.l.b16 %v180
      %v270 = vunpack.c.h.b16 %v180
      %v271 = vunpack.c.l.b16 %v181
      %v272 = vunpack.c.h.b16 %v181
      %v273 = vunpack.c.l.b16 %v182
      %v274 = vunpack.c.h.b16 %v182
      %v275 = vunpack.c.l.b16 %v183
      %v276 = vunpack.c.h.b16 %v183
      %v277 = vunpack.c.l.b16 %v184
      %v278 = vunpack.c.h.b16 %v184
      %v279 = vunpack.c.l.b16 %v185
      %v280 = vunpack.c.h.b16 %v185
      %v281 = vunpack.c.l.b16 %v186
      %v282 = vunpack.c.h.b16 %v186
      %v283 = vunpack.c.l.b16 %v187
      %v284 = vunpack.c.h.b16 %v187
      %v285 = vunpack.c.l.b16 %v188
      %v286 = vunpack.c.h.b16 %v188
      %v287 = vunpack.c.l.b16 %v189
      %v288 = vunpack.c.h.b16 %v189
      %v289 = vunpack.c.l.b16 %v190
      %v290 = vunpack.c.h.b16 %v190
      %v291 = vunpack.c.l.b16 %v191
      %v292 = vunpack.c.h.b16 %v191
      %v293 = vunpack.c.l.b16 %v192
      %v294 = vunpack.c.h.b16 %v192
      %v295 = vunpack.c.l.b16 %v193
      %v296 = vunpack.c.h.b16 %v193
      %v297 = vunpack.c.l.b16 %v194
      %v298 = vunpack.c.h.b16 %v194
      %v299 = vunpack.c.l.b16 %v195
      %v300 = vunpack.c.h.b16 %v195
      %v301 = vunpack.c.l.b16 %v196
      %v302 = vunpack.c.h.b16 %v196
      %v303 = vunpack.c.l.b16 %v197
      %v304 = vunpack.c.h.b16 %v197
      %v305 = vunpack.c.l.b16 %v198
      %v306 = vunpack.c.h.b16 %v198
      %v307 = vunpack.c.l.b16 %v199
      %v308 = vunpack.c.h.b16 %v199
      %v309 = vunpack.c.l.b16 %v200
      %v310 = vunpack.c.h.b16 %v200
      %v311 = vunpack.c.l.b16 %v201
      %v312 = vunpack.c.h.b16 %v201
      %v313 = vunpack.c.l.b16 %v202
      %v314 = vunpack.c.h.b16 %v202
      %v315 = vunpack.c.l.b16 %v203
      %v316 = vunpack.c.h.b16 %v203
      %v317 = vunpack.c.l.b16 %v204
      %v318 = vunpack.c.h.b16 %v204
      %v319 = vunpack.c.l.b16 %v205
      %v320 = vunpack.c.h.b16 %v205
      %v321 = vunpack.c.l.b16 %v206
      %v322 = vunpack.c.h.b16 %v206
      %v323 = vunpack.c.l.b16 %v207
      %v324 = vunpack.c.h.b16 %v207
      %v325 = vunpack.c.l.b16 %v208
      %v326 = vunpack.c.h.b16 %v208
      %v327 = vunpack.c.l.b16 %v209
      %v328 = vunpack.c.h.b16 %v209
      %v329 = vpack.c.b16 %v267, %v265
      %v330 = vpack.c.b16 %v268, %v266
      %v331 = vpack.c.b16 %v271, %v269
      %v332 = vpack.c.b16 %v272, %v270
      %v333 = vpack.c.b16 %v275, %v273
      %v334 = vpack.c.b16 %v276, %v274
      %v335 = vpack.c.b16 %v279, %v277
      %v336 = vpack.c.b16 %v280, %v278
      %v337 = vpack.c.b16 %v283, %v281
      %v338 = vpack.c.b16 %v284, %v282
      %v339 = vpack.c.b16 %v287, %v285
      %v340 = vpack.c.b16 %v288, %v286
      %v341 = vpack.c.b16 %v291, %v289
      %v342 = vpack.c.b16 %v292, %v290
      %v343 = vpack.c.b16 %v295, %v293
      %v344 = vpack.c.b16 %v296, %v294
      %v345 = vpack.c.b16 %v299, %v297
      %v346 = vpack.c.b16 %v300, %v298
      %v347 = vpack.c.b16 %v303, %v301
      %v348 = vpack.c.b16 %v304, %v302
      %v349 = vpack.c.b16 %v307, %v305
      %v350 = vpack.c.b16 %v308, %v306
      %v351 = vpack.c.b16 %v311, %v309
      %v352 = vpack.c.b16 %v312, %v310
      %v353 = vpack.c.b16 %v315, %v313
      %v354 = vpack.c.b16 %v316, %v314
      %v355 = vpack.c.b16 %v319, %v317
      %v356 = vpack.c.b16 %v320, %v318
      %v357 = vpack.c.b16 %v323, %v321
      %v358 = vpack.c.b16 %v324, %v322
      %v359 = vpack.c.b16 %v327, %v325
      %v360 = vpack.c.b16 %v328, %v326
      %v396 = vunpack.c.l.b16 %v210
      %v397 = vunpack.c.l.b16 %v211
      %v398 = vunpack.c.l.b16 %v212
      %v399 = vunpack.c.l.b16 %v213
      %v400 = vunpack.c.l.b16 %v214
      %v401 = vunpack.c.l.b16 %v215
      %v402 = vunpack.c.l.b16 %v216
      %v403 = vunpack.c.l.b16 %v217
      %v404 = vunpack.c.l.b16 %v218
      %v405 = vunpack.c.l.b16 %v219
      %v406 = vunpack.c.l.b16 %v220
      %v407 = vunpack.c.l.b16 %v221
      %v408 = vunpack.c.l.b16 %v222
      %v409 = vunpack.c.l.b16 %v223
      %v410 = vunpack.c.l.b16 %v224
      %v411 = vunpack.c.l.b16 %v225
      %v412 = vunpack.c.l.b16 %v226
      %v413 = vunpack.c.l.b16 %v227
      %v414 = vunpack.c.l.b16 %v228
      %v415 = vpack.c.b16 %v397, %v396
      %v416 = vpack.c.b16 %v399, %v398
      %v417 = vpack.c.b16 %v401, %v400
      %v418 = vpack.c.b16 %v403, %v402
      %v419 = vpack.c.b16 %v405, %v404
      %v420 = vpack.c.b16 %v407, %v406
      %v421 = vpack.c.b16 %v409, %v408
      %v422 = vpack.c.b16 %v411, %v410
      %v423 = vpack.c.b16 %v413, %v412
      %v424 = vpack.c.b16 %v414, %v414
      %vm434 = vcmask 154624
      %v436 = vsel %vm434, %v330, 0
      %v439 = vsel %vm434, %v332, 0
      %v442 = vsel %vm434, %v334, 0
      %v445 = vsel %vm434, %v336, 0
      %v448 = vsel %vm434, %v338, 0
      %v451 = vsel %vm434, %v340, 0
      %v454 = vsel %vm434, %v342, 0
      %v457 = vsel %vm434, %v344, 0
      %v460 = vsel %vm434, %v346, 0
      %v463 = vsel %vm434, %v348, 0
      %v466 = vsel %vm434, %v350, 0
      %v469 = vsel %vm434, %v352, 0
      %v472 = vsel %vm434, %v354, 0
      %v475 = vsel %vm434, %v356, 0
      %v478 = vsel %vm434, %v358, 0
      %v481 = vsel %vm434, %v360, 0
      %vm483 = vcmask 1040384
      %vm484 = vcmask 1041408
      %v485 = vsel %vm483, 4294967295, 65535
      %v486 = vsel %vm484, %v485, 0
      %v488 = vand.u32 %v424, %v486
      %490 = vmatpush.bf16.msra.mxu0 %v422
      %491 = vmatpush.bf16.msra.mxu0 %v421
      %492 = vmatpush.bf16.msra.mxu0 %v420
      %493 = vmatpush.bf16.msra.mxu0 %v419
      %494 = vmatpush.bf16.msra.mxu0 %v418
      %495 = vmatpush.bf16.msra.mxu0 %v417
      %496 = vmatpush.bf16.msra.mxu0 %v416
      %497 = vmatpush.bf16.msra.mxu0 %v415
      %498 = vmatmul.bf16.gmra.mxu0 %v329
      %v499 = vpop.f32.mrf.mxu0
      %v500 = vadd.f32 %v231, %v499
      %v501 = vpop.f32.mrf.mxu0
      %v502 = vadd.f32 %v231, %v501
      %503 = vmatmul.bf16.gmra.mxu0 %v331
      %v504 = vpop.f32.mrf.mxu0
      %v505 = vadd.f32 %v231, %v504
      %v506 = vpop.f32.mrf.mxu0
      %v507 = vadd.f32 %v231, %v506
      %508 = vmatmul.bf16.gmra.mxu0 %v333
      %v509 = vpop.f32.mrf.mxu0
      %v510 = vadd.f32 %v231, %v509
      %v511 = vpop.f32.mrf.mxu0
      %v512 = vadd.f32 %v231, %v511
      %513 = vmatmul.bf16.gmra.mxu0 %v335
      %v514 = vpop.f32.mrf.mxu0
      %v515 = vadd.f32 %v231, %v514
      %v516 = vpop.f32.mrf.mxu0
      %v517 = vadd.f32 %v231, %v516
      %518 = vmatmul.bf16.gmra.mxu0 %v337
      %v519 = vpop.f32.mrf.mxu0
      %v520 = vadd.f32 %v231, %v519
      %v521 = vpop.f32.mrf.mxu0
      %v522 = vadd.f32 %v231, %v521
      %523 = vmatmul.bf16.gmra.mxu0 %v339
      %v524 = vpop.f32.mrf.mxu0
      %v525 = vadd.f32 %v231, %v524
      %v526 = vpop.f32.mrf.mxu0
      %v527 = vadd.f32 %v231, %v526
      %528 = vmatmul.bf16.gmra.mxu0 %v341
      %v529 = vpop.f32.mrf.mxu0
      %v530 = vadd.f32 %v231, %v529
      %v531 = vpop.f32.mrf.mxu0
      %v532 = vadd.f32 %v231, %v531
      %533 = vmatmul.bf16.gmra.mxu0 %v343
      %v534 = vpop.f32.mrf.mxu0
      %v535 = vadd.f32 %v231, %v534
      %v536 = vpop.f32.mrf.mxu0
      %v537 = vadd.f32 %v231, %v536
      %538 = vmatmul.bf16.gmra.mxu0 %v345
      %v539 = vpop.f32.mrf.mxu0
      %v540 = vadd.f32 %v231, %v539
      %v541 = vpop.f32.mrf.mxu0
      %v542 = vadd.f32 %v231, %v541
      %543 = vmatmul.bf16.gmra.mxu0 %v347
      %v544 = vpop.f32.mrf.mxu0
      %v545 = vadd.f32 %v231, %v544
      %v546 = vpop.f32.mrf.mxu0
      %v547 = vadd.f32 %v231, %v546
      %548 = vmatmul.bf16.gmra.mxu0 %v349
      %v549 = vpop.f32.mrf.mxu0
      %v550 = vadd.f32 %v231, %v549
      %v551 = vpop.f32.mrf.mxu0
      %v552 = vadd.f32 %v231, %v551
      %553 = vmatmul.bf16.gmra.mxu0 %v351
      %v554 = vpop.f32.mrf.mxu0
      %v555 = vadd.f32 %v231, %v554
      %v556 = vpop.f32.mrf.mxu0
      %v557 = vadd.f32 %v231, %v556
      %558 = vmatmul.bf16.gmra.mxu0 %v353
      %v559 = vpop.f32.mrf.mxu0
      %v560 = vadd.f32 %v231, %v559
      %v561 = vpop.f32.mrf.mxu0
      %v562 = vadd.f32 %v231, %v561
      %563 = vmatmul.bf16.gmra.mxu0 %v355
      %v564 = vpop.f32.mrf.mxu0
      %v565 = vadd.f32 %v231, %v564
      %v566 = vpop.f32.mrf.mxu0
      %v567 = vadd.f32 %v231, %v566
      %568 = vmatmul.bf16.gmra.mxu0 %v357
      %v569 = vpop.f32.mrf.mxu0
      %v570 = vadd.f32 %v231, %v569
      %v571 = vpop.f32.mrf.mxu0
      %v572 = vadd.f32 %v231, %v571
      %573 = vmatmul.bf16.gmra.mxu0 %v359
      %v574 = vpop.f32.mrf.mxu0
      %v575 = vadd.f32 %v231, %v574
      %v576 = vpop.f32.mrf.mxu0
      %v577 = vadd.f32 %v231, %v576
      %578 = vdwg.mxu0
      %579 = vmatpush.bf16.msra.mxu0 0
      %580 = vmatpush.bf16.msra.mxu0 0
      %581 = vmatpush.bf16.msra.mxu0 0
      %582 = vmatpush.bf16.msra.mxu0 0
      %583 = vmatpush.bf16.msra.mxu0 0
      %584 = vmatpush.bf16.msra.mxu0 0
      %585 = vmatpush.bf16.msra.mxu0 %v488
      %586 = vmatpush.bf16.msra.mxu0 %v423
      %587 = vmatmul.bf16.gmra.mxu0 %v436
      %v588 = vpop.f32.mrf.mxu0
      %v589 = vadd.f32 %v500, %v588
      %v590 = vpop.f32.mrf.mxu0
      %v591 = vadd.f32 %v502, %v590
      %592 = vmatmul.bf16.gmra.mxu0 %v439
      %v593 = vpop.f32.mrf.mxu0
      %v594 = vadd.f32 %v505, %v593
      %v595 = vpop.f32.mrf.mxu0
      %v596 = vadd.f32 %v507, %v595
      %597 = vmatmul.bf16.gmra.mxu0 %v442
      %v598 = vpop.f32.mrf.mxu0
      %v599 = vadd.f32 %v510, %v598
      %v600 = vpop.f32.mrf.mxu0
      %v601 = vadd.f32 %v512, %v600
      %602 = vmatmul.bf16.gmra.mxu0 %v445
      %v603 = vpop.f32.mrf.mxu0
      %v604 = vadd.f32 %v515, %v603
      %v605 = vpop.f32.mrf.mxu0
      %v606 = vadd.f32 %v517, %v605
      %607 = vmatmul.bf16.gmra.mxu0 %v448
      %v608 = vpop.f32.mrf.mxu0
      %v609 = vadd.f32 %v520, %v608
      %v610 = vpop.f32.mrf.mxu0
      %v611 = vadd.f32 %v522, %v610
      %612 = vmatmul.bf16.gmra.mxu0 %v451
      %v613 = vpop.f32.mrf.mxu0
      %v614 = vadd.f32 %v525, %v613
      %v615 = vpop.f32.mrf.mxu0
      %v616 = vadd.f32 %v527, %v615
      %617 = vmatmul.bf16.gmra.mxu0 %v454
      %v618 = vpop.f32.mrf.mxu0
      %v619 = vadd.f32 %v530, %v618
      %v620 = vpop.f32.mrf.mxu0
      %v621 = vadd.f32 %v532, %v620
      %622 = vmatmul.bf16.gmra.mxu0 %v457
      %v623 = vpop.f32.mrf.mxu0
      %v624 = vadd.f32 %v535, %v623
      %v625 = vpop.f32.mrf.mxu0
      %v626 = vadd.f32 %v537, %v625
      %627 = vmatmul.bf16.gmra.mxu0 %v460
      %v628 = vpop.f32.mrf.mxu0
      %v629 = vadd.f32 %v540, %v628
      %v630 = vpop.f32.mrf.mxu0
      %v631 = vadd.f32 %v542, %v630
      %632 = vmatmul.bf16.gmra.mxu0 %v463
      %v633 = vpop.f32.mrf.mxu0
      %v634 = vadd.f32 %v545, %v633
      %v635 = vpop.f32.mrf.mxu0
      %v636 = vadd.f32 %v547, %v635
      %637 = vmatmul.bf16.gmra.mxu0 %v466
      %v638 = vpop.f32.mrf.mxu0
      %v639 = vadd.f32 %v550, %v638
      %v640 = vpop.f32.mrf.mxu0
      %v641 = vadd.f32 %v552, %v640
      %642 = vmatmul.bf16.gmra.mxu0 %v469
      %v643 = vpop.f32.mrf.mxu0
      %v644 = vadd.f32 %v555, %v643
      %v645 = vpop.f32.mrf.mxu0
      %v646 = vadd.f32 %v557, %v645
      %647 = vmatmul.bf16.gmra.mxu0 %v472
      %v648 = vpop.f32.mrf.mxu0
      %v649 = vadd.f32 %v560, %v648
      %v650 = vpop.f32.mrf.mxu0
      %v651 = vadd.f32 %v562, %v650
      %652 = vmatmul.bf16.gmra.mxu0 %v475
      %v653 = vpop.f32.mrf.mxu0
      %v654 = vadd.f32 %v565, %v653
      %v655 = vpop.f32.mrf.mxu0
      %v656 = vadd.f32 %v567, %v655
      %657 = vmatmul.bf16.gmra.mxu0 %v478
      %v658 = vpop.f32.mrf.mxu0
      %v659 = vadd.f32 %v570, %v658
      %v660 = vpop.f32.mrf.mxu0
      %v661 = vadd.f32 %v572, %v660
      %662 = vmatmul.bf16.gmra.mxu0 %v481
      %v663 = vpop.f32.mrf.mxu0
      %v664 = vadd.f32 %v575, %v663
      %v665 = vpop.f32.mrf.mxu0
      %v666 = vadd.f32 %v577, %v665
      %667 = vdwg.mxu0
      %v668 = vmax.f32 %v589, 0.0
      %v669 = vmax.f32 %v591, 0.0
      %v670 = vmax.f32 %v594, 0.0
      %v671 = vmax.f32 %v596, 0.0
      %v672 = vmax.f32 %v599, 0.0
      %v673 = vmax.f32 %v601, 0.0
      %v674 = vmax.f32 %v604, 0.0
      %v675 = vmax.f32 %v606, 0.0
      %v676 = vmax.f32 %v609, 0.0
      %v677 = vmax.f32 %v611, 0.0
      %v678 = vmax.f32 %v614, 0.0
      %v679 = vmax.f32 %v616, 0.0
      %v680 = vmax.f32 %v619, 0.0
      %v681 = vmax.f32 %v621, 0.0
      %v682 = vmax.f32 %v624, 0.0
      %v683 = vmax.f32 %v626, 0.0
      %v684 = vmax.f32 %v629, 0.0
      %v685 = vmax.f32 %v631, 0.0
      %v686 = vmax.f32 %v634, 0.0
      %v687 = vmax.f32 %v636, 0.0
      %v688 = vmax.f32 %v639, 0.0
      %v689 = vmax.f32 %v641, 0.0
      %v690 = vmax.f32 %v644, 0.0
      %v691 = vmax.f32 %v646, 0.0
      %v692 = vmax.f32 %v649, 0.0
      %v693 = vmax.f32 %v651, 0.0
      %v694 = vmax.f32 %v654, 0.0
      %v695 = vmax.f32 %v656, 0.0
      %v696 = vmax.f32 %v659, 0.0
      %v697 = vmax.f32 %v661, 0.0
      %v698 = vmax.f32 %v664, 0.0
      %v699 = vmax.f32 %v666, 0.0
      %v700 = vpack.c.bf16 %v668, %v668
      %v701 = vpack.c.bf16 %v669, %v669
      %v702 = vpack.c.bf16 %v670, %v670
      %v703 = vpack.c.bf16 %v671, %v671
      %v704 = vpack.c.bf16 %v672, %v672
      %v705 = vpack.c.bf16 %v673, %v673
      %v706 = vpack.c.bf16 %v674, %v674
      %v707 = vpack.c.bf16 %v675, %v675
      %v708 = vpack.c.bf16 %v676, %v676
      %v709 = vpack.c.bf16 %v677, %v677
      %v710 = vpack.c.bf16 %v678, %v678
      %v711 = vpack.c.bf16 %v679, %v679
      %v712 = vpack.c.bf16 %v680, %v680
      %v713 = vpack.c.bf16 %v681, %v681
      %v714 = vpack.c.bf16 %v682, %v682
      %v715 = vpack.c.bf16 %v683, %v683
      %v716 = vpack.c.bf16 %v684, %v684
      %v717 = vpack.c.bf16 %v685, %v685
      %v718 = vpack.c.bf16 %v686, %v686
      %v719 = vpack.c.bf16 %v687, %v687
      %v720 = vpack.c.bf16 %v688, %v688
      %v721 = vpack.c.bf16 %v689, %v689
      %v722 = vpack.c.bf16 %v690, %v690
      %v723 = vpack.c.bf16 %v691, %v691
      %v724 = vpack.c.bf16 %v692, %v692
      %v725 = vpack.c.bf16 %v693, %v693
      %v726 = vpack.c.bf16 %v694, %v694
      %v727 = vpack.c.bf16 %v695, %v695
      %v728 = vpack.c.bf16 %v696, %v696
      %v729 = vpack.c.bf16 %v697, %v697
      %v730 = vpack.c.bf16 %v698, %v698
      %v731 = vpack.c.bf16 %v699, %v699
      %vm732 = vcmask 519168
      %733 = vst.msk [vmem:[%s175] sm:$0xf] %vm732, %v700
      %734 = vst.msk [vmem:[%s175 + $0x4] sm:$0xf] %vm732, %v701
      %735 = vst.msk [vmem:[%s175 + $0x8] sm:$0xf] %vm732, %v702
      %736 = vst.msk [vmem:[%s175 + $0xc] sm:$0xf] %vm732, %v703
      %737 = vst.msk [vmem:[%s175 + $0x10] sm:$0xf] %vm732, %v704
      %738 = vst.msk [vmem:[%s175 + $0x14] sm:$0xf] %vm732, %v705
      %739 = vst.msk [vmem:[%s175 + $0x18] sm:$0xf] %vm732, %v706
      %740 = vst.msk [vmem:[%s175 + $0x1c] sm:$0xf] %vm732, %v707
      %741 = vst.msk [vmem:[%s175 + $0x20] sm:$0xf] %vm732, %v708
      %742 = vst.msk [vmem:[%s175 + $0x24] sm:$0xf] %vm732, %v709
      %743 = vst.msk [vmem:[%s175 + $0x28] sm:$0xf] %vm732, %v710
      %744 = vst.msk [vmem:[%s175 + $0x2c] sm:$0xf] %vm732, %v711
      %745 = vst.msk [vmem:[%s175 + $0x30] sm:$0xf] %vm732, %v712
      %746 = vst.msk [vmem:[%s175 + $0x34] sm:$0xf] %vm732, %v713
      %747 = vst.msk [vmem:[%s175 + $0x38] sm:$0xf] %vm732, %v714
      %748 = vst.msk [vmem:[%s175 + $0x3c] sm:$0xf] %vm732, %v715
      %749 = vst.msk [vmem:[%s175 + $0x40] sm:$0xf] %vm732, %v716
      %750 = vst.msk [vmem:[%s175 + $0x44] sm:$0xf] %vm732, %v717
      %751 = vst.msk [vmem:[%s175 + $0x48] sm:$0xf] %vm732, %v718
      %752 = vst.msk [vmem:[%s175 + $0x4c] sm:$0xf] %vm732, %v719
      %753 = vst.msk [vmem:[%s175 + $0x50] sm:$0xf] %vm732, %v720
      %754 = vst.msk [vmem:[%s175 + $0x54] sm:$0xf] %vm732, %v721
      %755 = vst.msk [vmem:[%s175 + $0x58] sm:$0xf] %vm732, %v722
      %756 = vst.msk [vmem:[%s175 + $0x5c] sm:$0xf] %vm732, %v723
      %757 = vst.msk [vmem:[%s175 + $0x60] sm:$0xf] %vm732, %v724
      %758 = vst.msk [vmem:[%s175 + $0x64] sm:$0xf] %vm732, %v725
      %759 = vst.msk [vmem:[%s175 + $0x68] sm:$0xf] %vm732, %v726
      %760 = vst.msk [vmem:[%s175 + $0x6c] sm:$0xf] %vm732, %v727
      %761 = vst.msk [vmem:[%s175 + $0x70] sm:$0xf] %vm732, %v728
      %762 = vst.msk [vmem:[%s175 + $0x74] sm:$0xf] %vm732, %v729
      %763 = vst.msk [vmem:[%s175 + $0x78] sm:$0xf] %vm732, %v730
      %764 = vst.msk [vmem:[%s175 + $0x7c] sm:$0xf] %vm732, %v731
      %s765 = smul.u32 32, %s14
      %p766 = scmp.lt.s32.totalorder %s765, 63
      %s767 = scalar_select %p766, %s765, 63
      %s768 = smul.addr %s767, 4
      %s769 = scalar_lea.vmem %s3, %s768
      // Predicated region
      $region33: #{densenet_forward.11} parent=31 // pred_check
        %p770 = pneg %p100
      $region34: #{densenet_forward.11} parent=31 // pred_check_branch
        %772 = sbr.rel (%p770) target = $region36
      $region35: #{densenet_forward.11} parent=31 // pred_region
        %s773 = smul.u32 32, %s14
      $region36: #{densenet_forward.11} parent=31 // pred_fallthru
        _
    $region32: #{densenet_forward.11} parent=5 // pred_fallthru
      _
    %p774 = scmp.le.s32.totalorder 2, %s9
    // Predicated region
    $region37: #{densenet_forward.11} parent=5 // pred_check
      %p775 = pneg %p774
    $region38: #{densenet_forward.11} parent=5 // pred_check_branch
      %777 = sbr.rel (%p775) target = $region40
    $region39: #{densenet_forward.11} parent=5 // pred_region
      %s778 = ssub.s32 %s9, 2
      // Predicated region
      $region41: #{densenet_forward.11} parent=39 // pred_check
        %p779 = pneg %p106
      $region42: #{densenet_forward.11} parent=39 // pred_check_branch
        %781 = sbr.rel (%p779) target = $region44
      $region43: #{densenet_forward.11} parent=39 // pred_region
        %s782 = smul.u32 32, %s15
        %p783 = scmp.lt.s32.totalorder %s782, 63
        %s784 = scalar_select %p783, %s782, 63
        %s785 = smul.addr %s784, 4
        %s786 = scalar_lea.vmem %s3, %s785
      $region44: #{densenet_forward.11} parent=39 // pred_fallthru
        _
    $region40: #{densenet_forward.11} parent=5 // pred_fallthru
      _
  $region6: #{densenet_forward.11} parent=0 // loop_footer
    %s13 = sadd.s32 1, %s9
  $region7: #{densenet_forward.11} parent=0 // loop_footer_branch
    %8 = sbr.rel target = $region3
  $region8: #{densenet_forward.11} parent=0 // loop_exit
    _

// kernel: densenet_forward.16
$region0: #{densenet_forward.16}
  #allocation0 [shape = 'u32[]', space=smem, size = 0x4, offset = 0x4, fixed_abs, tag = 'smem constant byte address 0x4 - core index']
  #allocation1 [shape = 'u32[72,128]{1,0:T(1,128)}', space=vmem, size = 0x9000, scoped, tag = 'internal scratch']
  %s0 = inlined_call_operand.vmem [shape: bf16[128,128], index: 0, kind: input, shape index: {}]
  %s1 = inlined_call_operand.vmem [shape: bf16[128,64], index: 1, kind: input, shape index: {}]
  %s2 = inlined_call_operand.vmem [shape: bf16[1,128], index: 2, kind: input, shape index: {}]
  %s3 = inlined_call_operand.vmem [shape: bf16[128,64], index: 3, kind: output, shape index: {}]
  %s4 = sld [smem:[#allocation0]]
  $region45: #{densenet_forward.16} parent=0
    _
  %s6 = ssub.s32 1, %s4
  %s7 = scalar_select 0, %s6, %s4
  loop: start=0, step=1, limit=4
  $region2: #{densenet_forward.16} parent=0 // loop_pre_header
    _
  $region3: #{densenet_forward.16} parent=0 // loop_header
    %s9 = sphi 0, %s13
    %p10 = scmp.ge.s32.totalorder %s9, 4
    %s19 = sphi 0, %s21
    %s22 = sphi 0, %s19
    %s23 = sphi 0, %s22
    %s39 = sphi 0, %s23
    %s43 = sphi 0, %s43
    %s45 = sphi 0, %s43
    %s46 = sphi 0, %s45
    %s60 = sphi 0, %s46
    %s64 = sphi 0, %s64
    %s66 = sphi 0, %s64
    %s67 = sphi 0, %s66
    %s81 = sphi 0, %s67
    %s87 = sphi 0, %s89
    %s90 = sphi 0, %s87
    %s91 = sphi 0, %s90
    %s107 = sphi 0, %s91
  $region4: #{densenet_forward.16} parent=0 // loop_header_branch
    %12 = sbr.rel (%p10) target = $region8
  $region5: #{densenet_forward.16} parent=0 // loop_body
    %s14 = ssub.s32 %s9, 1
    %s15 = ssub.s32 %s9, 2
    %s16 = sadd.s32 %s9, 1
    %s17 = ssub.s32 %s9, %s16
    %p18 = scmp.eq.s32.totalorder %s17, 0
    %s20 = sadd.s32 %s19, 1
    %s21 = scalar_select %p18, %s19, %s20
    %p24 = pneg %p18
    %p25 = scmp.eq.s32.totalorder %s9, 1
    %p26 = por %p24, %p25
    %p27 = scmp.ne.s32.totalorder %s19, %s22
    %p28 = scmp.eq.s32.totalorder %s9, 0
    %p29 = por %p27, %p28
    %p30 = scmp.ne.s32.totalorder %s19, %s22
    %p31 = scmp.eq.s32.totalorder %s14, 1
    %p32 = por %p30, %p31
    %p33 = scmp.ne.s32.totalorder %s22, %s23
    %p34 = scmp.eq.s32.totalorder %s14, 0
    %p35 = por %p33, %p34
    %p36 = scmp.ne.s32.totalorder %s22, %s23
    %p37 = scmp.eq.s32.totalorder %s15, 1
    %p38 = por %p36, %p37
    %p40 = scmp.ne.s32.totalorder %s23, %s39
    %p41 = scmp.eq.s32.totalorder %s15, 0
    %p42 = por %p40, %p41
    %s44 = sadd.s32 %s43, 1
    %p47 = scmp.eq.s32.totalorder %s9, 1
    %p48 = scmp.ne.s32.totalorder %s43, %s45
    %p49 = scmp.eq.s32.totalorder %s9, 0
    %p50 = por %p48, %p49
    %p51 = scmp.ne.s32.totalorder %s43, %s45
    %p52 = scmp.eq.s32.totalorder %s14, 1
    %p53 = por %p51, %p52
    %p54 = scmp.ne.s32.totalorder %s45, %s46
    %p55 = scmp.eq.s32.totalorder %s14, 0
    %p56 = por %p54, %p55
    %p57 = scmp.ne.s32.totalorder %s45, %s46
    %p58 = scmp.eq.s32.totalorder %s15, 1
    %p59 = por %p57, %p58
    %p61 = scmp.ne.s32.totalorder %s46, %s60
    %p62 = scmp.eq.s32.totalorder %s15, 0
    %p63 = por %p61, %p62
    %s65 = sadd.s32 %s64, 1
    %p68 = scmp.eq.s32.totalorder %s9, 1
    %p69 = scmp.ne.s32.totalorder %s64, %s66
    %p70 = scmp.eq.s32.totalorder %s9, 0
    %p71 = por %p69, %p70
    %p72 = scmp.ne.s32.totalorder %s64, %s66
    %p73 = scmp.eq.s32.totalorder %s14, 1
    %p74 = por %p72, %p73
    %p75 = scmp.ne.s32.totalorder %s66, %s67
    %p76 = scmp.eq.s32.totalorder %s14, 0
    %p77 = por %p75, %p76
    %p78 = scmp.ne.s32.totalorder %s66, %s67
    %p79 = scmp.eq.s32.totalorder %s15, 1
    %p80 = por %p78, %p79
    %p82 = scmp.ne.s32.totalorder %s67, %s81
    %p83 = scmp.eq.s32.totalorder %s15, 0
    %p84 = por %p82, %p83
    %s85 = ssub.s32 %s9, %s16
    %p86 = scmp.eq.s32.totalorder %s85, 0
    %s88 = sadd.s32 %s87, 1
    %s89 = scalar_select %p86, %s87, %s88
    %p92 = pneg %p86
    %p93 = scmp.eq.s32.totalorder %s9, 1
    %p94 = por %p92, %p93
    %p95 = scmp.ne.s32.totalorder %s87, %s90
    %p96 = scmp.eq.s32.totalorder %s9, 0
    %p97 = por %p95, %p96
    %p98 = scmp.ne.s32.totalorder %s87, %s90
    %p99 = scmp.eq.s32.totalorder %s14, 1
    %p100 = por %p98, %p99
    %p101 = scmp.ne.s32.totalorder %s90, %s91
    %p102 = scmp.eq.s32.totalorder %s14, 0
    %p103 = por %p101, %p102
    %p104 = scmp.ne.s32.totalorder %s90, %s91
    %p105 = scmp.eq.s32.totalorder %s15, 1
    %p106 = por %p104, %p105
    %p108 = scmp.ne.s32.totalorder %s91, %s107
    %p109 = scmp.eq.s32.totalorder %s15, 0
    %p110 = por %p108, %p109
    %p111 = scmp.le.s32.totalorder 1, %s9
    %p112 = scmp.lt.s32.totalorder %s9, 3
    %p113 = pnand %p111, %p112
    %p114 = pneg %p113
    // Predicated region
    $region9: #{densenet_forward.16} parent=5 // pred_check
      _
    $region10: #{densenet_forward.16} parent=5 // pred_check_branch
      %116 = sbr.rel (%p113) target = $region12
    $region11: #{densenet_forward.16} parent=5 // pred_region
      %s117 = ssub.s32 %s9, 1
      // Predicated region
      $region13: #{densenet_forward.16} parent=11 // pred_check
        %p118 = pneg %p56
      $region14: #{densenet_forward.16} parent=11 // pred_check_branch
        %120 = sbr.rel (%p118) target = $region16
      $region15: #{densenet_forward.16} parent=11 // pred_region
        _
      $region16: #{densenet_forward.16} parent=11 // pred_fallthru
        _
      // Predicated region
      $region17: #{densenet_forward.16} parent=11 // pred_check
        %p121 = pneg %p77
      $region18: #{densenet_forward.16} parent=11 // pred_check_branch
        %123 = sbr.rel (%p121) target = $region20
      $region19: #{densenet_forward.16} parent=11 // pred_region
        _
      $region20: #{densenet_forward.16} parent=11 // pred_fallthru
        _
    $region12: #{densenet_forward.16} parent=5 // pred_fallthru
      _
    %p124 = scmp.lt.s32.totalorder %s9, 2
    // Predicated region
    $region21: #{densenet_forward.16} parent=5 // pred_check
      %p125 = pneg %p124
    $region22: #{densenet_forward.16} parent=5 // pred_check_branch
      %127 = sbr.rel (%p125) target = $region24
    $region23: #{densenet_forward.16} parent=5 // pred_region
      // Predicated region
      $region25: #{densenet_forward.16} parent=23 // pred_check
        %p128 = pneg %p29
      $region26: #{densenet_forward.16} parent=23 // pred_check_branch
        %130 = sbr.rel (%p128) target = $region28
      $region27: #{densenet_forward.16} parent=23 // pred_region
        %s131 = smul.u32 8, %s9
        %p132 = scmp.lt.s32.totalorder %s131, 15
        %s133 = scalar_select %p132, %s131, 15
        %s134 = smul.addr %s133, 4
        %s135 = scalar_lea.vmem %s0, %s134
        %s136 = smul.u32 8, %s9
      $region28: #{densenet_forward.16} parent=23 // pred_fallthru
        _
    $region24: #{densenet_forward.16} parent=5 // pred_fallthru
      _
    %p137 = scmp.le.s32.totalorder 1, %s9
    %p138 = scmp.lt.s32.totalorder %s9, 3
    %p139 = pnand %p137, %p138
    %p140 = pneg %p139
    // Predicated region
    $region29: #{densenet_forward.16} parent=5 // pred_check
      _
    $region30: #{densenet_forward.16} parent=5 // pred_check_branch
      %142 = sbr.rel (%p139) target = $region32
    $region31: #{densenet_forward.16} parent=5 // pred_region
      %s143 = ssub.s32 %s9, 1
      %s144 = smul.u32 8, %s14
      %p145 = scmp.lt.s32.totalorder %s144, 15
      %s146 = scalar_select %p145, %s144, 15
      %s147 = smul.addr %s146, 4
      %s148 = scalar_lea.vmem %s0, %s147
      %p149 = pneg %p35
      %p150 = pneg %p32
      %p151 = pneg %p56
      %p152 = pneg %p53
      %p153 = pneg %p77
      %p154 = pneg %p74
      %p155 = pneg %p103
      %p156 = pneg %p100
      %s157 = smul.u32 8, %s14
      %p158 = scmp.lt.s32.totalorder %s157, 15
      %s159 = scalar_select %p158, %s157, 15
      %s160 = smul.addr %s159, 4
      %s161 = scalar_lea.vmem %s3, %s160
      %s162 = smul.u32 8, %s14
      %p163 = scmp.lt.s32.totalorder %s162, 15
      %s164 = scalar_select %p163, %s162, 15
      %s165 = smul.addr %s164, 4
      %s166 = scalar_lea.vmem %s0, %s165
      %s167 = smul.u32 8, %s14
      %s168 = smul.u32 8, %s14
      %p169 = scmp.lt.s32.totalorder %s168, 15
      %s170 = scalar_select %p169, %s168, 15
      %s171 = smul.addr %s170, 4
      %s172 = scalar_lea.vmem %s3, %s171
      %s173 = smul.u32 8, %s14
      %v174 = vld [vmem:[%s166] sm:$0xf]
      %v175 = vld [vmem:[%s166 + $0x4] sm:$0xf]
      %v176 = vld [vmem:[%s166 + $0x8] sm:$0xf]
      %v177 = vld [vmem:[%s166 + $0xc] sm:$0xf]
      %v178 = vld [vmem:[%s166 + $0x10] sm:$0xf]
      %v179 = vld [vmem:[%s166 + $0x14] sm:$0xf]
      %v180 = vld [vmem:[%s166 + $0x18] sm:$0xf]
      %v181 = vld [vmem:[%s166 + $0x1c] sm:$0xf]
      %v182 = vld [vmem:[%s2] sm:$0x1]
      %v184 = vpack.i.b16 %v182, %v182
      %v186 = vperm.slane %v184, 0
      %v187 = vunpack.c.l.bf16 %v174
      %v188 = vunpack.c.l.bf16 %v175
      %v189 = vunpack.c.l.bf16 %v176
      %v190 = vunpack.c.l.bf16 %v177
      %v191 = vunpack.c.l.bf16 %v178
      %v192 = vunpack.c.l.bf16 %v179
      %v193 = vunpack.c.l.bf16 %v180
      %v194 = vunpack.c.l.bf16 %v181
      %v195 = vunpack.c.l.bf16 %v186
      %v196 = vadd.f32 %v187, %v195
      %v197 = vadd.f32 %v188, %v195
      %v198 = vadd.f32 %v189, %v195
      %v199 = vadd.f32 %v190, %v195
      %v200 = vadd.f32 %v191, %v195
      %v201 = vadd.f32 %v192, %v195
      %v202 = vadd.f32 %v193, %v195
      %v203 = vadd.f32 %v194, %v195
      %v204 = vpack.c.bf16 %v196, %v196
      %v205 = vpack.c.bf16 %v197, %v197
      %v206 = vpack.c.bf16 %v198, %v198
      %v207 = vpack.c.bf16 %v199, %v199
      %v208 = vpack.c.bf16 %v200, %v200
      %v209 = vpack.c.bf16 %v201, %v201
      %v210 = vpack.c.bf16 %v202, %v202
      %v211 = vpack.c.bf16 %v203, %v203
      %v212 = vunpack.c.l.bf16 %v204
      %v213 = vunpack.c.l.bf16 %v205
      %v214 = vunpack.c.l.bf16 %v206
      %v215 = vunpack.c.l.bf16 %v207
      %v216 = vunpack.c.l.bf16 %v208
      %v217 = vunpack.c.l.bf16 %v209
      %v218 = vunpack.c.l.bf16 %v210
      %v219 = vunpack.c.l.bf16 %v211
      %v220 = vmax.f32 %v212, 0.0
      %v221 = vmax.f32 %v213, 0.0
      %v222 = vmax.f32 %v214, 0.0
      %v223 = vmax.f32 %v215, 0.0
      %v224 = vmax.f32 %v216, 0.0
      %v225 = vmax.f32 %v217, 0.0
      %v226 = vmax.f32 %v218, 0.0
      %v227 = vmax.f32 %v219, 0.0
      %v228 = vpack.c.bf16 %v221, %v220
      %v229 = vpack.c.bf16 %v223, %v222
      %v230 = vpack.c.bf16 %v225, %v224
      %v231 = vpack.c.bf16 %v227, %v226
      %v232 = vld [vmem:[%s1] sm:$0xf]
      %v233 = vld [vmem:[%s1 + $0x4] sm:$0xf]
      %v234 = vld [vmem:[%s1 + $0x8] sm:$0xf]
      %v235 = vld [vmem:[%s1 + $0xc] sm:$0xf]
      %v236 = vld [vmem:[%s1 + $0x10] sm:$0xf]
      %v237 = vld [vmem:[%s1 + $0x14] sm:$0xf]
      %v238 = vld [vmem:[%s1 + $0x18] sm:$0xf]
      %v239 = vld [vmem:[%s1 + $0x1c] sm:$0xf]
      %v240 = vld [vmem:[%s1 + $0x20] sm:$0xf]
      %v241 = vld [vmem:[%s1 + $0x24] sm:$0xf]
      %v242 = vld [vmem:[%s1 + $0x28] sm:$0xf]
      %v243 = vld [vmem:[%s1 + $0x2c] sm:$0xf]
      %v244 = vld [vmem:[%s1 + $0x30] sm:$0xf]
      %v245 = vld [vmem:[%s1 + $0x34] sm:$0xf]
      %v246 = vld [vmem:[%s1 + $0x38] sm:$0xf]
      %v247 = vld [vmem:[%s1 + $0x3c] sm:$0xf]
      %v264 = vunpack.c.l.b16 %v232
      %v265 = vunpack.c.l.b16 %v233
      %v266 = vunpack.c.l.b16 %v234
      %v267 = vunpack.c.l.b16 %v235
      %v268 = vunpack.c.l.b16 %v236
      %v269 = vunpack.c.l.b16 %v237
      %v270 = vunpack.c.l.b16 %v238
      %v271 = vunpack.c.l.b16 %v239
      %v272 = vunpack.c.l.b16 %v240
      %v273 = vunpack.c.l.b16 %v241
      %v274 = vunpack.c.l.b16 %v242
      %v275 = vunpack.c.l.b16 %v243
      %v276 = vunpack.c.l.b16 %v244
      %v277 = vunpack.c.l.b16 %v245
      %v278 = vunpack.c.l.b16 %v246
      %v279 = vunpack.c.l.b16 %v247
      %v280 = vpack.c.b16 %v265, %v264
      %v281 = vpack.c.b16 %v267, %v266
      %v282 = vpack.c.b16 %v269, %v268
      %v283 = vpack.c.b16 %v271, %v270
      %v284 = vpack.c.b16 %v273, %v272
      %v285 = vpack.c.b16 %v275, %v274
      %v286 = vpack.c.b16 %v277, %v276
      %v287 = vpack.c.b16 %v279, %v278
      %296 = vmatpush.bf16.msra.mxu0 %v287
      %297 = vmatpush.bf16.msra.mxu0 %v286
      %298 = vmatpush.bf16.msra.mxu0 %v285
      %299 = vmatpush.bf16.msra.mxu0 %v284
      %300 = vmatpush.bf16.msra.mxu0 %v283
      %301 = vmatpush.bf16.msra.mxu0 %v282
      %302 = vmatpush.bf16.msra.mxu0 %v281
      %303 = vmatpush.bf16.msra.mxu0 %v280
      %304 = vmatmul.bf16.gmra.mxu0 %v228
      %v305 = vpop.f32.mrf.mxu0
      %v306 = vadd.f32 0.0, %v305
      %v307 = vpop.f32.mrf.mxu0
      %v308 = vadd.f32 0.0, %v307
      %309 = vmatmul.bf16.gmra.mxu0 %v229
      %v310 = vpop.f32.mrf.mxu0
      %v311 = vadd.f32 0.0, %v310
      %v312 = vpop.f32.mrf.mxu0
      %v313 = vadd.f32 0.0, %v312
      %314 = vmatmul.bf16.gmra.mxu0 %v230
      %v315 = vpop.f32.mrf.mxu0
      %v316 = vadd.f32 0.0, %v315
      %v317 = vpop.f32.mrf.mxu0
      %v318 = vadd.f32 0.0, %v317
      %319 = vmatmul.bf16.gmra.mxu0 %v231
      %v320 = vpop.f32.mrf.mxu0
      %v321 = vadd.f32 0.0, %v320
      %v322 = vpop.f32.mrf.mxu0
      %v323 = vadd.f32 0.0, %v322
      %324 = vdwg.mxu0
      %v325 = vpack.c.bf16 %v306, %v306
      %v326 = vpack.c.bf16 %v308, %v308
      %v327 = vpack.c.bf16 %v311, %v311
      %v328 = vpack.c.bf16 %v313, %v313
      %v329 = vpack.c.bf16 %v316, %v316
      %v330 = vpack.c.bf16 %v318, %v318
      %v331 = vpack.c.bf16 %v321, %v321
      %v332 = vpack.c.bf16 %v323, %v323
      %vm333 = vcmask 519168
      %334 = vst.msk [vmem:[%s172] sm:$0xf] %vm333, %v325
      %335 = vst.msk [vmem:[%s172 + $0x4] sm:$0xf] %vm333, %v326
      %336 = vst.msk [vmem:[%s172 + $0x8] sm:$0xf] %vm333, %v327
      %337 = vst.msk [vmem:[%s172 + $0xc] sm:$0xf] %vm333, %v328
      %338 = vst.msk [vmem:[%s172 + $0x10] sm:$0xf] %vm333, %v329
      %339 = vst.msk [vmem:[%s172 + $0x14] sm:$0xf] %vm333, %v330
      %340 = vst.msk [vmem:[%s172 + $0x18] sm:$0xf] %vm333, %v331
      %341 = vst.msk [vmem:[%s172 + $0x1c] sm:$0xf] %vm333, %v332
      %s342 = smul.u32 8, %s14
      %p343 = scmp.lt.s32.totalorder %s342, 15
      %s344 = scalar_select %p343, %s342, 15
      %s345 = smul.addr %s344, 4
      %s346 = scalar_lea.vmem %s3, %s345
      // Predicated region
      $region33: #{densenet_forward.16} parent=31 // pred_check
        %p347 = pneg %p100
      $region34: #{densenet_forward.16} parent=31 // pred_check_branch
        %349 = sbr.rel (%p347) target = $region36
      $region35: #{densenet_forward.16} parent=31 // pred_region
        %s350 = smul.u32 8, %s14
      $region36: #{densenet_forward.16} parent=31 // pred_fallthru
        _
    $region32: #{densenet_forward.16} parent=5 // pred_fallthru
      _
    %p351 = scmp.le.s32.totalorder 2, %s9
    // Predicated region
    $region37: #{densenet_forward.16} parent=5 // pred_check
      %p352 = pneg %p351
    $region38: #{densenet_forward.16} parent=5 // pred_check_branch
      %354 = sbr.rel (%p352) target = $region40
    $region39: #{densenet_forward.16} parent=5 // pred_region
      %s355 = ssub.s32 %s9, 2
      // Predicated region
      $region41: #{densenet_forward.16} parent=39 // pred_check
        %p356 = pneg %p106
      $region42: #{densenet_forward.16} parent=39 // pred_check_branch
        %358 = sbr.rel (%p356) target = $region44
      $region43: #{densenet_forward.16} parent=39 // pred_region
        %s359 = smul.u32 8, %s15
        %p360 = scmp.lt.s32.totalorder %s359, 15
        %s361 = scalar_select %p360, %s359, 15
        %s362 = smul.addr %s361, 4
        %s363 = scalar_lea.vmem %s3, %s362
      $region44: #{densenet_forward.16} parent=39 // pred_fallthru
        _
    $region40: #{densenet_forward.16} parent=5 // pred_fallthru
      _
  $region6: #{densenet_forward.16} parent=0 // loop_footer
    %s13 = sadd.s32 1, %s9
  $region7: #{densenet_forward.16} parent=0 // loop_footer_branch
    %8 = sbr.rel target = $region3
  $region8: #{densenet_forward.16} parent=0 // loop_exit
    _

// kernel: densenet_forward.13
$region0: #{densenet_forward.13}
  #allocation0 [shape = 'u32[]', space=smem, size = 0x4, offset = 0x4, fixed_abs, tag = 'smem constant byte address 0x4 - core index']
  #allocation1 [shape = 'u32[72,128]{1,0:T(1,128)}', space=vmem, size = 0x9000, scoped, tag = 'internal scratch']
  %s0 = inlined_call_operand.vmem [shape: bf16[2,100,128], index: 0, kind: input, shape index: {}]
  %s1 = inlined_call_operand.vmem [shape: bf16[128,288], index: 1, kind: input, shape index: {}]
  %s2 = inlined_call_operand.vmem [shape: bf16[2,8,8,32], index: 2, kind: output, shape index: {}]
  %s3 = sld [smem:[#allocation0]]
  $region41: #{densenet_forward.13} parent=0
    _
  %s5 = ssub.s32 1, %s3
  %s6 = scalar_select 0, %s5, %s3
  loop: start=0, step=1, limit=4
  $region2: #{densenet_forward.13} parent=0 // loop_pre_header
    _
  $region3: #{densenet_forward.13} parent=0 // loop_header
    %s8 = sphi 0, %s12
    %p9 = scmp.ge.s32.totalorder %s8, 4
    %s18 = sphi 0, %s20
    %s21 = sphi 0, %s18
    %s22 = sphi 0, %s21
    %s38 = sphi 0, %s22
    %s42 = sphi 0, %s42
    %s44 = sphi 0, %s42
    %s45 = sphi 0, %s44
    %s59 = sphi 0, %s45
    %s65 = sphi 0, %s67
    %s68 = sphi 0, %s65
    %s69 = sphi 0, %s68
    %s85 = sphi 0, %s69
  $region4: #{densenet_forward.13} parent=0 // loop_header_branch
    %11 = sbr.rel (%p9) target = $region8
  $region5: #{densenet_forward.13} parent=0 // loop_body
    %s13 = ssub.s32 %s8, 1
    %s14 = ssub.s32 %s8, 2
    %s15 = sadd.s32 %s8, 1
    %s16 = ssub.s32 %s8, %s15
    %p17 = scmp.eq.s32.totalorder %s16, 0
    %s19 = sadd.s32 %s18, 1
    %s20 = scalar_select %p17, %s18, %s19
    %p23 = pneg %p17
    %p24 = scmp.eq.s32.totalorder %s8, 1
    %p25 = por %p23, %p24
    %p26 = scmp.ne.s32.totalorder %s18, %s21
    %p27 = scmp.eq.s32.totalorder %s8, 0
    %p28 = por %p26, %p27
    %p29 = scmp.ne.s32.totalorder %s18, %s21
    %p30 = scmp.eq.s32.totalorder %s13, 1
    %p31 = por %p29, %p30
    %p32 = scmp.ne.s32.totalorder %s21, %s22
    %p33 = scmp.eq.s32.totalorder %s13, 0
    %p34 = por %p32, %p33
    %p35 = scmp.ne.s32.totalorder %s21, %s22
    %p36 = scmp.eq.s32.totalorder %s14, 1
    %p37 = por %p35, %p36
    %p39 = scmp.ne.s32.totalorder %s22, %s38
    %p40 = scmp.eq.s32.totalorder %s14, 0
    %p41 = por %p39, %p40
    %s43 = sadd.s32 %s42, 1
    %p46 = scmp.eq.s32.totalorder %s8, 1
    %p47 = scmp.ne.s32.totalorder %s42, %s44
    %p48 = scmp.eq.s32.totalorder %s8, 0
    %p49 = por %p47, %p48
    %p50 = scmp.ne.s32.totalorder %s42, %s44
    %p51 = scmp.eq.s32.totalorder %s13, 1
    %p52 = por %p50, %p51
    %p53 = scmp.ne.s32.totalorder %s44, %s45
    %p54 = scmp.eq.s32.totalorder %s13, 0
    %p55 = por %p53, %p54
    %p56 = scmp.ne.s32.totalorder %s44, %s45
    %p57 = scmp.eq.s32.totalorder %s14, 1
    %p58 = por %p56, %p57
    %p60 = scmp.ne.s32.totalorder %s45, %s59
    %p61 = scmp.eq.s32.totalorder %s14, 0
    %p62 = por %p60, %p61
    %s63 = ssub.s32 %s8, %s15
    %p64 = scmp.eq.s32.totalorder %s63, 0
    %s66 = sadd.s32 %s65, 1
    %s67 = scalar_select %p64, %s65, %s66
    %p70 = pneg %p64
    %p71 = scmp.eq.s32.totalorder %s8, 1
    %p72 = por %p70, %p71
    %p73 = scmp.ne.s32.totalorder %s65, %s68
    %p74 = scmp.eq.s32.totalorder %s8, 0
    %p75 = por %p73, %p74
    %p76 = scmp.ne.s32.totalorder %s65, %s68
    %p77 = scmp.eq.s32.totalorder %s13, 1
    %p78 = por %p76, %p77
    %p79 = scmp.ne.s32.totalorder %s68, %s69
    %p80 = scmp.eq.s32.totalorder %s13, 0
    %p81 = por %p79, %p80
    %p82 = scmp.ne.s32.totalorder %s68, %s69
    %p83 = scmp.eq.s32.totalorder %s14, 1
    %p84 = por %p82, %p83
    %p86 = scmp.ne.s32.totalorder %s69, %s85
    %p87 = scmp.eq.s32.totalorder %s14, 0
    %p88 = por %p86, %p87
    %p89 = scmp.le.s32.totalorder 1, %s8
    %p90 = scmp.lt.s32.totalorder %s8, 3
    %p91 = pnand %p89, %p90
    %p92 = pneg %p91
    // Predicated region
    $region9: #{densenet_forward.13} parent=5 // pred_check
      _
    $region10: #{densenet_forward.13} parent=5 // pred_check_branch
      %94 = sbr.rel (%p91) target = $region12
    $region11: #{densenet_forward.13} parent=5 // pred_region
      %s95 = ssub.s32 %s8, 1
      // Predicated region
      $region13: #{densenet_forward.13} parent=11 // pred_check
        %p96 = pneg %p55
      $region14: #{densenet_forward.13} parent=11 // pred_check_branch
        %98 = sbr.rel (%p96) target = $region16
      $region15: #{densenet_forward.13} parent=11 // pred_region
        _
      $region16: #{densenet_forward.13} parent=11 // pred_fallthru
        _
    $region12: #{densenet_forward.13} parent=5 // pred_fallthru
      _
    %p99 = scmp.lt.s32.totalorder %s8, 2
    // Predicated region
    $region17: #{densenet_forward.13} parent=5 // pred_check
      %p100 = pneg %p99
    $region18: #{densenet_forward.13} parent=5 // pred_check_branch
      %102 = sbr.rel (%p100) target = $region20
    $region19: #{densenet_forward.13} parent=5 // pred_region
      // Predicated region
      $region21: #{densenet_forward.13} parent=19 // pred_check
        %p103 = pneg %p28
      $region22: #{densenet_forward.13} parent=19 // pred_check_branch
        %105 = sbr.rel (%p103) target = $region24
      $region23: #{densenet_forward.13} parent=19 // pred_region
        %p106 = scmp.lt.s32.totalorder %s8, 1
        %s107 = scalar_select %p106, %s8, 1
        %s108 = smul.addr %s107, 13
        %s109 = smul.addr %s108, 4
        %s110 = scalar_lea.vmem %s0, %s109
      $region24: #{densenet_forward.13} parent=19 // pred_fallthru
        _
    $region20: #{densenet_forward.13} parent=5 // pred_fallthru
      _
    %p111 = scmp.le.s32.totalorder 1, %s8
    %p112 = scmp.lt.s32.totalorder %s8, 3
    %p113 = pnand %p111, %p112
    %p114 = pneg %p113
    // Predicated region
    $region25: #{densenet_forward.13} parent=5 // pred_check
      _
    $region26: #{densenet_forward.13} parent=5 // pred_check_branch
      %116 = sbr.rel (%p113) target = $region28
    $region27: #{densenet_forward.13} parent=5 // pred_region
      %s117 = ssub.s32 %s8, 1
      %p118 = scmp.lt.s32.totalorder %s13, 1
      %s119 = scalar_select %p118, %s13, 1
      %s120 = smul.addr %s119, 13
      %s121 = smul.addr %s120, 4
      %s122 = scalar_lea.vmem %s0, %s121
      %p123 = pneg %p34
      %p124 = pneg %p31
      %p125 = pneg %p55
      %p126 = pneg %p52
      %p127 = pneg %p81
      %p128 = pneg %p78
      %p129 = scmp.lt.s32.totalorder %s13, 1
      %s130 = scalar_select %p129, %s13, 1
      %s131 = smul.addr %s130, 8
      %s132 = smul.addr %s131, 4
      %s133 = scalar_lea.vmem %s2, %s132
      %p134 = scmp.lt.s32.totalorder %s13, 1
      %s135 = scalar_select %p134, %s13, 1
      %s136 = smul.addr %s135, 13
      %s137 = smul.addr %s136, 4
      %s138 = scalar_lea.vmem %s0, %s137
      %p139 = scmp.lt.s32.totalorder %s13, 1
      %s140 = scalar_select %p139, %s13, 1
      %s141 = smul.addr %s140, 8
      %s142 = smul.addr %s141, 4
      %s143 = scalar_lea.vmem %s2, %s142
      %v144 = vld [vmem:[%s138] sm:$0xf]
      %v145 = vld [vmem:[%s138 + $0x4] sm:$0xf]
      %v146 = vld [vmem:[%s138 + $0x8] sm:$0xf]
      %v147 = vld [vmem:[%s138 + $0xc] sm:$0xf]
      %v148 = vld [vmem:[%s138 + $0x10] sm:$0xf]
      %v149 = vld [vmem:[%s138 + $0x14] sm:$0xf]
      %v150 = vld [vmem:[%s138 + $0x18] sm:$0xf]
      %v151 = vld [vmem:[%s138 + $0x1c] sm:$0xf]
      %v152 = vld [vmem:[%s138 + $0x20] sm:$0xf]
      %v153 = vld [vmem:[%s138 + $0x24] sm:$0xf]
      %v154 = vld [vmem:[%s138 + $0x28] sm:$0xf]
      %v155 = vld [vmem:[%s138 + $0x2c] sm:$0xf]
      %v156 = vld [vmem:[%s138 + $0x30] sm:$0x3]
      %v157 = vld [vmem:[%s1] sm:$0xff]
      %v158 = vld [vmem:[%s1 + $0x8] sm:$0xf]
      %v159 = vld [vmem:[%s1 + $0xc] sm:$0xff]
      %v160 = vld [vmem:[%s1 + $0x14] sm:$0xf]
      %v161 = vld [vmem:[%s1 + $0x18] sm:$0xff]
      %v162 = vld [vmem:[%s1 + $0x20] sm:$0xf]
      %v163 = vld [vmem:[%s1 + $0x24] sm:$0xff]
      %v164 = vld [vmem:[%s1 + $0x2c] sm:$0xf]
      %v165 = vld [vmem:[%s1 + $0x30] sm:$0xff]
      %v166 = vld [vmem:[%s1 + $0x38] sm:$0xf]
      %v167 = vld [vmem:[%s1 + $0x3c] sm:$0xff]
      %v168 = vld [vmem:[%s1 + $0x44] sm:$0xf]
      %v169 = vld [vmem:[%s1 + $0x48] sm:$0xff]
      %v170 = vld [vmem:[%s1 + $0x50] sm:$0xf]
      %v171 = vld [vmem:[%s1 + $0x54] sm:$0xff]
      %v172 = vld [vmem:[%s1 + $0x5c] sm:$0xf]
      %v173 = vld [vmem:[%s1 + $0x60] sm:$0xff]
      %v174 = vld [vmem:[%s1 + $0x68] sm:$0xf]
      %v175 = vld [vmem:[%s1 + $0x6c] sm:$0xff]
      %v176 = vld [vmem:[%s1 + $0x74] sm:$0xf]
      %v177 = vld [vmem:[%s1 + $0x78] sm:$0xff]
      %v178 = vld [vmem:[%s1 + $0x80] sm:$0xf]
      %v179 = vld [vmem:[%s1 + $0x84] sm:$0xff]
      %v180 = vld [vmem:[%s1 + $0x8c] sm:$0xf]
      %v181 = vld [vmem:[%s1 + $0x90] sm:$0xff]
      %v182 = vld [vmem:[%s1 + $0x98] sm:$0xf]
      %v183 = vld [vmem:[%s1 + $0x9c] sm:$0xff]
      %v184 = vld [vmem:[%s1 + $0xa4] sm:$0xf]
      %v185 = vld [vmem:[%s1 + $0xa8] sm:$0xff]
      %v186 = vld [vmem:[%s1 + $0xb0] sm:$0xf]
      %v187 = vld [vmem:[%s1 + $0xb4] sm:$0xff]
      %v188 = vld [vmem:[%s1 + $0xbc] sm:$0xf]
      %v202 = vunpack.c.l.b16 %v144
      %v203 = vunpack.c.l.b16 %v145
      %v204 = vunpack.c.l.b16 %v146
      %v205 = vunpack.c.l.b16 %v147
      %v206 = vunpack.c.l.b16 %v148
      %v207 = vunpack.c.l.b16 %v149
      %v208 = vunpack.c.l.b16 %v150
      %v209 = vunpack.c.l.b16 %v151
      %v210 = vunpack.c.l.b16 %v152
      %v211 = vunpack.c.l.b16 %v153
      %v212 = vunpack.c.l.b16 %v154
      %v213 = vunpack.c.l.b16 %v155
      %v214 = vunpack.c.l.b16 %v156
      %v215 = vpack.c.b16 %v203, %v202
      %v216 = vpack.c.b16 %v205, %v204
      %v217 = vpack.c.b16 %v207, %v206
      %v218 = vpack.c.b16 %v209, %v208
      %v219 = vpack.c.b16 %v211, %v210
      %v220 = vpack.c.b16 %v213, %v212
      %v221 = vpack.c.b16 %v214, %v214
      %v261 = vunpack.c.l.b16 %v157
      %v262 = vunpack.c.h.b16 %v157
      %v263 = vunpack.c.l.b16 %v158
      %v264 = vunpack.c.l.b16 %v159
      %v265 = vunpack.c.h.b16 %v159
      %v266 = vunpack.c.l.b16 %v160
      %v267 = vunpack.c.l.b16 %v161
      %v268 = vunpack.c.h.b16 %v161
      %v269 = vunpack.c.l.b16 %v162
      %v270 = vunpack.c.l.b16 %v163
      %v271 = vunpack.c.h.b16 %v163
      %v272 = vunpack.c.l.b16 %v164
      %v273 = vunpack.c.l.b16 %v165
      %v274 = vunpack.c.h.b16 %v165
      %v275 = vunpack.c.l.b16 %v166
      %v276 = vunpack.c.l.b16 %v167
      %v277 = vunpack.c.h.b16 %v167
      %v278 = vunpack.c.l.b16 %v168
      %v279 = vunpack.c.l.b16 %v169
      %v280 = vunpack.c.h.b16 %v169
      %v281 = vunpack.c.l.b16 %v170
      %v282 = vunpack.c.l.b16 %v171
      %v283 = vunpack.c.h.b16 %v171
      %v284 = vunpack.c.l.b16 %v172
      %v285 = vunpack.c.l.b16 %v173
      %v286 = vunpack.c.h.b16 %v173
      %v287 = vunpack.c.l.b16 %v174
      %v288 = vunpack.c.l.b16 %v175
      %v289 = vunpack.c.h.b16 %v175
      %v290 = vunpack.c.l.b16 %v176
      %v291 = vunpack.c.l.b16 %v177
      %v292 = vunpack.c.h.b16 %v177
      %v293 = vunpack.c.l.b16 %v178
      %v294 = vunpack.c.l.b16 %v179
      %v295 = vunpack.c.h.b16 %v179
      %v296 = vunpack.c.l.b16 %v180
      %v297 = vunpack.c.l.b16 %v181
      %v298 = vunpack.c.h.b16 %v181
      %v299 = vunpack.c.l.b16 %v182
      %v300 = vunpack.c.l.b16 %v183
      %v301 = vunpack.c.h.b16 %v183
      %v302 = vunpack.c.l.b16 %v184
      %v303 = vunpack.c.l.b16 %v185
      %v304 = vunpack.c.h.b16 %v185
      %v305 = vunpack.c.l.b16 %v186
      %v306 = vunpack.c.l.b16 %v187
      %v307 = vunpack.c.h.b16 %v187
      %v308 = vunpack.c.l.b16 %v188
      %v309 = vpack.c.b16 %v264, %v261
      %v310 = vpack.c.b16 %v265, %v262
      %v311 = vpack.c.b16 %v266, %v263
      %v312 = vpack.c.b16 %v270, %v267
      %v313 = vpack.c.b16 %v271, %v268
      %v314 = vpack.c.b16 %v272, %v269
      %v315 = vpack.c.b16 %v276, %v273
      %v316 = vpack.c.b16 %v277, %v274
      %v317 = vpack.c.b16 %v278, %v275
      %v318 = vpack.c.b16 %v282, %v279
      %v319 = vpack.c.b16 %v283, %v280
      %v320 = vpack.c.b16 %v284, %v281
      %v321 = vpack.c.b16 %v288, %v285
      %v322 = vpack.c.b16 %v289, %v286
      %v323 = vpack.c.b16 %v290, %v287
      %v324 = vpack.c.b16 %v294, %v291
      %v325 = vpack.c.b16 %v295, %v292
      %v326 = vpack.c.b16 %v296, %v293
      %v327 = vpack.c.b16 %v300, %v297
      %v328 = vpack.c.b16 %v301, %v298
      %v329 = vpack.c.b16 %v302, %v299
      %v330 = vpack.c.b16 %v306, %v303
      %v331 = vpack.c.b16 %v307, %v304
      %v332 = vpack.c.b16 %v308, %v305
      %357 = vmatpush.bf16.msra.mxu0 %v330
      %358 = vmatpush.bf16.msra.mxu0 %v327
      %359 = vmatpush.bf16.msra.mxu0 %v324
      %360 = vmatpush.bf16.msra.mxu0 %v321
      %361 = vmatpush.bf16.msra.mxu0 %v318
      %362 = vmatpush.bf16.msra.mxu0 %v315
      %363 = vmatpush.bf16.msra.mxu0 %v312
      %364 = vmatpush.bf16.msra.mxu0 %v309
      %365 = vmatmul.bf16.gmra.mxu0 %v215
      %v366 = vpop.f32.mrf.mxu0
      %v367 = vadd.f32 0.0, %v366
      %v368 = vpop.f32.mrf.mxu0
      %v369 = vadd.f32 0.0, %v368
      %370 = vmatmul.bf16.gmra.mxu0 %v216
      %v371 = vpop.f32.mrf.mxu0
      %v372 = vadd.f32 0.0, %v371
      %v373 = vpop.f32.mrf.mxu0
      %v374 = vadd.f32 0.0, %v373
      %375 = vmatmul.bf16.gmra.mxu0 %v217
      %v376 = vpop.f32.mrf.mxu0
      %v377 = vadd.f32 0.0, %v376
      %v378 = vpop.f32.mrf.mxu0
      %v379 = vadd.f32 0.0, %v378
      %380 = vmatmul.bf16.gmra.mxu0 %v218
      %v381 = vpop.f32.mrf.mxu0
      %v382 = vadd.f32 0.0, %v381
      %v383 = vpop.f32.mrf.mxu0
      %v384 = vadd.f32 0.0, %v383
      %385 = vmatmul.bf16.gmra.mxu0 %v219
      %v386 = vpop.f32.mrf.mxu0
      %v387 = vadd.f32 0.0, %v386
      %v388 = vpop.f32.mrf.mxu0
      %v389 = vadd.f32 0.0, %v388
      %390 = vmatmul.bf16.gmra.mxu0 %v220
      %v391 = vpop.f32.mrf.mxu0
      %v392 = vadd.f32 0.0, %v391
      %v393 = vpop.f32.mrf.mxu0
      %394 = vmatmul.bf16.gmra.mxu0 %v221
      %v395 = vpop.f32.mrf.mxu0
      %v396 = vpop.f32.mrf.mxu0
      %397 = vdwg.mxu0
      %398 = vmatpush.bf16.msra.mxu0 %v331
      %399 = vmatpush.bf16.msra.mxu0 %v328
      %400 = vmatpush.bf16.msra.mxu0 %v325
      %401 = vmatpush.bf16.msra.mxu0 %v322
      %402 = vmatpush.bf16.msra.mxu0 %v319
      %403 = vmatpush.bf16.msra.mxu0 %v316
      %404 = vmatpush.bf16.msra.mxu0 %v313
      %405 = vmatpush.bf16.msra.mxu0 %v310
      %406 = vmatmul.bf16.gmra.mxu0 %v215
      %v407 = vpop.f32.mrf.mxu0
      %v408 = vpop.f32.mrf.mxu0
      %v409 = vadd.f32 0.0, %v408
      %410 = vmatmul.bf16.gmra.mxu0 %v216
      %v411 = vpop.f32.mrf.mxu0
      %v412 = vadd.f32 0.0, %v411
      %v413 = vpop.f32.mrf.mxu0
      %v414 = vadd.f32 0.0, %v413
      %415 = vmatmul.bf16.gmra.mxu0 %v217
      %v416 = vpop.f32.mrf.mxu0
      %v417 = vadd.f32 0.0, %v416
      %v418 = vpop.f32.mrf.mxu0
      %v419 = vadd.f32 0.0, %v418
      %420 = vmatmul.bf16.gmra.mxu0 %v218
      %v421 = vpop.f32.mrf.mxu0
      %v422 = vadd.f32 0.0, %v421
      %v423 = vpop.f32.mrf.mxu0
      %v424 = vadd.f32 0.0, %v423
      %425 = vmatmul.bf16.gmra.mxu0 %v219
      %v426 = vpop.f32.mrf.mxu0
      %v427 = vadd.f32 0.0, %v426
      %v428 = vpop.f32.mrf.mxu0
      %v429 = vadd.f32 0.0, %v428
      %430 = vmatmul.bf16.gmra.mxu0 %v220
      %v431 = vpop.f32.mrf.mxu0
      %v432 = vadd.f32 0.0, %v431
      %v433 = vpop.f32.mrf.mxu0
      %v434 = vadd.f32 0.0, %v433
      %435 = vmatmul.bf16.gmra.mxu0 %v221
      %v436 = vpop.f32.mrf.mxu0
      %v437 = vadd.f32 0.0, %v436
      %v438 = vpop.f32.mrf.mxu0
      %439 = vdwg.mxu0
      %440 = vmatpush.bf16.msra.mxu0 %v332
      %441 = vmatpush.bf16.msra.mxu0 %v329
      %442 = vmatpush.bf16.msra.mxu0 %v326
      %443 = vmatpush.bf16.msra.mxu0 %v323
      %444 = vmatpush.bf16.msra.mxu0 %v320
      %445 = vmatpush.bf16.msra.mxu0 %v317
      %446 = vmatpush.bf16.msra.mxu0 %v314
      %447 = vmatpush.bf16.msra.mxu0 %v311
      %448 = vmatmul.bf16.gmra.mxu0 %v215
      %v449 = vpop.f32.mrf.mxu0
      %v450 = vpop.f32.mrf.mxu0
      %451 = vmatmul.bf16.gmra.mxu0 %v216
      %v452 = vpop.f32.mrf.mxu0
      %v453 = vadd.f32 0.0, %v452
      %v454 = vpop.f32.mrf.mxu0
      %v455 = vadd.f32 0.0, %v454
      %456 = vmatmul.bf16.gmra.mxu0 %v217
      %v457 = vpop.f32.mrf.mxu0
      %v458 = vadd.f32 0.0, %v457
      %v459 = vpop.f32.mrf.mxu0
      %v460 = vadd.f32 0.0, %v459
      %461 = vmatmul.bf16.gmra.mxu0 %v218
      %v462 = vpop.f32.mrf.mxu0
      %v463 = vadd.f32 0.0, %v462
      %v464 = vpop.f32.mrf.mxu0
      %v465 = vadd.f32 0.0, %v464
      %466 = vmatmul.bf16.gmra.mxu0 %v219
      %v467 = vpop.f32.mrf.mxu0
      %v468 = vadd.f32 0.0, %v467
      %v469 = vpop.f32.mrf.mxu0
      %v470 = vadd.f32 0.0, %v469
      %471 = vmatmul.bf16.gmra.mxu0 %v220
      %v472 = vpop.f32.mrf.mxu0
      %v473 = vadd.f32 0.0, %v472
      %v474 = vpop.f32.mrf.mxu0
      %v475 = vadd.f32 0.0, %v474
      %476 = vmatmul.bf16.gmra.mxu0 %v221
      %v477 = vpop.f32.mrf.mxu0
      %v478 = vadd.f32 0.0, %v477
      %v479 = vpop.f32.mrf.mxu0
      %480 = vdwg.mxu0
      %v481 = vadd.f32 %v367, 0.0
      %v482 = vadd.f32 %v369, 0.0
      %v483 = vadd.f32 %v372, 0.0
      %v484 = vadd.f32 %v374, 0.0
      %v485 = vadd.f32 %v377, 0.0
      %v486 = vadd.f32 %v379, 0.0
      %v487 = vadd.f32 %v382, 0.0
      %v488 = vadd.f32 %v384, 0.0
      %v489 = vadd.f32 %v387, 0.0
      %v490 = vadd.f32 %v389, 0.0
      %vm501 = vcmask 1046528
      %v502 = vrot.slane %v367, 1
      %v503 = vrot.slane %v369, 1
      %v504 = vsel %vm501, %v502, %v503
      %v505 = vrot.slane %v372, 1
      %v506 = vsel %vm501, %v503, %v505
      %v507 = vrot.slane %v374, 1
      %v508 = vsel %vm501, %v505, %v507
      %v509 = vrot.slane %v377, 1
      %v510 = vsel %vm501, %v507, %v509
      %v511 = vrot.slane %v379, 1
      %v512 = vsel %vm501, %v509, %v511
      %v513 = vrot.slane %v382, 1
      %v514 = vsel %vm501, %v511, %v513
      %v515 = vrot.slane %v384, 1
      %v516 = vsel %vm501, %v513, %v515
      %v517 = vrot.slane %v387, 1
      %v518 = vsel %vm501, %v515, %v517
      %v519 = vrot.slane %v389, 1
      %v520 = vsel %vm501, %v517, %v519
      %521 = vrot.lane.b32.xlu0 %v504, 96
      %v522 = vpop.permute.xlu0 %521
      %523 = vrot.lane.b32.xlu0 %v506, 96
      %v524 = vpop.permute.xlu0 %523
      %525 = vrot.lane.b32.xlu0 %v508, 96
      %v526 = vpop.permute.xlu0 %525
      %527 = vrot.lane.b32.xlu0 %v510, 96
      %v528 = vpop.permute.xlu0 %527
      %529 = vrot.lane.b32.xlu0 %v512, 96
      %v530 = vpop.permute.xlu0 %529
      %531 = vrot.lane.b32.xlu0 %v514, 96
      %v532 = vpop.permute.xlu0 %531
      %533 = vrot.lane.b32.xlu0 %v516, 96
      %v534 = vpop.permute.xlu0 %533
      %535 = vrot.lane.b32.xlu0 %v518, 96
      %v536 = vpop.permute.xlu0 %535
      %537 = vrot.lane.b32.xlu0 %v520, 96
      %v538 = vpop.permute.xlu0 %537
      %539 = vrot.lane.b32.xlu0 %v519, 96
      %v540 = vpop.permute.xlu0 %539
      %v551 = vadd.f32 %v481, %v522
      %v552 = vadd.f32 %v482, %v524
      %v553 = vadd.f32 %v483, %v526
      %v554 = vadd.f32 %v484, %v528
      %v555 = vadd.f32 %v485, %v530
      %v556 = vadd.f32 %v486, %v532
      %v557 = vadd.f32 %v487, %v534
      %v558 = vadd.f32 %v488, %v536
      %v559 = vadd.f32 %v489, %v538
      %v560 = vadd.f32 %v490, %v540
      %vm561 = vcmask 1045504
      %v562 = vrot.slane %v367, 2
      %v563 = vrot.slane %v369, 2
      %v564 = vsel %vm561, %v562, %v563
      %v565 = vrot.slane %v372, 2
      %v566 = vsel %vm561, %v563, %v565
      %v567 = vrot.slane %v374, 2
      %v568 = vsel %vm561, %v565, %v567
      %v569 = vrot.slane %v377, 2
      %v570 = vsel %vm561, %v567, %v569
      %v571 = vrot.slane %v379, 2
      %v572 = vsel %vm561, %v569, %v571
      %v573 = vrot.slane %v382, 2
      %v574 = vsel %vm561, %v571, %v573
      %v575 = vrot.slane %v384, 2
      %v576 = vsel %vm561, %v573, %v575
      %v577 = vrot.slane %v387, 2
      %v578 = vsel %vm561, %v575, %v577
      %v579 = vrot.slane %v389, 2
      %v580 = vsel %vm561, %v577, %v579
      %581 = vrot.lane.b32.xlu0 %v564, 64
      %v582 = vpop.permute.xlu0 %581
      %583 = vrot.lane.b32.xlu0 %v566, 64
      %v584 = vpop.permute.xlu0 %583
      %585 = vrot.lane.b32.xlu0 %v568, 64
      %v586 = vpop.permute.xlu0 %585
      %587 = vrot.lane.b32.xlu0 %v570, 64
      %v588 = vpop.permute.xlu0 %587
      %589 = vrot.lane.b32.xlu0 %v572, 64
      %v590 = vpop.permute.xlu0 %589
      %591 = vrot.lane.b32.xlu0 %v574, 64
      %v592 = vpop.permute.xlu0 %591
      %593 = vrot.lane.b32.xlu0 %v576, 64
      %v594 = vpop.permute.xlu0 %593
      %595 = vrot.lane.b32.xlu0 %v578, 64
      %v596 = vpop.permute.xlu0 %595
      %597 = vrot.lane.b32.xlu0 %v580, 64
      %v598 = vpop.permute.xlu0 %597
      %599 = vrot.lane.b32.xlu0 %v579, 64
      %v600 = vpop.permute.xlu0 %599
      %v611 = vadd.f32 %v551, %v582
      %v612 = vadd.f32 %v552, %v584
      %v613 = vadd.f32 %v553, %v586
      %v614 = vadd.f32 %v554, %v588
      %v615 = vadd.f32 %v555, %v590
      %v616 = vadd.f32 %v556, %v592
      %v617 = vadd.f32 %v557, %v594
      %v618 = vadd.f32 %v558, %v596
      %v619 = vadd.f32 %v559, %v598
      %v620 = vadd.f32 %v560, %v600
      %v622 = vrot.slane %v392, 2
      %v623 = vsel %vm561, %v579, %v622
      %624 = vrot.lane.b32.xlu0 %v566, 32
      %v625 = vpop.permute.xlu0 %624
      %626 = vrot.lane.b32.xlu0 %v568, 32
      %v627 = vpop.permute.xlu0 %626
      %628 = vrot.lane.b32.xlu0 %v570, 32
      %v629 = vpop.permute.xlu0 %628
      %630 = vrot.lane.b32.xlu0 %v572, 32
      %v631 = vpop.permute.xlu0 %630
      %632 = vrot.lane.b32.xlu0 %v574, 32
      %v633 = vpop.permute.xlu0 %632
      %634 = vrot.lane.b32.xlu0 %v576, 32
      %v635 = vpop.permute.xlu0 %634
      %636 = vrot.lane.b32.xlu0 %v578, 32
      %v637 = vpop.permute.xlu0 %636
      %638 = vrot.lane.b32.xlu0 %v580, 32
      %v639 = vpop.permute.xlu0 %638
      %640 = vrot.lane.b32.xlu0 %v623, 32
      %v641 = vpop.permute.xlu0 %640
      %642 = vrot.lane.b32.xlu0 %v622, 32
      %v643 = vpop.permute.xlu0 %642
      %v654 = vadd.f32 %v611, %v625
      %v655 = vadd.f32 %v612, %v627
      %v656 = vadd.f32 %v613, %v629
      %v657 = vadd.f32 %v614, %v631
      %v658 = vadd.f32 %v615, %v633
      %v659 = vadd.f32 %v616, %v635
      %v660 = vadd.f32 %v617, %v637
      %v661 = vadd.f32 %v618, %v639
      %v662 = vadd.f32 %v619, %v641
      %v663 = vadd.f32 %v620, %v643
      %vm675 = vcmask 1044480
      %v676 = vrot.slane %v409, 3
      %v677 = vrot.slane %v412, 3
      %v678 = vsel %vm675, %v676, %v677
      %v679 = vrot.slane %v414, 3
      %v680 = vsel %vm675, %v677, %v679
      %v681 = vrot.slane %v417, 3
      %v682 = vsel %vm675, %v679, %v681
      %v683 = vrot.slane %v419, 3
      %v684 = vsel %vm675, %v681, %v683
      %v685 = vrot.slane %v422, 3
      %v686 = vsel %vm675, %v683, %v685
      %v687 = vrot.slane %v424, 3
      %v688 = vsel %vm675, %v685, %v687
      %v689 = vrot.slane %v427, 3
      %v690 = vsel %vm675, %v687, %v689
      %v691 = vrot.slane %v429, 3
      %v692 = vsel %vm675, %v689, %v691
      %v693 = vrot.slane %v432, 3
      %v694 = vsel %vm675, %v691, %v693
      %v695 = vrot.slane %v434, 3
      %v696 = vsel %vm675, %v693, %v695
      %v707 = vadd.f32 %v654, %v678
      %v708 = vadd.f32 %v655, %v680
      %v709 = vadd.f32 %v656, %v682
      %v710 = vadd.f32 %v657, %v684
      %v711 = vadd.f32 %v658, %v686
      %v712 = vadd.f32 %v659, %v688
      %v713 = vadd.f32 %v660, %v690
      %v714 = vadd.f32 %v661, %v692
      %v715 = vadd.f32 %v662, %v694
      %v716 = vadd.f32 %v663, %v696
      %vm717 = vcmask 1043456
      %v718 = vrot.slane %v409, 4
      %v719 = vrot.slane %v412, 4
      %v720 = vsel %vm717, %v718, %v719
      %v721 = vrot.slane %v414, 4
      %v722 = vsel %vm717, %v719, %v721
      %v723 = vrot.slane %v417, 4
      %v724 = vsel %vm717, %v721, %v723
      %v725 = vrot.slane %v419, 4
      %v726 = vsel %vm717, %v723, %v725
      %v727 = vrot.slane %v422, 4
      %v728 = vsel %vm717, %v725, %v727
      %v729 = vrot.slane %v424, 4
      %v730 = vsel %vm717, %v727, %v729
      %v731 = vrot.slane %v427, 4
      %v732 = vsel %vm717, %v729, %v731
      %v733 = vrot.slane %v429, 4
      %v734 = vsel %vm717, %v731, %v733
      %v735 = vrot.slane %v432, 4
      %v736 = vsel %vm717, %v733, %v735
      %v737 = vrot.slane %v434, 4
      %v738 = vsel %vm717, %v735, %v737
      %739 = vrot.lane.b32.xlu0 %v720, 96
      %v740 = vpop.permute.xlu0 %739
      %741 = vrot.lane.b32.xlu0 %v722, 96
      %v742 = vpop.permute.xlu0 %741
      %743 = vrot.lane.b32.xlu0 %v724, 96
      %v744 = vpop.permute.xlu0 %743
      %745 = vrot.lane.b32.xlu0 %v726, 96
      %v746 = vpop.permute.xlu0 %745
      %747 = vrot.lane.b32.xlu0 %v728, 96
      %v748 = vpop.permute.xlu0 %747
      %749 = vrot.lane.b32.xlu0 %v730, 96
      %v750 = vpop.permute.xlu0 %749
      %751 = vrot.lane.b32.xlu0 %v732, 96
      %v752 = vpop.permute.xlu0 %751
      %753 = vrot.lane.b32.xlu0 %v734, 96
      %v754 = vpop.permute.xlu0 %753
      %755 = vrot.lane.b32.xlu0 %v736, 96
      %v756 = vpop.permute.xlu0 %755
      %757 = vrot.lane.b32.xlu0 %v738, 96
      %v758 = vpop.permute.xlu0 %757
      %v769 = vadd.f32 %v707, %v740
      %v770 = vadd.f32 %v708, %v742
      %v771 = vadd.f32 %v709, %v744
      %v772 = vadd.f32 %v710, %v746
      %v773 = vadd.f32 %v711, %v748
      %v774 = vadd.f32 %v712, %v750
      %v775 = vadd.f32 %v713, %v752
      %v776 = vadd.f32 %v714, %v754
      %v777 = vadd.f32 %v715, %v756
      %v778 = vadd.f32 %v716, %v758
      %v780 = vrot.slane %v437, 4
      %v781 = vsel %vm717, %v737, %v780
      %782 = vrot.lane.b32.xlu0 %v722, 64
      %v783 = vpop.permute.xlu0 %782
      %784 = vrot.lane.b32.xlu0 %v724, 64
      %v785 = vpop.permute.xlu0 %784
      %786 = vrot.lane.b32.xlu0 %v726, 64
      %v787 = vpop.permute.xlu0 %786
      %788 = vrot.lane.b32.xlu0 %v728, 64
      %v789 = vpop.permute.xlu0 %788
      %790 = vrot.lane.b32.xlu0 %v730, 64
      %v791 = vpop.permute.xlu0 %790
      %792 = vrot.lane.b32.xlu0 %v732, 64
      %v793 = vpop.permute.xlu0 %792
      %794 = vrot.lane.b32.xlu0 %v734, 64
      %v795 = vpop.permute.xlu0 %794
      %796 = vrot.lane.b32.xlu0 %v736, 64
      %v797 = vpop.permute.xlu0 %796
      %798 = vrot.lane.b32.xlu0 %v738, 64
      %v799 = vpop.permute.xlu0 %798
      %800 = vrot.lane.b32.xlu0 %v781, 64
      %v801 = vpop.permute.xlu0 %800
      %v812 = vadd.f32 %v769, %v783
      %v813 = vadd.f32 %v770, %v785
      %v814 = vadd.f32 %v771, %v787
      %v815 = vadd.f32 %v772, %v789
      %v816 = vadd.f32 %v773, %v791
      %v817 = vadd.f32 %v774, %v793
      %v818 = vadd.f32 %v775, %v795
      %v819 = vadd.f32 %v776, %v797
      %v820 = vadd.f32 %v777, %v799
      %v821 = vadd.f32 %v778, %v801
      %vm822 = vcmask 1042432
      %v823 = vrot.slane %v412, 5
      %v824 = vrot.slane %v414, 5
      %v825 = vsel %vm822, %v823, %v824
      %v826 = vrot.slane %v417, 5
      %v827 = vsel %vm822, %v824, %v826
      %v828 = vrot.slane %v419, 5
      %v829 = vsel %vm822, %v826, %v828
      %v830 = vrot.slane %v422, 5
      %v831 = vsel %vm822, %v828, %v830
      %v832 = vrot.slane %v424, 5
      %v833 = vsel %vm822, %v830, %v832
      %v834 = vrot.slane %v427, 5
      %v835 = vsel %vm822, %v832, %v834
      %v836 = vrot.slane %v429, 5
      %v837 = vsel %vm822, %v834, %v836
      %v838 = vrot.slane %v432, 5
      %v839 = vsel %vm822, %v836, %v838
      %v840 = vrot.slane %v434, 5
      %v841 = vsel %vm822, %v838, %v840
      %v842 = vrot.slane %v437, 5
      %v843 = vsel %vm822, %v840, %v842
      %844 = vrot.lane.b32.xlu0 %v825, 32
      %v845 = vpop.permute.xlu0 %844
      %846 = vrot.lane.b32.xlu0 %v827, 32
      %v847 = vpop.permute.xlu0 %846
      %848 = vrot.lane.b32.xlu0 %v829, 32
      %v849 = vpop.permute.xlu0 %848
      %850 = vrot.lane.b32.xlu0 %v831, 32
      %v851 = vpop.permute.xlu0 %850
      %852 = vrot.lane.b32.xlu0 %v833, 32
      %v853 = vpop.permute.xlu0 %852
      %854 = vrot.lane.b32.xlu0 %v835, 32
      %v855 = vpop.permute.xlu0 %854
      %856 = vrot.lane.b32.xlu0 %v837, 32
      %v857 = vpop.permute.xlu0 %856
      %858 = vrot.lane.b32.xlu0 %v839, 32
      %v859 = vpop.permute.xlu0 %858
      %860 = vrot.lane.b32.xlu0 %v841, 32
      %v861 = vpop.permute.xlu0 %860
      %862 = vrot.lane.b32.xlu0 %v843, 32
      %v863 = vpop.permute.xlu0 %862
      %v874 = vadd.f32 %v812, %v845
      %v875 = vadd.f32 %v813, %v847
      %v876 = vadd.f32 %v814, %v849
      %v877 = vadd.f32 %v815, %v851
      %v878 = vadd.f32 %v816, %v853
      %v879 = vadd.f32 %v817, %v855
      %v880 = vadd.f32 %v818, %v857
      %v881 = vadd.f32 %v819, %v859
      %v882 = vadd.f32 %v820, %v861
      %v883 = vadd.f32 %v821, %v863
      %vm895 = vcmask 1041408
      %v896 = vrot.slane %v453, 6
      %v897 = vrot.slane %v455, 6
      %v898 = vsel %vm895, %v896, %v897
      %v899 = vrot.slane %v458, 6
      %v900 = vsel %vm895, %v897, %v899
      %v901 = vrot.slane %v460, 6
      %v902 = vsel %vm895, %v899, %v901
      %v903 = vrot.slane %v463, 6
      %v904 = vsel %vm895, %v901, %v903
      %v905 = vrot.slane %v465, 6
      %v906 = vsel %vm895, %v903, %v905
      %v907 = vrot.slane %v468, 6
      %v908 = vsel %vm895, %v905, %v907
      %v909 = vrot.slane %v470, 6
      %v910 = vsel %vm895, %v907, %v909
      %v911 = vrot.slane %v473, 6
      %v912 = vsel %vm895, %v909, %v911
      %v913 = vrot.slane %v475, 6
      %v914 = vsel %vm895, %v911, %v913
      %v915 = vrot.slane %v478, 6
      %v916 = vsel %vm895, %v913, %v915
      %v927 = vadd.f32 %v874, %v898
      %v928 = vadd.f32 %v875, %v900
      %v929 = vadd.f32 %v876, %v902
      %v930 = vadd.f32 %v877, %v904
      %v931 = vadd.f32 %v878, %v906
      %v932 = vadd.f32 %v879, %v908
      %v933 = vadd.f32 %v880, %v910
      %v934 = vadd.f32 %v881, %v912
      %v935 = vadd.f32 %v882, %v914
      %v936 = vadd.f32 %v883, %v916
      %v937 = vpack.c.bf16 %v927, %v927
      %vm938 = vcmask 257024
      %939 = vst.msk [vmem:[%s143] sm:$0xf] %vm938, %v937
      %v940 = vpack.c.bf16 %v928, %v928
      %v941 = vpack.c.bf16 %v929, %v929
      %vm944 = vcmask 1042432
      %vm945 = vcmask 1046532
      %vm946 = vmor %vm944, %vm945
      %v947 = vrot.slane %v940, 5
      %v948 = vrot.slane %v947, 4
      %v949 = vrot.slane %v941, 5
      %v950 = vsel %vm946, %v948, %v949
      %s952 = scalar_lea.vmem %s143, 4
      %953 = vst.msk [vmem:[%s952] sm:$0xf] %vm938, %v950
      %v954 = vpack.c.bf16 %v930, %v930
      %vm956 = vcmask 1041408
      %vm957 = vcmask 1045508
      %vm958 = vmor %vm956, %vm957
      %v959 = vrot.slane %v941, 6
      %v960 = vrot.slane %v959, 4
      %v961 = vrot.slane %v954, 6
      %v962 = vsel %vm958, %v960, %v961
      %s964 = scalar_lea.vmem %s143, 8
      %965 = vst.msk [vmem:[%s964] sm:$0xf] %vm938, %v962
      %v966 = vpack.c.bf16 %v931, %v931
      %vm968 = vcmask 1040384
      %vm969 = vcmask 1044484
      %vm970 = vmor %vm968, %vm969
      %v971 = vrot.slane %v954, 7
      %v972 = vrot.slane %v971, 4
      %v973 = vrot.slane %v966, 7
      %v974 = vsel %vm970, %v972, %v973
      %s976 = scalar_lea.vmem %s143, 12
      %977 = vst.msk [vmem:[%s976] sm:$0xf] %vm938, %v974
      %v978 = vpack.c.bf16 %v932, %v932
      %s979 = scalar_lea.vmem %s143, 16
      %980 = vst.msk [vmem:[%s979] sm:$0xf] %vm938, %v978
      %v981 = vpack.c.bf16 %v933, %v933
      %v982 = vpack.c.bf16 %v934, %v934
      %v985 = vrot.slane %v981, 5
      %v986 = vrot.slane %v985, 4
      %v987 = vrot.slane %v982, 5
      %v988 = vsel %vm946, %v986, %v987
      %s990 = scalar_lea.vmem %s143, 20
      %991 = vst.msk [vmem:[%s990] sm:$0xf] %vm938, %v988
      %v992 = vpack.c.bf16 %v935, %v935
      %v994 = vrot.slane %v982, 6
      %v995 = vrot.slane %v994, 4
      %v996 = vrot.slane %v992, 6
      %v997 = vsel %vm958, %v995, %v996
      %s999 = scalar_lea.vmem %s143, 24
      %1000 = vst.msk [vmem:[%s999] sm:$0xf] %vm938, %v997
      %v1001 = vpack.c.bf16 %v936, %v936
      %v1003 = vrot.slane %v992, 7
      %v1004 = vrot.slane %v1003, 4
      %v1005 = vrot.slane %v1001, 7
      %v1006 = vsel %vm970, %v1004, %v1005
      %s1008 = scalar_lea.vmem %s143, 28
      %1009 = vst.msk [vmem:[%s1008] sm:$0xf] %vm938, %v1006
      %p1010 = scmp.lt.s32.totalorder %s13, 1
      %s1011 = scalar_select %p1010, %s13, 1
      %s1012 = smul.addr %s1011, 8
      %s1013 = smul.addr %s1012, 4
      %s1014 = scalar_lea.vmem %s2, %s1013
      // Predicated region
      $region29: #{densenet_forward.13} parent=27 // pred_check
        %p1015 = pneg %p78
      $region30: #{densenet_forward.13} parent=27 // pred_check_branch
        %1017 = sbr.rel (%p1015) target = $region32
      $region31: #{densenet_forward.13} parent=27 // pred_region
        _
      $region32: #{densenet_forward.13} parent=27 // pred_fallthru
        _
    $region28: #{densenet_forward.13} parent=5 // pred_fallthru
      _
    %p1018 = scmp.le.s32.totalorder 2, %s8
    // Predicated region
    $region33: #{densenet_forward.13} parent=5 // pred_check
      %p1019 = pneg %p1018
    $region34: #{densenet_forward.13} parent=5 // pred_check_branch
      %1021 = sbr.rel (%p1019) target = $region36
    $region35: #{densenet_forward.13} parent=5 // pred_region
      %s1022 = ssub.s32 %s8, 2
      // Predicated region
      $region37: #{densenet_forward.13} parent=35 // pred_check
        %p1023 = pneg %p84
      $region38: #{densenet_forward.13} parent=35 // pred_check_branch
        %1025 = sbr.rel (%p1023) target = $region40
      $region39: #{densenet_forward.13} parent=35 // pred_region
        %p1026 = scmp.lt.s32.totalorder %s14, 1
        %s1027 = scalar_select %p1026, %s14, 1
        %s1028 = smul.addr %s1027, 8
        %s1029 = smul.addr %s1028, 4
        %s1030 = scalar_lea.vmem %s2, %s1029
      $region40: #{densenet_forward.13} parent=35 // pred_fallthru
        _
    $region36: #{densenet_forward.13} parent=5 // pred_fallthru
      _
  $region6: #{densenet_forward.13} parent=0 // loop_footer
    %s12 = sadd.s32 1, %s8
  $region7: #{densenet_forward.13} parent=0 // loop_footer_branch
    %7 = sbr.rel target = $region3
  $region8: #{densenet_forward.13} parent=0 // loop_exit
    _

// kernel: densenet_forward.17
$region0: #{densenet_forward.17}
  #allocation0 [shape = 'u32[]', space=smem, size = 0x4, offset = 0x4, fixed_abs, tag = 'smem constant byte address 0x4 - core index']
  #allocation1 [shape = 'u32[72,128]{1,0:T(1,128)}', space=vmem, size = 0x9000, scoped, tag = 'internal scratch']
  %s0 = inlined_call_operand.vmem [shape: bf16[32,128], index: 0, kind: input, shape index: {}]
  %s1 = inlined_call_operand.vmem [shape: bf16[128,128], index: 1, kind: input, shape index: {}]
  %s2 = inlined_call_operand.vmem [shape: bf16[1,128], index: 2, kind: input, shape index: {}]
  %s3 = inlined_call_operand.vmem [shape: f32[1,128], index: 3, kind: input, shape index: {}]
  %s4 = inlined_call_operand.vmem [shape: bf16[32,128], index: 4, kind: output, shape index: {}]
  %s5 = sld [smem:[#allocation0]]
  $region49: #{densenet_forward.17} parent=0
    _
  %s7 = ssub.s32 1, %s5
  %s8 = scalar_select 0, %s7, %s5
  loop: start=0, step=1, limit=4
  $region2: #{densenet_forward.17} parent=0 // loop_pre_header
    _
  $region3: #{densenet_forward.17} parent=0 // loop_header
    %s10 = sphi 0, %s14
    %p11 = scmp.ge.s32.totalorder %s10, 4
    %s20 = sphi 0, %s22
    %s23 = sphi 0, %s20
    %s24 = sphi 0, %s23
    %s40 = sphi 0, %s24
    %s44 = sphi 0, %s44
    %s46 = sphi 0, %s44
    %s47 = sphi 0, %s46
    %s61 = sphi 0, %s47
    %s65 = sphi 0, %s65
    %s67 = sphi 0, %s65
    %s68 = sphi 0, %s67
    %s82 = sphi 0, %s68
    %s86 = sphi 0, %s86
    %s88 = sphi 0, %s86
    %s89 = sphi 0, %s88
    %s103 = sphi 0, %s89
    %s109 = sphi 0, %s111
    %s112 = sphi 0, %s109
    %s113 = sphi 0, %s112
    %s129 = sphi 0, %s113
  $region4: #{densenet_forward.17} parent=0 // loop_header_branch
    %13 = sbr.rel (%p11) target = $region8
  $region5: #{densenet_forward.17} parent=0 // loop_body
    %s15 = ssub.s32 %s10, 1
    %s16 = ssub.s32 %s10, 2
    %s17 = sadd.s32 %s10, 1
    %s18 = ssub.s32 %s10, %s17
    %p19 = scmp.eq.s32.totalorder %s18, 0
    %s21 = sadd.s32 %s20, 1
    %s22 = scalar_select %p19, %s20, %s21
    %p25 = pneg %p19
    %p26 = scmp.eq.s32.totalorder %s10, 1
    %p27 = por %p25, %p26
    %p28 = scmp.ne.s32.totalorder %s20, %s23
    %p29 = scmp.eq.s32.totalorder %s10, 0
    %p30 = por %p28, %p29
    %p31 = scmp.ne.s32.totalorder %s20, %s23
    %p32 = scmp.eq.s32.totalorder %s15, 1
    %p33 = por %p31, %p32
    %p34 = scmp.ne.s32.totalorder %s23, %s24
    %p35 = scmp.eq.s32.totalorder %s15, 0
    %p36 = por %p34, %p35
    %p37 = scmp.ne.s32.totalorder %s23, %s24
    %p38 = scmp.eq.s32.totalorder %s16, 1
    %p39 = por %p37, %p38
    %p41 = scmp.ne.s32.totalorder %s24, %s40
    %p42 = scmp.eq.s32.totalorder %s16, 0
    %p43 = por %p41, %p42
    %s45 = sadd.s32 %s44, 1
    %p48 = scmp.eq.s32.totalorder %s10, 1
    %p49 = scmp.ne.s32.totalorder %s44, %s46
    %p50 = scmp.eq.s32.totalorder %s10, 0
    %p51 = por %p49, %p50
    %p52 = scmp.ne.s32.totalorder %s44, %s46
    %p53 = scmp.eq.s32.totalorder %s15, 1
    %p54 = por %p52, %p53
    %p55 = scmp.ne.s32.totalorder %s46, %s47
    %p56 = scmp.eq.s32.totalorder %s15, 0
    %p57 = por %p55, %p56
    %p58 = scmp.ne.s32.totalorder %s46, %s47
    %p59 = scmp.eq.s32.totalorder %s16, 1
    %p60 = por %p58, %p59
    %p62 = scmp.ne.s32.totalorder %s47, %s61
    %p63 = scmp.eq.s32.totalorder %s16, 0
    %p64 = por %p62, %p63
    %s66 = sadd.s32 %s65, 1
    %p69 = scmp.eq.s32.totalorder %s10, 1
    %p70 = scmp.ne.s32.totalorder %s65, %s67
    %p71 = scmp.eq.s32.totalorder %s10, 0
    %p72 = por %p70, %p71
    %p73 = scmp.ne.s32.totalorder %s65, %s67
    %p74 = scmp.eq.s32.totalorder %s15, 1
    %p75 = por %p73, %p74
    %p76 = scmp.ne.s32.totalorder %s67, %s68
    %p77 = scmp.eq.s32.totalorder %s15, 0
    %p78 = por %p76, %p77
    %p79 = scmp.ne.s32.totalorder %s67, %s68
    %p80 = scmp.eq.s32.totalorder %s16, 1
    %p81 = por %p79, %p80
    %p83 = scmp.ne.s32.totalorder %s68, %s82
    %p84 = scmp.eq.s32.totalorder %s16, 0
    %p85 = por %p83, %p84
    %s87 = sadd.s32 %s86, 1
    %p90 = scmp.eq.s32.totalorder %s10, 1
    %p91 = scmp.ne.s32.totalorder %s86, %s88
    %p92 = scmp.eq.s32.totalorder %s10, 0
    %p93 = por %p91, %p92
    %p94 = scmp.ne.s32.totalorder %s86, %s88
    %p95 = scmp.eq.s32.totalorder %s15, 1
    %p96 = por %p94, %p95
    %p97 = scmp.ne.s32.totalorder %s88, %s89
    %p98 = scmp.eq.s32.totalorder %s15, 0
    %p99 = por %p97, %p98
    %p100 = scmp.ne.s32.totalorder %s88, %s89
    %p101 = scmp.eq.s32.totalorder %s16, 1
    %p102 = por %p100, %p101
    %p104 = scmp.ne.s32.totalorder %s89, %s103
    %p105 = scmp.eq.s32.totalorder %s16, 0
    %p106 = por %p104, %p105
    %s107 = ssub.s32 %s10, %s17
    %p108 = scmp.eq.s32.totalorder %s107, 0
    %s110 = sadd.s32 %s109, 1
    %s111 = scalar_select %p108, %s109, %s110
    %p114 = pneg %p108
    %p115 = scmp.eq.s32.totalorder %s10, 1
    %p116 = por %p114, %p115
    %p117 = scmp.ne.s32.totalorder %s109, %s112
    %p118 = scmp.eq.s32.totalorder %s10, 0
    %p119 = por %p117, %p118
    %p120 = scmp.ne.s32.totalorder %s109, %s112
    %p121 = scmp.eq.s32.totalorder %s15, 1
    %p122 = por %p120, %p121
    %p123 = scmp.ne.s32.totalorder %s112, %s113
    %p124 = scmp.eq.s32.totalorder %s15, 0
    %p125 = por %p123, %p124
    %p126 = scmp.ne.s32.totalorder %s112, %s113
    %p127 = scmp.eq.s32.totalorder %s16, 1
    %p128 = por %p126, %p127
    %p130 = scmp.ne.s32.totalorder %s113, %s129
    %p131 = scmp.eq.s32.totalorder %s16, 0
    %p132 = por %p130, %p131
    %p133 = scmp.le.s32.totalorder 1, %s10
    %p134 = scmp.lt.s32.totalorder %s10, 3
    %p135 = pnand %p133, %p134
    %p136 = pneg %p135
    // Predicated region
    $region9: #{densenet_forward.17} parent=5 // pred_check
      _
    $region10: #{densenet_forward.17} parent=5 // pred_check_branch
      %138 = sbr.rel (%p135) target = $region12
    $region11: #{densenet_forward.17} parent=5 // pred_region
      %s139 = ssub.s32 %s10, 1
      // Predicated region
      $region13: #{densenet_forward.17} parent=11 // pred_check
        %p140 = pneg %p57
      $region14: #{densenet_forward.17} parent=11 // pred_check_branch
        %142 = sbr.rel (%p140) target = $region16
      $region15: #{densenet_forward.17} parent=11 // pred_region
        _
      $region16: #{densenet_forward.17} parent=11 // pred_fallthru
        _
      // Predicated region
      $region17: #{densenet_forward.17} parent=11 // pred_check
        %p143 = pneg %p78
      $region18: #{densenet_forward.17} parent=11 // pred_check_branch
        %145 = sbr.rel (%p143) target = $region20
      $region19: #{densenet_forward.17} parent=11 // pred_region
        _
      $region20: #{densenet_forward.17} parent=11 // pred_fallthru
        _
      // Predicated region
      $region21: #{densenet_forward.17} parent=11 // pred_check
        %p146 = pneg %p99
      $region22: #{densenet_forward.17} parent=11 // pred_check_branch
        %148 = sbr.rel (%p146) target = $region24
      $region23: #{densenet_forward.17} parent=11 // pred_region
        _
      $region24: #{densenet_forward.17} parent=11 // pred_fallthru
        _
    $region12: #{densenet_forward.17} parent=5 // pred_fallthru
      _
    %p149 = scmp.lt.s32.totalorder %s10, 2
    // Predicated region
    $region25: #{densenet_forward.17} parent=5 // pred_check
      %p150 = pneg %p149
    $region26: #{densenet_forward.17} parent=5 // pred_check_branch
      %152 = sbr.rel (%p150) target = $region28
    $region27: #{densenet_forward.17} parent=5 // pred_region
      // Predicated region
      $region29: #{densenet_forward.17} parent=27 // pred_check
        %p153 = pneg %p30
      $region30: #{densenet_forward.17} parent=27 // pred_check_branch
        %155 = sbr.rel (%p153) target = $region32
      $region31: #{densenet_forward.17} parent=27 // pred_region
        %s156 = smul.u32 2, %s10
        %p157 = scmp.lt.s32.totalorder %s156, 3
        %s158 = scalar_select %p157, %s156, 3
        %s159 = smul.addr %s158, 4
        %s160 = scalar_lea.vmem %s0, %s159
        %s161 = smul.u32 2, %s10
      $region32: #{densenet_forward.17} parent=27 // pred_fallthru
        _
    $region28: #{densenet_forward.17} parent=5 // pred_fallthru
      _
    %p162 = scmp.le.s32.totalorder 1, %s10
    %p163 = scmp.lt.s32.totalorder %s10, 3
    %p164 = pnand %p162, %p163
    %p165 = pneg %p164
    // Predicated region
    $region33: #{densenet_forward.17} parent=5 // pred_check
      _
    $region34: #{densenet_forward.17} parent=5 // pred_check_branch
      %167 = sbr.rel (%p164) target = $region36
    $region35: #{densenet_forward.17} parent=5 // pred_region
      %s168 = ssub.s32 %s10, 1
      %s169 = smul.u32 2, %s15
      %p170 = scmp.lt.s32.totalorder %s169, 3
      %s171 = scalar_select %p170, %s169, 3
      %s172 = smul.addr %s171, 4
      %s173 = scalar_lea.vmem %s0, %s172
      %p174 = pneg %p36
      %p175 = pneg %p33
      %p176 = pneg %p57
      %p177 = pneg %p54
      %p178 = pneg %p78
      %p179 = pneg %p75
      %p180 = pneg %p99
      %p181 = pneg %p96
      %p182 = pneg %p125
      %p183 = pneg %p122
      %s184 = smul.u32 2, %s15
      %p185 = scmp.lt.s32.totalorder %s184, 3
      %s186 = scalar_select %p185, %s184, 3
      %s187 = smul.addr %s186, 4
      %s188 = scalar_lea.vmem %s4, %s187
      %s189 = smul.u32 2, %s15
      %p190 = scmp.lt.s32.totalorder %s189, 3
      %s191 = scalar_select %p190, %s189, 3
      %s192 = smul.addr %s191, 4
      %s193 = scalar_lea.vmem %s0, %s192
      %s194 = smul.u32 2, %s15
      %s195 = smul.u32 2, %s15
      %p196 = scmp.lt.s32.totalorder %s195, 3
      %s197 = scalar_select %p196, %s195, 3
      %s198 = smul.addr %s197, 4
      %s199 = scalar_lea.vmem %s4, %s198
      %s200 = smul.u32 2, %s15
      %v201 = vld [vmem:[%s193] sm:$0xf]
      %v202 = vld [vmem:[%s193 + $0x4] sm:$0xf]
      %v203 = vld [vmem:[%s2] sm:$0x1]
      %v205 = vpack.i.b16 %v203, %v203
      %v207 = vperm.slane %v205, 0
      %v208 = vunpack.c.l.bf16 %v201
      %v209 = vunpack.c.l.bf16 %v202
      %v210 = vunpack.c.l.bf16 %v207
      %v211 = vadd.f32 %v208, %v210
      %v212 = vadd.f32 %v209, %v210
      %v213 = vpack.c.bf16 %v211, %v211
      %v214 = vpack.c.bf16 %v212, %v212
      %v215 = vunpack.c.l.bf16 %v213
      %v216 = vunpack.c.l.bf16 %v214
      %v217 = vmax.f32 %v215, 0.0
      %v218 = vmax.f32 %v216, 0.0
      %v219 = vpack.c.bf16 %v218, %v217
      %v220 = vld [vmem:[%s1] sm:$0xf]
      %v221 = vld [vmem:[%s1 + $0x4] sm:$0xf]
      %v222 = vld [vmem:[%s1 + $0x8] sm:$0xf]
      %v223 = vld [vmem:[%s1 + $0xc] sm:$0xf]
      %v224 = vld [vmem:[%s1 + $0x10] sm:$0xf]
      %v225 = vld [vmem:[%s1 + $0x14] sm:$0xf]
      %v226 = vld [vmem:[%s1 + $0x18] sm:$0xf]
      %v227 = vld [vmem:[%s1 + $0x1c] sm:$0xf]
      %v228 = vld [vmem:[%s1 + $0x20] sm:$0xf]
      %v229 = vld [vmem:[%s1 + $0x24] sm:$0xf]
      %v230 = vld [vmem:[%s1 + $0x28] sm:$0xf]
      %v231 = vld [vmem:[%s1 + $0x2c] sm:$0xf]
      %v232 = vld [vmem:[%s1 + $0x30] sm:$0xf]
      %v233 = vld [vmem:[%s1 + $0x34] sm:$0xf]
      %v234 = vld [vmem:[%s1 + $0x38] sm:$0xf]
      %v235 = vld [vmem:[%s1 + $0x3c] sm:$0xf]
      %v236 = vld [vmem:[%s3] sm:$0x1]
      %v238 = vperm.slane %v236, 0
      %v256 = vunpack.c.l.b16 %v220
      %v257 = vunpack.c.l.b16 %v221
      %v258 = vunpack.c.l.b16 %v222
      %v259 = vunpack.c.l.b16 %v223
      %v260 = vunpack.c.l.b16 %v224
      %v261 = vunpack.c.l.b16 %v225
      %v262 = vunpack.c.l.b16 %v226
      %v263 = vunpack.c.l.b16 %v227
      %v264 = vunpack.c.l.b16 %v228
      %v265 = vunpack.c.l.b16 %v229
      %v266 = vunpack.c.l.b16 %v230
      %v267 = vunpack.c.l.b16 %v231
      %v268 = vunpack.c.l.b16 %v232
      %v269 = vunpack.c.l.b16 %v233
      %v270 = vunpack.c.l.b16 %v234
      %v271 = vunpack.c.l.b16 %v235
      %v272 = vpack.c.b16 %v257, %v256
      %v273 = vpack.c.b16 %v259, %v258
      %v274 = vpack.c.b16 %v261, %v260
      %v275 = vpack.c.b16 %v263, %v262
      %v276 = vpack.c.b16 %v265, %v264
      %v277 = vpack.c.b16 %v267, %v266
      %v278 = vpack.c.b16 %v269, %v268
      %v279 = vpack.c.b16 %v271, %v270
      %288 = vmatpush.bf16.msra.mxu0 %v279
      %289 = vmatpush.bf16.msra.mxu0 %v278
      %290 = vmatpush.bf16.msra.mxu0 %v277
      %291 = vmatpush.bf16.msra.mxu0 %v276
      %292 = vmatpush.bf16.msra.mxu0 %v275
      %293 = vmatpush.bf16.msra.mxu0 %v274
      %294 = vmatpush.bf16.msra.mxu0 %v273
      %295 = vmatpush.bf16.msra.mxu0 %v272
      %296 = vmatmul.bf16.gmra.mxu0 %v219
      %v297 = vpop.f32.mrf.mxu0
      %v298 = vadd.f32 %v238, %v297
      %v299 = vpop.f32.mrf.mxu0
      %v300 = vadd.f32 %v238, %v299
      %301 = vdwg.mxu0
      %v302 = vmax.f32 %v298, 0.0
      %v303 = vmax.f32 %v300, 0.0
      %v304 = vpack.c.bf16 %v302, %v302
      %v305 = vpack.c.bf16 %v303, %v303
      %306 = vst [vmem:[%s199] sm:$0xf] %v304
      %307 = vst [vmem:[%s199 + $0x4] sm:$0xf] %v305
      %s308 = smul.u32 2, %s15
      %p309 = scmp.lt.s32.totalorder %s308, 3
      %s310 = scalar_select %p309, %s308, 3
      %s311 = smul.addr %s310, 4
      %s312 = scalar_lea.vmem %s4, %s311
      // Predicated region
      $region37: #{densenet_forward.17} parent=35 // pred_check
        %p313 = pneg %p122
      $region38: #{densenet_forward.17} parent=35 // pred_check_branch
        %315 = sbr.rel (%p313) target = $region40
      $region39: #{densenet_forward.17} parent=35 // pred_region
        %s316 = smul.u32 2, %s15
      $region40: #{densenet_forward.17} parent=35 // pred_fallthru
        _
    $region36: #{densenet_forward.17} parent=5 // pred_fallthru
      _
    %p317 = scmp.le.s32.totalorder 2, %s10
    // Predicated region
    $region41: #{densenet_forward.17} parent=5 // pred_check
      %p318 = pneg %p317
    $region42: #{densenet_forward.17} parent=5 // pred_check_branch
      %320 = sbr.rel (%p318) target = $region44
    $region43: #{densenet_forward.17} parent=5 // pred_region
      %s321 = ssub.s32 %s10, 2
      // Predicated region
      $region45: #{densenet_forward.17} parent=43 // pred_check
        %p322 = pneg %p128
      $region46: #{densenet_forward.17} parent=43 // pred_check_branch
        %324 = sbr.rel (%p322) target = $region48
      $region47: #{densenet_forward.17} parent=43 // pred_region
        %s325 = smul.u32 2, %s16
        %p326 = scmp.lt.s32.totalorder %s325, 3
        %s327 = scalar_select %p326, %s325, 3
        %s328 = smul.addr %s327, 4
        %s329 = scalar_lea.vmem %s4, %s328
      $region48: #{densenet_forward.17} parent=43 // pred_fallthru
        _
    $region44: #{densenet_forward.17} parent=5 // pred_fallthru
      _
  $region6: #{densenet_forward.17} parent=0 // loop_footer
    %s14 = sadd.s32 1, %s10
  $region7: #{densenet_forward.17} parent=0 // loop_footer_branch
    %9 = sbr.rel target = $region3
  $region8: #{densenet_forward.17} parent=0 // loop_exit
    _

// kernel: densenet_forward.18
$region0: #{densenet_forward.18}
  #allocation0 [shape = 'u32[]', space=smem, size = 0x4, offset = 0x4, fixed_abs, tag = 'smem constant byte address 0x4 - core index']
  #allocation1 [shape = 'u32[72,128]{1,0:T(1,128)}', space=vmem, size = 0x9000, scoped, tag = 'internal scratch']
  %s0 = inlined_call_operand.vmem [shape: bf16[2,36,128], index: 0, kind: input, shape index: {}]
  %s1 = inlined_call_operand.vmem [shape: bf16[128,288], index: 1, kind: input, shape index: {}]
  %s2 = inlined_call_operand.vmem [shape: bf16[2,4,4,32], index: 2, kind: output, shape index: {}]
  %s3 = sld [smem:[#allocation0]]
  $region41: #{densenet_forward.18} parent=0
    _
  %s5 = ssub.s32 1, %s3
  %s6 = scalar_select 0, %s5, %s3
  loop: start=0, step=1, limit=4
  $region2: #{densenet_forward.18} parent=0 // loop_pre_header
    _
  $region3: #{densenet_forward.18} parent=0 // loop_header
    %s8 = sphi 0, %s12
    %p9 = scmp.ge.s32.totalorder %s8, 4
    %s18 = sphi 0, %s20
    %s21 = sphi 0, %s18
    %s22 = sphi 0, %s21
    %s38 = sphi 0, %s22
    %s42 = sphi 0, %s42
    %s44 = sphi 0, %s42
    %s45 = sphi 0, %s44
    %s59 = sphi 0, %s45
    %s65 = sphi 0, %s67
    %s68 = sphi 0, %s65
    %s69 = sphi 0, %s68
    %s85 = sphi 0, %s69
  $region4: #{densenet_forward.18} parent=0 // loop_header_branch
    %11 = sbr.rel (%p9) target = $region8
  $region5: #{densenet_forward.18} parent=0 // loop_body
    %s13 = ssub.s32 %s8, 1
    %s14 = ssub.s32 %s8, 2
    %s15 = sadd.s32 %s8, 1
    %s16 = ssub.s32 %s8, %s15
    %p17 = scmp.eq.s32.totalorder %s16, 0
    %s19 = sadd.s32 %s18, 1
    %s20 = scalar_select %p17, %s18, %s19
    %p23 = pneg %p17
    %p24 = scmp.eq.s32.totalorder %s8, 1
    %p25 = por %p23, %p24
    %p26 = scmp.ne.s32.totalorder %s18, %s21
    %p27 = scmp.eq.s32.totalorder %s8, 0
    %p28 = por %p26, %p27
    %p29 = scmp.ne.s32.totalorder %s18, %s21
    %p30 = scmp.eq.s32.totalorder %s13, 1
    %p31 = por %p29, %p30
    %p32 = scmp.ne.s32.totalorder %s21, %s22
    %p33 = scmp.eq.s32.totalorder %s13, 0
    %p34 = por %p32, %p33
    %p35 = scmp.ne.s32.totalorder %s21, %s22
    %p36 = scmp.eq.s32.totalorder %s14, 1
    %p37 = por %p35, %p36
    %p39 = scmp.ne.s32.totalorder %s22, %s38
    %p40 = scmp.eq.s32.totalorder %s14, 0
    %p41 = por %p39, %p40
    %s43 = sadd.s32 %s42, 1
    %p46 = scmp.eq.s32.totalorder %s8, 1
    %p47 = scmp.ne.s32.totalorder %s42, %s44
    %p48 = scmp.eq.s32.totalorder %s8, 0
    %p49 = por %p47, %p48
    %p50 = scmp.ne.s32.totalorder %s42, %s44
    %p51 = scmp.eq.s32.totalorder %s13, 1
    %p52 = por %p50, %p51
    %p53 = scmp.ne.s32.totalorder %s44, %s45
    %p54 = scmp.eq.s32.totalorder %s13, 0
    %p55 = por %p53, %p54
    %p56 = scmp.ne.s32.totalorder %s44, %s45
    %p57 = scmp.eq.s32.totalorder %s14, 1
    %p58 = por %p56, %p57
    %p60 = scmp.ne.s32.totalorder %s45, %s59
    %p61 = scmp.eq.s32.totalorder %s14, 0
    %p62 = por %p60, %p61
    %s63 = ssub.s32 %s8, %s15
    %p64 = scmp.eq.s32.totalorder %s63, 0
    %s66 = sadd.s32 %s65, 1
    %s67 = scalar_select %p64, %s65, %s66
    %p70 = pneg %p64
    %p71 = scmp.eq.s32.totalorder %s8, 1
    %p72 = por %p70, %p71
    %p73 = scmp.ne.s32.totalorder %s65, %s68
    %p74 = scmp.eq.s32.totalorder %s8, 0
    %p75 = por %p73, %p74
    %p76 = scmp.ne.s32.totalorder %s65, %s68
    %p77 = scmp.eq.s32.totalorder %s13, 1
    %p78 = por %p76, %p77
    %p79 = scmp.ne.s32.totalorder %s68, %s69
    %p80 = scmp.eq.s32.totalorder %s13, 0
    %p81 = por %p79, %p80
    %p82 = scmp.ne.s32.totalorder %s68, %s69
    %p83 = scmp.eq.s32.totalorder %s14, 1
    %p84 = por %p82, %p83
    %p86 = scmp.ne.s32.totalorder %s69, %s85
    %p87 = scmp.eq.s32.totalorder %s14, 0
    %p88 = por %p86, %p87
    %p89 = scmp.le.s32.totalorder 1, %s8
    %p90 = scmp.lt.s32.totalorder %s8, 3
    %p91 = pnand %p89, %p90
    %p92 = pneg %p91
    // Predicated region
    $region9: #{densenet_forward.18} parent=5 // pred_check
      _
    $region10: #{densenet_forward.18} parent=5 // pred_check_branch
      %94 = sbr.rel (%p91) target = $region12
    $region11: #{densenet_forward.18} parent=5 // pred_region
      %s95 = ssub.s32 %s8, 1
      // Predicated region
      $region13: #{densenet_forward.18} parent=11 // pred_check
        %p96 = pneg %p55
      $region14: #{densenet_forward.18} parent=11 // pred_check_branch
        %98 = sbr.rel (%p96) target = $region16
      $region15: #{densenet_forward.18} parent=11 // pred_region
        _
      $region16: #{densenet_forward.18} parent=11 // pred_fallthru
        _
    $region12: #{densenet_forward.18} parent=5 // pred_fallthru
      _
    %p99 = scmp.lt.s32.totalorder %s8, 2
    // Predicated region
    $region17: #{densenet_forward.18} parent=5 // pred_check
      %p100 = pneg %p99
    $region18: #{densenet_forward.18} parent=5 // pred_check_branch
      %102 = sbr.rel (%p100) target = $region20
    $region19: #{densenet_forward.18} parent=5 // pred_region
      // Predicated region
      $region21: #{densenet_forward.18} parent=19 // pred_check
        %p103 = pneg %p28
      $region22: #{densenet_forward.18} parent=19 // pred_check_branch
        %105 = sbr.rel (%p103) target = $region24
      $region23: #{densenet_forward.18} parent=19 // pred_region
        %p106 = scmp.lt.s32.totalorder %s8, 1
        %s107 = scalar_select %p106, %s8, 1
        %s108 = smul.addr %s107, 5
        %s109 = smul.addr %s108, 4
        %s110 = scalar_lea.vmem %s0, %s109
      $region24: #{densenet_forward.18} parent=19 // pred_fallthru
        _
    $region20: #{densenet_forward.18} parent=5 // pred_fallthru
      _
    %p111 = scmp.le.s32.totalorder 1, %s8
    %p112 = scmp.lt.s32.totalorder %s8, 3
    %p113 = pnand %p111, %p112
    %p114 = pneg %p113
    // Predicated region
    $region25: #{densenet_forward.18} parent=5 // pred_check
      _
    $region26: #{densenet_forward.18} parent=5 // pred_check_branch
      %116 = sbr.rel (%p113) target = $region28
    $region27: #{densenet_forward.18} parent=5 // pred_region
      %s117 = ssub.s32 %s8, 1
      %p118 = scmp.lt.s32.totalorder %s13, 1
      %s119 = scalar_select %p118, %s13, 1
      %s120 = smul.addr %s119, 5
      %s121 = smul.addr %s120, 4
      %s122 = scalar_lea.vmem %s0, %s121
      %p123 = pneg %p34
      %p124 = pneg %p31
      %p125 = pneg %p55
      %p126 = pneg %p52
      %p127 = pneg %p81
      %p128 = pneg %p78
      %p129 = scmp.lt.s32.totalorder %s13, 1
      %s130 = scalar_select %p129, %s13, 1
      %s131 = smul.addr %s130, 4
      %s132 = smul.addr %s131, 2
      %s133 = scalar_lea.vmem %s2, %s132
      %p134 = scmp.lt.s32.totalorder %s13, 1
      %s135 = scalar_select %p134, %s13, 1
      %s136 = smul.addr %s135, 5
      %s137 = smul.addr %s136, 4
      %s138 = scalar_lea.vmem %s0, %s137
      %p139 = scmp.lt.s32.totalorder %s13, 1
      %s140 = scalar_select %p139, %s13, 1
      %s141 = smul.addr %s140, 4
      %s142 = smul.addr %s141, 2
      %s143 = scalar_lea.vmem %s2, %s142
      %v144 = vld [vmem:[%s138] sm:$0xf]
      %v145 = vld [vmem:[%s138 + $0x4] sm:$0xf]
      %v146 = vld [vmem:[%s138 + $0x8] sm:$0xf]
      %v147 = vld [vmem:[%s138 + $0xc] sm:$0xf]
      %v148 = vld [vmem:[%s138 + $0x10] sm:$0x3]
      %v149 = vld [vmem:[%s1] sm:$0xff]
      %v150 = vld [vmem:[%s1 + $0x8] sm:$0xf]
      %v151 = vld [vmem:[%s1 + $0xc] sm:$0xff]
      %v152 = vld [vmem:[%s1 + $0x14] sm:$0xf]
      %v153 = vld [vmem:[%s1 + $0x18] sm:$0xff]
      %v154 = vld [vmem:[%s1 + $0x20] sm:$0xf]
      %v155 = vld [vmem:[%s1 + $0x24] sm:$0xff]
      %v156 = vld [vmem:[%s1 + $0x2c] sm:$0xf]
      %v157 = vld [vmem:[%s1 + $0x30] sm:$0xff]
      %v158 = vld [vmem:[%s1 + $0x38] sm:$0xf]
      %v159 = vld [vmem:[%s1 + $0x3c] sm:$0xff]
      %v160 = vld [vmem:[%s1 + $0x44] sm:$0xf]
      %v161 = vld [vmem:[%s1 + $0x48] sm:$0xff]
      %v162 = vld [vmem:[%s1 + $0x50] sm:$0xf]
      %v163 = vld [vmem:[%s1 + $0x54] sm:$0xff]
      %v164 = vld [vmem:[%s1 + $0x5c] sm:$0xf]
      %v165 = vld [vmem:[%s1 + $0x60] sm:$0xff]
      %v166 = vld [vmem:[%s1 + $0x68] sm:$0xf]
      %v167 = vld [vmem:[%s1 + $0x6c] sm:$0xff]
      %v168 = vld [vmem:[%s1 + $0x74] sm:$0xf]
      %v169 = vld [vmem:[%s1 + $0x78] sm:$0xff]
      %v170 = vld [vmem:[%s1 + $0x80] sm:$0xf]
      %v171 = vld [vmem:[%s1 + $0x84] sm:$0xff]
      %v172 = vld [vmem:[%s1 + $0x8c] sm:$0xf]
      %v173 = vld [vmem:[%s1 + $0x90] sm:$0xff]
      %v174 = vld [vmem:[%s1 + $0x98] sm:$0xf]
      %v175 = vld [vmem:[%s1 + $0x9c] sm:$0xff]
      %v176 = vld [vmem:[%s1 + $0xa4] sm:$0xf]
      %v177 = vld [vmem:[%s1 + $0xa8] sm:$0xff]
      %v178 = vld [vmem:[%s1 + $0xb0] sm:$0xf]
      %v179 = vld [vmem:[%s1 + $0xb4] sm:$0xff]
      %v180 = vld [vmem:[%s1 + $0xbc] sm:$0xf]
      %v186 = vunpack.c.l.b16 %v144
      %v187 = vunpack.c.l.b16 %v145
      %v188 = vunpack.c.l.b16 %v146
      %v189 = vunpack.c.l.b16 %v147
      %v190 = vunpack.c.l.b16 %v148
      %v191 = vpack.c.b16 %v187, %v186
      %v192 = vpack.c.b16 %v189, %v188
      %v193 = vpack.c.b16 %v190, %v190
      %v229 = vunpack.c.l.b16 %v149
      %v230 = vunpack.c.h.b16 %v149
      %v231 = vunpack.c.l.b16 %v150
      %v232 = vunpack.c.l.b16 %v151
      %v233 = vunpack.c.h.b16 %v151
      %v234 = vunpack.c.l.b16 %v152
      %v235 = vunpack.c.l.b16 %v153
      %v236 = vunpack.c.h.b16 %v153
      %v237 = vunpack.c.l.b16 %v154
      %v238 = vunpack.c.l.b16 %v155
      %v239 = vunpack.c.h.b16 %v155
      %v240 = vunpack.c.l.b16 %v156
      %v241 = vunpack.c.l.b16 %v157
      %v242 = vunpack.c.h.b16 %v157
      %v243 = vunpack.c.l.b16 %v158
      %v244 = vunpack.c.l.b16 %v159
      %v245 = vunpack.c.h.b16 %v159
      %v246 = vunpack.c.l.b16 %v160
      %v247 = vunpack.c.l.b16 %v161
      %v248 = vunpack.c.h.b16 %v161
      %v249 = vunpack.c.l.b16 %v162
      %v250 = vunpack.c.l.b16 %v163
      %v251 = vunpack.c.h.b16 %v163
      %v252 = vunpack.c.l.b16 %v164
      %v253 = vunpack.c.l.b16 %v165
      %v254 = vunpack.c.h.b16 %v165
      %v255 = vunpack.c.l.b16 %v166
      %v256 = vunpack.c.l.b16 %v167
      %v257 = vunpack.c.h.b16 %v167
      %v258 = vunpack.c.l.b16 %v168
      %v259 = vunpack.c.l.b16 %v169
      %v260 = vunpack.c.h.b16 %v169
      %v261 = vunpack.c.l.b16 %v170
      %v262 = vunpack.c.l.b16 %v171
      %v263 = vunpack.c.h.b16 %v171
      %v264 = vunpack.c.l.b16 %v172
      %v265 = vunpack.c.l.b16 %v173
      %v266 = vunpack.c.h.b16 %v173
      %v267 = vunpack.c.l.b16 %v174
      %v268 = vunpack.c.l.b16 %v175
      %v269 = vunpack.c.h.b16 %v175
      %v270 = vunpack.c.l.b16 %v176
      %v271 = vunpack.c.l.b16 %v177
      %v272 = vunpack.c.h.b16 %v177
      %v273 = vunpack.c.l.b16 %v178
      %v274 = vunpack.c.l.b16 %v179
      %v275 = vunpack.c.h.b16 %v179
      %v276 = vunpack.c.l.b16 %v180
      %v277 = vpack.c.b16 %v232, %v229
      %v278 = vpack.c.b16 %v233, %v230
      %v279 = vpack.c.b16 %v234, %v231
      %v280 = vpack.c.b16 %v238, %v235
      %v281 = vpack.c.b16 %v239, %v236
      %v282 = vpack.c.b16 %v240, %v237
      %v283 = vpack.c.b16 %v244, %v241
      %v284 = vpack.c.b16 %v245, %v242
      %v285 = vpack.c.b16 %v246, %v243
      %v286 = vpack.c.b16 %v250, %v247
      %v287 = vpack.c.b16 %v251, %v248
      %v288 = vpack.c.b16 %v252, %v249
      %v289 = vpack.c.b16 %v256, %v253
      %v290 = vpack.c.b16 %v257, %v254
      %v291 = vpack.c.b16 %v258, %v255
      %v292 = vpack.c.b16 %v262, %v259
      %v293 = vpack.c.b16 %v263, %v260
      %v294 = vpack.c.b16 %v264, %v261
      %v295 = vpack.c.b16 %v268, %v265
      %v296 = vpack.c.b16 %v269, %v266
      %v297 = vpack.c.b16 %v270, %v267
      %v298 = vpack.c.b16 %v274, %v271
      %v299 = vpack.c.b16 %v275, %v272
      %v300 = vpack.c.b16 %v276, %v273
      %325 = vmatpush.bf16.msra.mxu0 %v298
      %326 = vmatpush.bf16.msra.mxu0 %v295
      %327 = vmatpush.bf16.msra.mxu0 %v292
      %328 = vmatpush.bf16.msra.mxu0 %v289
      %329 = vmatpush.bf16.msra.mxu0 %v286
      %330 = vmatpush.bf16.msra.mxu0 %v283
      %331 = vmatpush.bf16.msra.mxu0 %v280
      %332 = vmatpush.bf16.msra.mxu0 %v277
      %333 = vmatmul.bf16.gmra.mxu0 %v191
      %v334 = vpop.f32.mrf.mxu0
      %v335 = vadd.f32 0.0, %v334
      %v336 = vpop.f32.mrf.mxu0
      %v337 = vadd.f32 0.0, %v336
      %338 = vmatmul.bf16.gmra.mxu0 %v192
      %v339 = vpop.f32.mrf.mxu0
      %v340 = vadd.f32 0.0, %v339
      %v341 = vpop.f32.mrf.mxu0
      %v342 = vadd.f32 0.0, %v341
      %343 = vmatmul.bf16.gmra.mxu0 %v193
      %v344 = vpop.f32.mrf.mxu0
      %v345 = vpop.f32.mrf.mxu0
      %346 = vdwg.mxu0
      %347 = vmatpush.bf16.msra.mxu0 %v299
      %348 = vmatpush.bf16.msra.mxu0 %v296
      %349 = vmatpush.bf16.msra.mxu0 %v293
      %350 = vmatpush.bf16.msra.mxu0 %v290
      %351 = vmatpush.bf16.msra.mxu0 %v287
      %352 = vmatpush.bf16.msra.mxu0 %v284
      %353 = vmatpush.bf16.msra.mxu0 %v281
      %354 = vmatpush.bf16.msra.mxu0 %v278
      %355 = vmatmul.bf16.gmra.mxu0 %v191
      %v356 = vpop.f32.mrf.mxu0
      %v357 = vadd.f32 0.0, %v356
      %v358 = vpop.f32.mrf.mxu0
      %v359 = vadd.f32 0.0, %v358
      %360 = vmatmul.bf16.gmra.mxu0 %v192
      %v361 = vpop.f32.mrf.mxu0
      %v362 = vadd.f32 0.0, %v361
      %v363 = vpop.f32.mrf.mxu0
      %v364 = vadd.f32 0.0, %v363
      %365 = vmatmul.bf16.gmra.mxu0 %v193
      %v366 = vpop.f32.mrf.mxu0
      %v367 = vadd.f32 0.0, %v366
      %v368 = vpop.f32.mrf.mxu0
      %369 = vdwg.mxu0
      %370 = vmatpush.bf16.msra.mxu0 %v300
      %371 = vmatpush.bf16.msra.mxu0 %v297
      %372 = vmatpush.bf16.msra.mxu0 %v294
      %373 = vmatpush.bf16.msra.mxu0 %v291
      %374 = vmatpush.bf16.msra.mxu0 %v288
      %375 = vmatpush.bf16.msra.mxu0 %v285
      %376 = vmatpush.bf16.msra.mxu0 %v282
      %377 = vmatpush.bf16.msra.mxu0 %v279
      %378 = vmatmul.bf16.gmra.mxu0 %v191
      %v379 = vpop.f32.mrf.mxu0
      %v380 = vpop.f32.mrf.mxu0
      %v381 = vadd.f32 0.0, %v380
      %382 = vmatmul.bf16.gmra.mxu0 %v192
      %v383 = vpop.f32.mrf.mxu0
      %v384 = vadd.f32 0.0, %v383
      %v385 = vpop.f32.mrf.mxu0
      %v386 = vadd.f32 0.0, %v385
      %387 = vmatmul.bf16.gmra.mxu0 %v193
      %v388 = vpop.f32.mrf.mxu0
      %v389 = vadd.f32 0.0, %v388
      %v390 = vpop.f32.mrf.mxu0
      %391 = vdwg.mxu0
      %v392 = vadd.f32 %v335, 0.0
      %v393 = vadd.f32 %v337, 0.0
      %v394 = vadd.f32 %v340, 0.0
      %vm398 = vcmask 1046528
      %v399 = vrot.slane %v335, 1
      %v400 = vrot.slane %v337, 1
      %v401 = vsel %vm398, %v399, %v400
      %v402 = vrot.slane %v340, 1
      %v403 = vsel %vm398, %v400, %v402
      %404 = vrot.lane.b32.xlu0 %v401, 96
      %v405 = vpop.permute.xlu0 %404
      %406 = vrot.lane.b32.xlu0 %v403, 96
      %v407 = vpop.permute.xlu0 %406
      %408 = vrot.lane.b32.xlu0 %v402, 96
      %v409 = vpop.permute.xlu0 %408
      %v413 = vadd.f32 %v392, %v405
      %v414 = vadd.f32 %v393, %v407
      %v415 = vadd.f32 %v394, %v409
      %vm416 = vcmask 1045504
      %v417 = vrot.slane %v335, 2
      %v418 = vrot.slane %v337, 2
      %v419 = vsel %vm416, %v417, %v418
      %v420 = vrot.slane %v340, 2
      %v421 = vsel %vm416, %v418, %v420
      %422 = vrot.lane.b32.xlu0 %v419, 64
      %v423 = vpop.permute.xlu0 %422
      %424 = vrot.lane.b32.xlu0 %v421, 64
      %v425 = vpop.permute.xlu0 %424
      %426 = vrot.lane.b32.xlu0 %v420, 64
      %v427 = vpop.permute.xlu0 %426
      %v431 = vadd.f32 %v413, %v423
      %v432 = vadd.f32 %v414, %v425
      %v433 = vadd.f32 %v415, %v427
      %vm435 = vcmask 1041408
      %v436 = vrot.slane %v335, 6
      %v437 = vrot.slane %v337, 6
      %v438 = vsel %vm435, %v436, %v437
      %v439 = vrot.slane %v340, 6
      %v440 = vsel %vm435, %v437, %v439
      %v441 = vrot.slane %v342, 6
      %v442 = vsel %vm435, %v439, %v441
      %443 = vrot.lane.b32.xlu0 %v438, 32
      %v444 = vpop.permute.xlu0 %443
      %445 = vrot.lane.b32.xlu0 %v440, 32
      %v446 = vpop.permute.xlu0 %445
      %447 = vrot.lane.b32.xlu0 %v442, 32
      %v448 = vpop.permute.xlu0 %447
      %v452 = vadd.f32 %v431, %v444
      %v453 = vadd.f32 %v432, %v446
      %v454 = vadd.f32 %v433, %v448
      %vm459 = vcmask 1040384
      %v460 = vrot.slane %v357, 7
      %v461 = vrot.slane %v359, 7
      %v462 = vsel %vm459, %v460, %v461
      %v463 = vrot.slane %v362, 7
      %v464 = vsel %vm459, %v461, %v463
      %v465 = vrot.slane %v364, 7
      %v466 = vsel %vm459, %v463, %v465
      %v470 = vadd.f32 %v452, %v462
      %v471 = vadd.f32 %v453, %v464
      %v472 = vadd.f32 %v454, %v466
      %473 = vrot.lane.b32.xlu0 %v359, 96
      %v474 = vpop.permute.xlu0 %473
      %475 = vrot.lane.b32.xlu0 %v362, 96
      %v476 = vpop.permute.xlu0 %475
      %477 = vrot.lane.b32.xlu0 %v364, 96
      %v478 = vpop.permute.xlu0 %477
      %v482 = vadd.f32 %v470, %v474
      %v483 = vadd.f32 %v471, %v476
      %v484 = vadd.f32 %v472, %v478
      %vm486 = vcmask 1043456
      %v487 = vrot.slane %v359, 4
      %v488 = vrot.slane %v362, 4
      %v489 = vsel %vm486, %v487, %v488
      %v490 = vrot.slane %v364, 4
      %v491 = vsel %vm486, %v488, %v490
      %v492 = vrot.slane %v367, 4
      %v493 = vsel %vm486, %v490, %v492
      %494 = vrot.lane.b32.xlu0 %v489, 64
      %v495 = vpop.permute.xlu0 %494
      %496 = vrot.lane.b32.xlu0 %v491, 64
      %v497 = vpop.permute.xlu0 %496
      %498 = vrot.lane.b32.xlu0 %v493, 64
      %v499 = vpop.permute.xlu0 %498
      %v503 = vadd.f32 %v482, %v495
      %v504 = vadd.f32 %v483, %v497
      %v505 = vadd.f32 %v484, %v499
      %vm506 = vcmask 1042432
      %v507 = vrot.slane %v359, 5
      %v508 = vrot.slane %v362, 5
      %v509 = vsel %vm506, %v507, %v508
      %v510 = vrot.slane %v364, 5
      %v511 = vsel %vm506, %v508, %v510
      %v512 = vrot.slane %v367, 5
      %v513 = vsel %vm506, %v510, %v512
      %514 = vrot.lane.b32.xlu0 %v509, 32
      %v515 = vpop.permute.xlu0 %514
      %516 = vrot.lane.b32.xlu0 %v511, 32
      %v517 = vpop.permute.xlu0 %516
      %518 = vrot.lane.b32.xlu0 %v513, 32
      %v519 = vpop.permute.xlu0 %518
      %v523 = vadd.f32 %v503, %v515
      %v524 = vadd.f32 %v504, %v517
      %v525 = vadd.f32 %v505, %v519
      %v530 = vrot.slane %v381, 6
      %v531 = vrot.slane %v384, 6
      %v532 = vsel %vm435, %v530, %v531
      %v533 = vrot.slane %v386, 6
      %v534 = vsel %vm435, %v531, %v533
      %v535 = vrot.slane %v389, 6
      %v536 = vsel %vm435, %v533, %v535
      %v540 = vadd.f32 %v523, %v532
      %v541 = vadd.f32 %v524, %v534
      %v542 = vadd.f32 %v525, %v536
      %v543 = vpack.c.bf16 %v540, %v540
      %vm544 = vcmask 254976
      %545 = vst.msk [vmem:[%s143] sm:$0x3] %vm544, %v543
      %v546 = vpack.c.bf16 %v541, %v541
      %548 = vst.sshfl [vmem:[#allocation1] sm:$0xff pattern:$0x75643120] %v543
      %550 = vst.sshfl [vmem:[#allocation1 + $0x10] sm:$0xff pattern:$0x75643120] %v546
      %s551 = scalar_lea.vmem [#allocation1], 1
      %v552 = vld [vmem:[%s551] ss:$2 sm:$0xff]
      %s554 = scalar_lea.vmem [#allocation1], 16
      %v555 = vld [vmem:[%s554] ss:$2 sm:$0xff]
      %vm557 = vcmask 1040384
      %vm558 = vcmask 1042434
      %vm559 = vmor %vm557, %vm558
      %vm560 = vcmask 1044484
      %vm561 = vmor %vm559, %vm560
      %vm562 = vcmask 1046534
      %vm563 = vmor %vm561, %vm562
      %v564 = vrot.slane %v552, 7
      %v565 = vrot.slane %v564, 2
      %v566 = vrot.slane %v555, 7
      %v567 = vsel %vm563, %v565, %v566
      %s569 = scalar_lea.vmem %s143, 2
      %570 = vst.msk [vmem:[%s569] sm:$0x3] %vm544, %v567
      %571 = vst.sshfl [vmem:[#allocation1] sm:$0xff pattern:$0x75643120] %v546
      %s572 = scalar_lea.vmem [#allocation1], 1
      %v573 = vld [vmem:[%s572] ss:$2 sm:$0xff]
      %s575 = scalar_lea.vmem %s143, 4
      %576 = vst.msk [vmem:[%s575] sm:$0x3] %vm544, %v573
      %v577 = vpack.c.bf16 %v542, %v542
      %v579 = vrot.slane %v577, 2
      %v582 = vsel %vm435, %v577, %v579
      %vm584 = vcmask 1043458
      %v585 = vsel %vm584, %v577, %v579
      %v587 = vrot.slane %v585, 2
      %v588 = vrot.slane %v582, 7
      %v589 = vrot.slane %v588, 2
      %v590 = vrot.slane %v587, 7
      %v591 = vsel %vm563, %v589, %v590
      %s593 = scalar_lea.vmem %s143, 6
      %594 = vst.msk [vmem:[%s593] sm:$0x3] %vm544, %v591
      %p595 = scmp.lt.s32.totalorder %s13, 1
      %s596 = scalar_select %p595, %s13, 1
      %s597 = smul.addr %s596, 4
      %s598 = smul.addr %s597, 2
      %s599 = scalar_lea.vmem %s2, %s598
      // Predicated region
      $region29: #{densenet_forward.18} parent=27 // pred_check
        %p600 = pneg %p78
      $region30: #{densenet_forward.18} parent=27 // pred_check_branch
        %602 = sbr.rel (%p600) target = $region32
      $region31: #{densenet_forward.18} parent=27 // pred_region
        _
      $region32: #{densenet_forward.18} parent=27 // pred_fallthru
        _
    $region28: #{densenet_forward.18} parent=5 // pred_fallthru
      _
    %p603 = scmp.le.s32.totalorder 2, %s8
    // Predicated region
    $region33: #{densenet_forward.18} parent=5 // pred_check
      %p604 = pneg %p603
    $region34: #{densenet_forward.18} parent=5 // pred_check_branch
      %606 = sbr.rel (%p604) target = $region36
    $region35: #{densenet_forward.18} parent=5 // pred_region
      %s607 = ssub.s32 %s8, 2
      // Predicated region
      $region37: #{densenet_forward.18} parent=35 // pred_check
        %p608 = pneg %p84
      $region38: #{densenet_forward.18} parent=35 // pred_check_branch
        %610 = sbr.rel (%p608) target = $region40
      $region39: #{densenet_forward.18} parent=35 // pred_region
        %p611 = scmp.lt.s32.totalorder %s14, 1
        %s612 = scalar_select %p611, %s14, 1
        %s613 = smul.addr %s612, 4
        %s614 = smul.addr %s613, 2
        %s615 = scalar_lea.vmem %s2, %s614
      $region40: #{densenet_forward.18} parent=35 // pred_fallthru
        _
    $region36: #{densenet_forward.18} parent=5 // pred_fallthru
      _
  $region6: #{densenet_forward.18} parent=0 // loop_footer
    %s12 = sadd.s32 1, %s8
  $region7: #{densenet_forward.18} parent=0 // loop_footer_branch
    %7 = sbr.rel target = $region3
  $region8: #{densenet_forward.18} parent=0 // loop_exit
    _

// kernel: densenet_forward.21
$region0: #{densenet_forward.21}
  #allocation0 [shape = 'u32[]', space=smem, size = 0x4, offset = 0x4, fixed_abs, tag = 'smem constant byte address 0x4 - core index']
  #allocation1 [shape = 'u32[72,128]{1,0:T(1,128)}', space=vmem, size = 0x9000, scoped, tag = 'internal scratch']
  %s0 = inlined_call_operand.vmem [shape: bf16[2,16,128], index: 0, kind: input, shape index: {}]
  %s1 = inlined_call_operand.vmem [shape: f32[1,128], index: 1, kind: input, shape index: {}]
  %s2 = inlined_call_operand.vmem [shape: f32[2,1,128], index: 2, kind: output, shape index: {}]
  %s3 = sld [smem:[#allocation0]]
  $region41: #{densenet_forward.21} parent=0
    _
  %s5 = ssub.s32 1, %s3
  %s6 = scalar_select 0, %s5, %s3
  loop: start=0, step=1, limit=4
  $region2: #{densenet_forward.21} parent=0 // loop_pre_header
    _
  $region3: #{densenet_forward.21} parent=0 // loop_header
    %s8 = sphi 0, %s12
    %p9 = scmp.ge.s32.totalorder %s8, 4
    %s18 = sphi 0, %s20
    %s21 = sphi 0, %s18
    %s22 = sphi 0, %s21
    %s38 = sphi 0, %s22
    %s42 = sphi 0, %s42
    %s44 = sphi 0, %s42
    %s45 = sphi 0, %s44
    %s59 = sphi 0, %s45
    %s65 = sphi 0, %s67
    %s68 = sphi 0, %s65
    %s69 = sphi 0, %s68
    %s85 = sphi 0, %s69
  $region4: #{densenet_forward.21} parent=0 // loop_header_branch
    %11 = sbr.rel (%p9) target = $region8
  $region5: #{densenet_forward.21} parent=0 // loop_body
    %s13 = ssub.s32 %s8, 1
    %s14 = ssub.s32 %s8, 2
    %s15 = sadd.s32 %s8, 1
    %s16 = ssub.s32 %s8, %s15
    %p17 = scmp.eq.s32.totalorder %s16, 0
    %s19 = sadd.s32 %s18, 1
    %s20 = scalar_select %p17, %s18, %s19
    %p23 = pneg %p17
    %p24 = scmp.eq.s32.totalorder %s8, 1
    %p25 = por %p23, %p24
    %p26 = scmp.ne.s32.totalorder %s18, %s21
    %p27 = scmp.eq.s32.totalorder %s8, 0
    %p28 = por %p26, %p27
    %p29 = scmp.ne.s32.totalorder %s18, %s21
    %p30 = scmp.eq.s32.totalorder %s13, 1
    %p31 = por %p29, %p30
    %p32 = scmp.ne.s32.totalorder %s21, %s22
    %p33 = scmp.eq.s32.totalorder %s13, 0
    %p34 = por %p32, %p33
    %p35 = scmp.ne.s32.totalorder %s21, %s22
    %p36 = scmp.eq.s32.totalorder %s14, 1
    %p37 = por %p35, %p36
    %p39 = scmp.ne.s32.totalorder %s22, %s38
    %p40 = scmp.eq.s32.totalorder %s14, 0
    %p41 = por %p39, %p40
    %s43 = sadd.s32 %s42, 1
    %p46 = scmp.eq.s32.totalorder %s8, 1
    %p47 = scmp.ne.s32.totalorder %s42, %s44
    %p48 = scmp.eq.s32.totalorder %s8, 0
    %p49 = por %p47, %p48
    %p50 = scmp.ne.s32.totalorder %s42, %s44
    %p51 = scmp.eq.s32.totalorder %s13, 1
    %p52 = por %p50, %p51
    %p53 = scmp.ne.s32.totalorder %s44, %s45
    %p54 = scmp.eq.s32.totalorder %s13, 0
    %p55 = por %p53, %p54
    %p56 = scmp.ne.s32.totalorder %s44, %s45
    %p57 = scmp.eq.s32.totalorder %s14, 1
    %p58 = por %p56, %p57
    %p60 = scmp.ne.s32.totalorder %s45, %s59
    %p61 = scmp.eq.s32.totalorder %s14, 0
    %p62 = por %p60, %p61
    %s63 = ssub.s32 %s8, %s15
    %p64 = scmp.eq.s32.totalorder %s63, 0
    %s66 = sadd.s32 %s65, 1
    %s67 = scalar_select %p64, %s65, %s66
    %p70 = pneg %p64
    %p71 = scmp.eq.s32.totalorder %s8, 1
    %p72 = por %p70, %p71
    %p73 = scmp.ne.s32.totalorder %s65, %s68
    %p74 = scmp.eq.s32.totalorder %s8, 0
    %p75 = por %p73, %p74
    %p76 = scmp.ne.s32.totalorder %s65, %s68
    %p77 = scmp.eq.s32.totalorder %s13, 1
    %p78 = por %p76, %p77
    %p79 = scmp.ne.s32.totalorder %s68, %s69
    %p80 = scmp.eq.s32.totalorder %s13, 0
    %p81 = por %p79, %p80
    %p82 = scmp.ne.s32.totalorder %s68, %s69
    %p83 = scmp.eq.s32.totalorder %s14, 1
    %p84 = por %p82, %p83
    %p86 = scmp.ne.s32.totalorder %s69, %s85
    %p87 = scmp.eq.s32.totalorder %s14, 0
    %p88 = por %p86, %p87
    %p89 = scmp.le.s32.totalorder 1, %s8
    %p90 = scmp.lt.s32.totalorder %s8, 3
    %p91 = pnand %p89, %p90
    %p92 = pneg %p91
    // Predicated region
    $region9: #{densenet_forward.21} parent=5 // pred_check
      _
    $region10: #{densenet_forward.21} parent=5 // pred_check_branch
      %94 = sbr.rel (%p91) target = $region12
    $region11: #{densenet_forward.21} parent=5 // pred_region
      %s95 = ssub.s32 %s8, 1
      // Predicated region
      $region13: #{densenet_forward.21} parent=11 // pred_check
        %p96 = pneg %p55
      $region14: #{densenet_forward.21} parent=11 // pred_check_branch
        %98 = sbr.rel (%p96) target = $region16
      $region15: #{densenet_forward.21} parent=11 // pred_region
        _
      $region16: #{densenet_forward.21} parent=11 // pred_fallthru
        _
    $region12: #{densenet_forward.21} parent=5 // pred_fallthru
      _
    %p99 = scmp.lt.s32.totalorder %s8, 2
    // Predicated region
    $region17: #{densenet_forward.21} parent=5 // pred_check
      %p100 = pneg %p99
    $region18: #{densenet_forward.21} parent=5 // pred_check_branch
      %102 = sbr.rel (%p100) target = $region20
    $region19: #{densenet_forward.21} parent=5 // pred_region
      // Predicated region
      $region21: #{densenet_forward.21} parent=19 // pred_check
        %p103 = pneg %p28
      $region22: #{densenet_forward.21} parent=19 // pred_check_branch
        %105 = sbr.rel (%p103) target = $region24
      $region23: #{densenet_forward.21} parent=19 // pred_region
        %p106 = scmp.lt.s32.totalorder %s8, 1
        %s107 = scalar_select %p106, %s8, 1
        %s108 = smul.addr %s107, 2
        %s109 = smul.addr %s108, 4
        %s110 = scalar_lea.vmem %s0, %s109
      $region24: #{densenet_forward.21} parent=19 // pred_fallthru
        _
    $region20: #{densenet_forward.21} parent=5 // pred_fallthru
      _
    %p111 = scmp.le.s32.totalorder 1, %s8
    %p112 = scmp.lt.s32.totalorder %s8, 3
    %p113 = pnand %p111, %p112
    %p114 = pneg %p113
    // Predicated region
    $region25: #{densenet_forward.21} parent=5 // pred_check
      _
    $region26: #{densenet_forward.21} parent=5 // pred_check_branch
      %116 = sbr.rel (%p113) target = $region28
    $region27: #{densenet_forward.21} parent=5 // pred_region
      %s117 = ssub.s32 %s8, 1
      %p118 = scmp.lt.s32.totalorder %s13, 1
      %s119 = scalar_select %p118, %s13, 1
      %s120 = smul.addr %s119, 2
      %s121 = smul.addr %s120, 4
      %s122 = scalar_lea.vmem %s0, %s121
      %p123 = pneg %p34
      %p124 = pneg %p31
      %p125 = pneg %p55
      %p126 = pneg %p52
      %p127 = pneg %p81
      %p128 = pneg %p78
      %p129 = scmp.lt.s32.totalorder %s13, 1
      %s130 = scalar_select %p129, %s13, 1
      %s131 = scalar_lea.vmem %s2, %s130
      %p132 = scmp.lt.s32.totalorder %s13, 1
      %s133 = scalar_select %p132, %s13, 1
      %s134 = smul.addr %s133, 2
      %s135 = smul.addr %s134, 4
      %s136 = scalar_lea.vmem %s0, %s135
      %p137 = scmp.lt.s32.totalorder %s13, 1
      %s138 = scalar_select %p137, %s13, 1
      %s139 = scalar_lea.vmem %s2, %s138
      %v140 = vld [vmem:[%s136] sm:$0xf]
      %v141 = vld [vmem:[%s136 + $0x4] sm:$0xf]
      %v142 = vunpack.c.l.bf16 %v140
      %v143 = vunpack.c.l.bf16 %v141
      %v144 = vld [vmem:[%s1] sm:$0x1]
      %v146 = vperm.slane %v144, 0
      %v148 = vadd.f32 %v142, %v146
      %v149 = vadd.f32 %v143, %v146
      %v150 = vmax.f32 %v148, 0.0
      %v151 = vmax.f32 %v149, 0.0
      %v152 = vadd.f32 %v150, %v151
      %v153 = vrot.slane %v152, 4
      %v154 = vadd.f32 %v152, %v153
      %v155 = vrot.slane %v154, 2
      %v156 = vadd.f32 %v154, %v155
      %v157 = vrot.slane %v156, 1
      %v158 = vadd.f32 %v156, %v157
      %v159 = vrcp.pop 16.0
      %v160 = vmul.f32 16.0, %v159
      %v161 = vsub.f32 1.0, %v160
      %v162 = vmul.f32 %v159, %v161
      %v163 = vadd.f32 %v159, %v162
      %vm164 = vweird.f32 %v159
      %v165 = vsel %vm164, %v159, %v163
      %v166 = vmul.f32 %v158, %v165
      %167 = vst [vmem:[%s139] sm:$0x1] %v166
      %p168 = scmp.lt.s32.totalorder %s13, 1
      %s169 = scalar_select %p168, %s13, 1
      %s170 = scalar_lea.vmem %s2, %s169
      // Predicated region
      $region29: #{densenet_forward.21} parent=27 // pred_check
        %p171 = pneg %p78
      $region30: #{densenet_forward.21} parent=27 // pred_check_branch
        %173 = sbr.rel (%p171) target = $region32
      $region31: #{densenet_forward.21} parent=27 // pred_region
        _
      $region32: #{densenet_forward.21} parent=27 // pred_fallthru
        _
    $region28: #{densenet_forward.21} parent=5 // pred_fallthru
      _
    %p174 = scmp.le.s32.totalorder 2, %s8
    // Predicated region
    $region33: #{densenet_forward.21} parent=5 // pred_check
      %p175 = pneg %p174
    $region34: #{densenet_forward.21} parent=5 // pred_check_branch
      %177 = sbr.rel (%p175) target = $region36
    $region35: #{densenet_forward.21} parent=5 // pred_region
      %s178 = ssub.s32 %s8, 2
      // Predicated region
      $region37: #{densenet_forward.21} parent=35 // pred_check
        %p179 = pneg %p84
      $region38: #{densenet_forward.21} parent=35 // pred_check_branch
        %181 = sbr.rel (%p179) target = $region40
      $region39: #{densenet_forward.21} parent=35 // pred_region
        %p182 = scmp.lt.s32.totalorder %s14, 1
        %s183 = scalar_select %p182, %s14, 1
        %s184 = scalar_lea.vmem %s2, %s183
      $region40: #{densenet_forward.21} parent=35 // pred_fallthru
        _
    $region36: #{densenet_forward.21} parent=5 // pred_fallthru
      _
  $region6: #{densenet_forward.21} parent=0 // loop_footer
    %s12 = sadd.s32 1, %s8
  $region7: #{densenet_forward.21} parent=0 // loop_footer_branch
    %7 = sbr.rel target = $region3
  $region8: #{densenet_forward.21} parent=0 // loop_exit
    _

</llo_original>
